<compile_context>
chip_gen: v5e
topology: v5e:2x2
jax: 0.10.0
libtpu: 0.0.40
codegen_flags: <defaults>
</compile_context>

<pallas_src>
import jax
import jax.numpy as jnp
from jax.experimental import pallas as pl
from jax.experimental.pallas import tpu as pltpu

NEG_SLOPE = 0.01   # nn.LeakyReLU() default
N_CLASSES = 12     # nn.Linear(input_days * 256 * 6, 12)

# (Cin, Cout, K, pad) for the six Conv2d layers (kernels (1, K), padding (0, p)).
CONV_CFG = (
    (1, 32, 7, 3),
    (32, 32, 5, 4),
    (32, 64, 5, 2),
    (64, 128, 4, 2),
    (128, 128, 3, 0),
    (128, 256, 3, 1),
)
POOL_AFTER = (1, 2, 4)   # MaxPool2d((1,2)) follows these conv indices (0-based)


def _round_up(x, m):
    return (x + m - 1) // m * m


def _cdiv(a, b):
    return -(-a // b)


def _conv_plan(w_in):
    """Static per-layer geometry.

    Each conv layer's zero-padded input (width w_in + 2*pad) is stored per row
    with stride s_store (rounded up to 8 sublanes, tail is zero); the conv
    produces o = w_in + 2*pad - k + 1 valid outputs per row."""
    layers = []
    w_cur = w_in
    for idx, (c_in, c_out, k, pad) in enumerate(CONV_CFG):
        s_raw = w_cur + 2 * pad
        s_store = _round_up(s_raw, 8)
        o = s_raw - k + 1
        pooled = idx in POOL_AFTER
        layers.append(dict(cin=c_in, cout=c_out, k=k, pad=pad,
                           w_in=w_cur, s_raw=s_raw, s_store=s_store,
                           o=o, pooled=pooled))
        w_cur = o // 2 if pooled else o
    return layers, w_cur


def _pick_row_block(r_total, klayers, wf, c_last, max_rb=32,
                    vmem_budget_bytes=10 << 20):
    """Row block from a VMEM budget (stays under the smallest default scoped
    VMEM limit, so no vmem_limit_bytes override is needed on v5e/v6e/v7x).
    Capped at 32: deep layers already reach M~128-256 there."""
    lanes = lambda c: _round_up(c, 128)          # VMEM pads lanes to 128
    per_row = 2 * klayers[0]['s_store'] * lanes(klayers[0]['cin']) * 4   # in blk (dbl buf)
    per_row += 2 * wf * lanes(c_last) * 4                                # out blk (dbl buf)
    for lay in klayers[1:]:
        per_row += lay['s_store'] * lanes(lay['cin']) * 4                # scratch
    rb = max(1, min(max_rb, vmem_budget_bytes // per_row, r_total))
    # Keep >= 2 grid steps when possible so ("parallel",) can shard across
    # both TensorCores on v7x megacore.
    if r_total >= 2 and _cdiv(r_total, rb) < 2:
        rb = _cdiv(r_total, 2)
    return int(rb), int(_cdiv(r_total, rb))


# ---------------------------------------------------------------------------
# Fused conv stack: conv1..conv5 + LeakyReLU + 3 fused max-pools, all in VMEM
# ---------------------------------------------------------------------------
def _make_fused_kernel(klayers, rb):
    n_l = len(klayers)
    assert not klayers[-1]['pooled']

    def rows_per_chunk(lay):
        # Largest rows-per-chunk keeping the live accumulators ~<= 32 vregs.
        cin_cols = _cdiv(lay['cin'], 128)
        cout_cols = _cdiv(lay['cout'], 128)

        def vregs(cr):
            if lay['pooled']:
                m_h = (cr - 1) * (lay['s_store'] // 2) + lay['o'] // 2
                return 2 * _cdiv(m_h, 8) * (cin_cols + cout_cols)
            m = (cr - 1) * lay['s_store'] + lay['o']
            return _cdiv(m, 8) * (cin_cols + cout_cols)

        cr = 1
        for c in range(1, rb + 1):
            if vregs(c) <= 32:
                cr = c
        return cr

    chunk_rows = [rows_per_chunk(lay) for lay in klayers]

    def kernel(*refs):
        x_ref = refs[0]
        w_refs = refs[1:1 + n_l]
        b_refs = refs[1 + n_l:1 + 2 * n_l]
        out_ref = refs[1 + 2 * n_l]
        scr = refs[2 + 2 * n_l:]   # padded inputs of kernel layers 1..n_l-1

        # Zero ONLY the pad margins of the scratch buffers; the valid region
        # is fully rewritten every step.  Done every step (not step 0 only) so
        # the "parallel" grid axis stays correct with per-core scratch.
        for li in range(1, n_l):
            lay = klayers[li]
            dst = scr[li - 1]
            s_nx, p_nx = lay['s_store'], lay['pad']
            w_v, c_in = lay['w_in'], lay['cin']
            right = s_nx - p_nx - w_v
            for r in range(rb):
                if p_nx > 0:
                    dst[r * s_nx:r * s_nx + p_nx, :] = (
                        jnp.zeros((p_nx, c_in), jnp.float32))
                if right > 0:
                    dst[r * s_nx + p_nx + w_v:(r + 1) * s_nx, :] = (
                        jnp.zeros((right, c_in), jnp.float32))

        src = x_ref
        for li, lay in enumerate(klayers):
            s, k_sz, o_w = lay['s_store'], lay['k'], lay['o']
            c_out = lay['cout']
            pooled = lay['pooled']
            last = li == n_l - 1
            if not last:
                nxt = klayers[li + 1]
                dst, s_nx, p_nx = scr[li], nxt['s_store'], nxt['pad']
            bias = b_refs[li][...]                       # (1, Cout)

            r0 = 0
            while r0 < rb:
                cr = min(chunk_rows[li], rb - r0)
                c0 = r0 * s
                if pooled:
                    # Fused conv + MaxPool2d((1,2)): the even / odd output
                    # columns are two strided-tap matmul chains; the pooled
                    # result is max'd on values (no full-res store, no temp).
                    hs, pw = s // 2, o_w // 2
                    m_h = (cr - 1) * hs + pw
                    len_e = m_h + k_sz // 2
                    len_o = m_h + (k_sz - 1) // 2
                    x_ev = src[pl.ds(c0, len_e, 2), :]      # src[c0 + 2t]
                    x_od = src[pl.ds(c0 + 1, len_o, 2), :]  # src[c0 + 1 + 2t]
                    acc_e = jnp.zeros((m_h, c_out), jnp.float32)
                    acc_o = jnp.zeros((m_h, c_out), jnp.float32)
                    for k in range(k_sz):
                        wk = w_refs[li][k]                  # (Cin, Cout)
                        t = k // 2
                        if k % 2 == 0:
                            acc_e = acc_e + jnp.dot(
                                x_ev[t:t + m_h, :], wk,
                                preferred_element_type=jnp.float32)
                            acc_o = acc_o + jnp.dot(
                                x_od[t:t + m_h, :], wk,
                                preferred_element_type=jnp.float32)
                        else:
                            acc_e = acc_e + jnp.dot(
                                x_od[t:t + m_h, :], wk,
                                preferred_element_type=jnp.float32)
                            acc_o = acc_o + jnp.dot(
                                x_ev[t + 1:t + 1 + m_h, :], wk,
                                preferred_element_type=jnp.float32)
                    acc = jnp.maximum(acc_e, acc_o) + bias
                    acc = jnp.where(acc >= 0, acc, NEG_SLOPE * acc)
                    for a in range(cr):
                        row = r0 + a
                        dst[row * s_nx + p_nx:row * s_nx + p_nx + pw, :] = (
                            acc[a * hs:a * hs + pw, :])
                else:
                    m = (cr - 1) * s + o_w   # rows folded into the matmul M dim
                    acc = jnp.zeros((m, c_out), jnp.float32)
                    for k in range(k_sz):
                        xs = src[c0 + k:c0 + k + m, :]
                        acc = acc + jnp.dot(xs, w_refs[li][k],
                                            preferred_element_type=jnp.float32)
                    acc = acc + bias
                    acc = jnp.where(acc >= 0, acc, NEG_SLOPE * acc)
                    if last:
                        # TODO(synk): fuse the 12-wide FC here as a per-block
                        # epilogue when rb % H == 0 to drop the second dispatch.
                        for a in range(cr):
                            out_ref[r0 + a, :, :] = acc[a * s:a * s + o_w, :]
                    else:
                        for a in range(cr):
                            row = r0 + a
                            dst[row * s_nx + p_nx:row * s_nx + p_nx + o_w, :] = (
                                acc[a * s:a * s + o_w, :])
                r0 += cr
            if not last:
                src = scr[li]

    return kernel


# ---------------------------------------------------------------------------
# Final fully-connected layer (output columns zero-padded 12 -> 128)
# ---------------------------------------------------------------------------
def _linear_kernel(x_ref, w_ref, b_ref, o_ref):
    o_ref[...] = (jnp.dot(x_ref[...], w_ref[...],
                          preferred_element_type=jnp.float32) + b_ref[...])


def _linear(x, w, b):
    return pl.pallas_call(
        _linear_kernel,
        out_shape=jax.ShapeDtypeStruct((x.shape[0], w.shape[1]), jnp.float32),
    )(x, w, b)


# ---------------------------------------------------------------------------
# Forward pass
# ---------------------------------------------------------------------------
def cnn_big_diff_forward(kparams, x_nchw):
    """x_nchw: (N, 1, H=input_days, W) float32 -> (N, 12)."""
    n, c_in, h, w_in = x_nchw.shape
    assert c_in == 1
    layers, wf = _conv_plan(w_in)
    klayers = layers[1:]                 # layers handled inside the kernel
    c_last = klayers[-1]['cout']
    r_total = n * h

    # conv0 prologue in XLA (Cin=1): tiny, and it makes the kernel's input
    # block lane-dense (32 channels) instead of 1 lane padded to 128.
    w0, b0 = kparams['conv0']
    p0 = CONV_CFG[0][3]
    y0 = jax.lax.conv_general_dilated(
        x_nchw, w0, (1, 1), ((0, 0), (p0, p0)),
        dimension_numbers=("NCHW", "OIHW", "NCHW"))
    y0 = y0 + b0[None, :, None, None]
    y0 = jnp.where(y0 >= 0, y0, NEG_SLOPE * y0)            # (N, 32, H, W)

    rb, n_blocks = _pick_row_block(r_total, klayers, wf, c_last)
    rows_pad = rb * n_blocks

    # Layer-1 padded input: channels last (lane axis), rows on sublanes,
    # zero-padded to the next row block (padded last block instead of rb=1).
    l1 = klayers[0]
    s1, p1 = l1['s_store'], l1['pad']
    rows = jnp.transpose(y0, (0, 2, 3, 1)).reshape(r_total, w_in, l1['cin'])
    rows = jnp.pad(rows, ((0, rows_pad - r_total),
                          (p1, s1 - w_in - p1), (0, 0)))
    x_flat = rows.reshape(rows_pad * s1, l1['cin'])

    conv_w, conv_b = kparams['conv_w'], kparams['conv_b']
    in_specs = [pl.BlockSpec((rb * s1, l1['cin']), lambda i: (i, 0))]
    for wm in conv_w:
        in_specs.append(pl.BlockSpec(wm.shape, lambda i: (0, 0, 0)))
    for bm in conv_b:
        in_specs.append(pl.BlockSpec(bm.shape, lambda i: (0, 0)))

    scratch = [pltpu.VMEM((rb * lay['s_store'], lay['cin']), jnp.float32)
               for lay in klayers[1:]]

    conv_out = pl.pallas_call(
        _make_fused_kernel(klayers, rb),
        out_shape=jax.ShapeDtypeStruct((rows_pad, wf, c_last), jnp.float32),
        grid=(n_blocks,),
        in_specs=in_specs,
        out_specs=pl.BlockSpec((rb, wf, c_last), lambda i: (i, 0, 0)),
        scratch_shapes=scratch,
        compiler_params=pltpu.CompilerParams(
            dimension_semantics=("parallel",)),
    )(x_flat, *conv_w, *conv_b)

    # (N*H, Wf, C) -> (N, H*Wf*C) is a contiguous reshape; FC weight rows were
    # permuted at prep time, so no transpose.  Padded rows are sliced off.
    feat = conv_out[:r_total].reshape(n, h * wf * c_last)
    fc_w, fc_b = kparams['fc']
    out = _linear(feat, fc_w, fc_b)          # (N, 128) zero-padded columns
    return out[:, :N_CLASSES]


# ---------------------------------------------------------------------------
# Parameters (torch layout) + one-time conversion to the kernel layout
# ---------------------------------------------------------------------------
def init_params(key, input_days):
    """PyTorch-layout params: conv w (Cout,Cin,1,K), b (Cout,);
    fc w (12, input_days*256*6), b (12,)."""
    convs = []
    for (c_in, c_out, k, _p) in CONV_CFG:
        key, kw, kb = jax.random.split(key, 3)
        scale = 1.0 / jnp.sqrt(float(c_in * k))
        w = jax.random.normal(kw, (c_out, c_in, 1, k), jnp.float32) * scale
        b = jax.random.normal(kb, (c_out,), jnp.float32) * scale
        convs.append((w, b))
    d_in = input_days * 256 * 6
    key, kw, kb = jax.random.split(key, 3)
    fc_w = jax.random.normal(kw, (12, d_in), jnp.float32) / jnp.sqrt(float(d_in))
    fc_b = jax.random.normal(kb, (12,), jnp.float32) * 0.01
    return {"convs": convs, "fc": (fc_w, fc_b)}


def prepare_params(params, input_days, w_in):
    """One-time conversion of torch-layout params to the kernel layout."""
    layers, wf = _conv_plan(w_in)
    c_last = layers[-1]['cout']
    convs = params["convs"]
    w0, b0 = convs[0]                         # conv0 stays in torch layout
    conv_w, conv_b = [], []
    for (w, b) in convs[1:]:
        c_out = w.shape[0]
        conv_w.append(jnp.transpose(w[:, :, 0, :], (2, 1, 0)))  # (K, Cin, Cout)
        conv_b.append(b.reshape(1, c_out))
    fc_w, fc_b = params["fc"]
    d_out, d_in = fc_w.shape
    assert d_in == c_last * input_days * wf, (d_in, c_last, input_days, wf)
    # torch flattens (N, C, H, Wf) -> c*(H*Wf)+h*Wf+w; the kernel flattens
    # (N, H, Wf, C) -> h*(Wf*C)+w*C+c.  Permute rows, then zero-pad the
    # 12 output columns to 128 so the FC kernel's stores are lane-dense.
    fc_w_perm = (fc_w.reshape(d_out, c_last, input_days, wf)
                 .transpose(2, 3, 1, 0)
                 .reshape(input_days * wf * c_last, d_out))
    pad_out = _round_up(d_out, 128) - d_out
    fc_w_pad = jnp.pad(fc_w_perm, ((0, 0), (0, pad_out)))
    fc_b_pad = jnp.pad(fc_b, ((0, pad_out),)).reshape(1, -1)
    return {"conv0": (w0, b0), "conv_w": conv_w, "conv_b": conv_b,
            "fc": (fc_w_pad, fc_b_pad)}


# ---------------------------------------------------------------------------
# Pure-JAX/XLA reference with exact PyTorch semantics (NCHW, torch flatten)
# ---------------------------------------------------------------------------
def forward_ref(params, x_nchw):
    y = x_nchw
    for i, (w, b) in enumerate(params["convs"]):
        pad = CONV_CFG[i][3]
        y = jax.lax.conv_general_dilated(
            y, w, window_strides=(1, 1), padding=((0, 0), (pad, pad)),
            dimension_numbers=("NCHW", "OIHW", "NCHW"))
        y = y + b[None, :, None, None]
        y = jnp.where(y >= 0, y, NEG_SLOPE * y)
        if i in POOL_AFTER:
            wo = y.shape[-1] // 2
            y = jnp.maximum(y[..., 0:2 * wo:2], y[..., 1:2 * wo:2])
    flat = y.reshape(y.shape[0], -1)
    fc_w, fc_b = params["fc"]
    return flat @ fc_w.T + fc_b


# ---------------------------------------------------------------------------
if __name__ == "__main__":
    key = jax.random.PRNGKey(0)
    input_days = 2   # H of the NCHW input
    batch = 2
    width = 48       # the module's FC requires the conv stack to end at W=6

    k_params, k_x = jax.random.split(key)
    params = init_params(k_params, input_days)
    kparams = prepare_params(params, input_days, width)
    x = jax.random.normal(k_x, (batch, 1, input_days, width), jnp.float32)

    fwd = jax.jit(cnn_big_diff_forward)
    out = jax.block_until_ready(fwd(kparams, x))
    assert out.shape == (batch, N_CLASSES), out.shape

    ref = forward_ref(params, x)
    err = float(jnp.max(jnp.abs(out - ref)))
    assert err < 1e-3, f"mismatch vs reference: {err}"

    print("KERNEL_OK")
</pallas_src>

<mosaic_0001>
module attributes {stable_mosaic.version = 11 : i64} {
  func.func @_linear_kernel(%arg0: memref<2x3072xf32, #tpu.memory_space<vmem>>, %arg1: memref<3072x128xf32, #tpu.memory_space<vmem>>, %arg2: memref<1x128xf32, #tpu.memory_space<vmem>>, %arg3: memref<2x128xf32, #tpu.memory_space<vmem>>) attributes {dimension_semantics = [], scalar_prefetch = 0 : i64, scratch_operands = 0 : i64, tpu.core_type = #tpu.core_type<tc>} {
    %c0 = arith.constant 0 : index
    %c0_0 = arith.constant 0 : index
    %0 = vector.load %arg0[%c0, %c0_0] : memref<2x3072xf32, #tpu.memory_space<vmem>>, vector<2x3072xf32>
    %c0_1 = arith.constant 0 : index
    %c0_2 = arith.constant 0 : index
    %1 = vector.load %arg1[%c0_1, %c0_2] : memref<3072x128xf32, #tpu.memory_space<vmem>>, vector<3072x128xf32>
    %cst = arith.constant dense<0.000000e+00> : vector<2x128xf32>
    %2 = tpu.matmul %0, %1, %cst {dimension_numbers = #tpu.dot_dimension_numbers<[1], [0], [0], [1], [0, 0, 1, 1], [], []>} : vector<2x3072xf32>, vector<3072x128xf32>, vector<2x128xf32> -> vector<2x128xf32>
    %c0_3 = arith.constant 0 : index
    %c0_4 = arith.constant 0 : index
    %3 = vector.load %arg2[%c0_3, %c0_4] : memref<1x128xf32, #tpu.memory_space<vmem>>, vector<1x128xf32>
    %4 = vector.broadcast %3 : vector<1x128xf32> to vector<2x128xf32>
    %5 = arith.addf %2, %4 : vector<2x128xf32>
    %c0_5 = arith.constant 0 : index
    %c0_6 = arith.constant 0 : index
    %6 = vector.load %arg3[%c0_5, %c0_6] : memref<2x128xf32, #tpu.memory_space<vmem>>, vector<2x128xf32>
    tpu.vector_store %arg3[%c0_5, %c0_6], %5 {strides = array<i32>} : memref<2x128xf32, #tpu.memory_space<vmem>>, vector<2x128xf32>,
    return
  }
}

module attributes {stable_mosaic.version = 11 : i64} {
  func.func @kernel(%arg0: i32, %arg1: memref<112x32xf32, #tpu.memory_space<vmem>>, %arg2: memref<5x32x32xf32, #tpu.memory_space<vmem>>, %arg3: memref<5x32x64xf32, #tpu.memory_space<vmem>>, %arg4: memref<4x64x128xf32, #tpu.memory_space<vmem>>, %arg5: memref<3x128x128xf32, #tpu.memory_space<vmem>>, %arg6: memref<3x128x256xf32, #tpu.memory_space<vmem>>, %arg7: memref<1x32xf32, #tpu.memory_space<vmem>>, %arg8: memref<1x64xf32, #tpu.memory_space<vmem>>, %arg9: memref<1x128xf32, #tpu.memory_space<vmem>>, %arg10: memref<1x128xf32, #tpu.memory_space<vmem>>, %arg11: memref<1x256xf32, #tpu.memory_space<vmem>>, %arg12: memref<2x6x256xf32, #tpu.memory_space<vmem>>, %arg13: memref<64x32xf32, #tpu.memory_space<vmem>>, %arg14: memref<48x64xf32, #tpu.memory_space<vmem>>, %arg15: memref<32x128xf32, #tpu.memory_space<vmem>>, %arg16: memref<16x128xf32, #tpu.memory_space<vmem>>) attributes {dimension_semantics = [#tpu.dimension_semantics<parallel>], iteration_bounds = array<i64: 2>, scalar_prefetch = 0 : i64, scratch_operands = 4 : i64, tpu.core_type = #tpu.core_type<tc>, window_params = [{transform_indices = @transform_0, window_bounds = array<i64: 112, 32>}, {pipeline_mode = #tpu.pipeline_mode<synchronous>, transform_indices = @transform_1, window_bounds = array<i64: 5, 32, 32>}, {pipeline_mode = #tpu.pipeline_mode<synchronous>, transform_indices = @transform_2, window_bounds = array<i64: 5, 32, 64>}, {pipeline_mode = #tpu.pipeline_mode<synchronous>, transform_indices = @transform_3, window_bounds = array<i64: 4, 64, 128>}, {pipeline_mode = #tpu.pipeline_mode<synchronous>, transform_indices = @transform_4, window_bounds = array<i64: 3, 128, 128>}, {pipeline_mode = #tpu.pipeline_mode<synchronous>, transform_indices = @transform_5, window_bounds = array<i64: 3, 128, 256>}, {pipeline_mode = #tpu.pipeline_mode<synchronous>, transform_indices = @transform_6, window_bounds = array<i64: 1, 32>}, {pipeline_mode = #tpu.pipeline_mode<synchronous>, transform_indices = @transform_7, window_bounds = array<i64: 1, 64>}, {pipeline_mode = #tpu.pipeline_mode<synchronous>, transform_indices = @transform_8, window_bounds = array<i64: 1, 128>}, {pipeline_mode = #tpu.pipeline_mode<synchronous>, transform_indices = @transform_9, window_bounds = array<i64: 1, 128>}, {pipeline_mode = #tpu.pipeline_mode<synchronous>, transform_indices = @transform_10, window_bounds = array<i64: 1, 256>}, {transform_indices = @transform_11, window_bounds = array<i64: 2, 6, 256>}]} {
    %cst = arith.constant 0.000000e+00 : f32
    %0 = vector.broadcast %cst : f32 to vector<2x32xf32>
    %c0 = arith.constant 0 : index
    %c0_0 = arith.constant 0 : index
    %1 = vector.load %arg13[%c0, %c0_0] : memref<64x32xf32, #tpu.memory_space<vmem>>, vector<2x32xf32>
    tpu.vector_store %arg13[%c0, %c0_0], %0 {strides = array<i32>} : memref<64x32xf32, #tpu.memory_space<vmem>>, vector<2x32xf32>,
    %cst_1 = arith.constant 0.000000e+00 : f32
    %2 = vector.broadcast %cst_1 : f32 to vector<4x32xf32>
    %c28 = arith.constant 28 : index
    %c0_2 = arith.constant 0 : index
    %3 = vector.load %arg13[%c28, %c0_2] : memref<64x32xf32, #tpu.memory_space<vmem>>, vector<4x32xf32>
    tpu.vector_store %arg13[%c28, %c0_2], %2 {strides = array<i32>} : memref<64x32xf32, #tpu.memory_space<vmem>>, vector<4x32xf32>,
    %cst_3 = arith.constant 0.000000e+00 : f32
    %4 = vector.broadcast %cst_3 : f32 to vector<2x32xf32>
    %c32 = arith.constant 32 : index
    %c0_4 = arith.constant 0 : index
    %5 = vector.load %arg13[%c32, %c0_4] : memref<64x32xf32, #tpu.memory_space<vmem>>, vector<2x32xf32>
    tpu.vector_store %arg13[%c32, %c0_4], %4 {strides = array<i32>} : memref<64x32xf32, #tpu.memory_space<vmem>>, vector<2x32xf32>,
    %cst_5 = arith.constant 0.000000e+00 : f32
    %6 = vector.broadcast %cst_5 : f32 to vector<4x32xf32>
    %c60 = arith.constant 60 : index
    %c0_6 = arith.constant 0 : index
    %7 = vector.load %arg13[%c60, %c0_6] : memref<64x32xf32, #tpu.memory_space<vmem>>, vector<4x32xf32>
    tpu.vector_store %arg13[%c60, %c0_6], %6 {strides = array<i32>} : memref<64x32xf32, #tpu.memory_space<vmem>>, vector<4x32xf32>,
    %cst_7 = arith.constant 0.000000e+00 : f32
    %8 = vector.broadcast %cst_7 : f32 to vector<2x64xf32>
    %c0_8 = arith.constant 0 : index
    %c0_9 = arith.constant 0 : index
    %9 = vector.load %arg14[%c0_8, %c0_9] : memref<48x64xf32, #tpu.memory_space<vmem>>, vector<2x64xf32>
    tpu.vector_store %arg14[%c0_8, %c0_9], %8 {strides = array<i32>} : memref<48x64xf32, #tpu.memory_space<vmem>>, vector<2x64xf32>,
    %cst_10 = arith.constant 0.000000e+00 : f32
    %10 = vector.broadcast %cst_10 : f32 to vector<9x64xf32>
    %c15 = arith.constant 15 : index
    %c0_11 = arith.constant 0 : index
    %11 = vector.load %arg14[%c15, %c0_11] : memref<48x64xf32, #tpu.memory_space<vmem>>, vector<9x64xf32>
    tpu.vector_store %arg14[%c15, %c0_11], %10 {strides = array<i32>} : memref<48x64xf32, #tpu.memory_space<vmem>>, vector<9x64xf32>,
    %cst_12 = arith.constant 0.000000e+00 : f32
    %12 = vector.broadcast %cst_12 : f32 to vector<2x64xf32>
    %c24 = arith.constant 24 : index
    %c0_13 = arith.constant 0 : index
    %13 = vector.load %arg14[%c24, %c0_13] : memref<48x64xf32, #tpu.memory_space<vmem>>, vector<2x64xf32>
    tpu.vector_store %arg14[%c24, %c0_13], %12 {strides = array<i32>} : memref<48x64xf32, #tpu.memory_space<vmem>>, vector<2x64xf32>,
    %cst_14 = arith.constant 0.000000e+00 : f32
    %14 = vector.broadcast %cst_14 : f32 to vector<9x64xf32>
    %c39 = arith.constant 39 : index
    %c0_15 = arith.constant 0 : index
    %15 = vector.load %arg14[%c39, %c0_15] : memref<48x64xf32, #tpu.memory_space<vmem>>, vector<9x64xf32>
    tpu.vector_store %arg14[%c39, %c0_15], %14 {strides = array<i32>} : memref<48x64xf32, #tpu.memory_space<vmem>>, vector<9x64xf32>,
    %cst_16 = arith.constant 0.000000e+00 : f32
    %16 = vector.broadcast %cst_16 : f32 to vector<2x128xf32>
    %c14 = arith.constant 14 : index
    %c0_17 = arith.constant 0 : index
    %17 = vector.load %arg15[%c14, %c0_17] : memref<32x128xf32, #tpu.memory_space<vmem>>, vector<2x128xf32>
    tpu.vector_store %arg15[%c14, %c0_17], %16 {strides = array<i32>} : memref<32x128xf32, #tpu.memory_space<vmem>>, vector<2x128xf32>,
    %cst_18 = arith.constant 0.000000e+00 : f32
    %18 = vector.broadcast %cst_18 : f32 to vector<2x128xf32>
    %c30 = arith.constant 30 : index
    %c0_19 = arith.constant 0 : index
    %19 = vector.load %arg15[%c30, %c0_19] : memref<32x128xf32, #tpu.memory_space<vmem>>, vector<2x128xf32>
    tpu.vector_store %arg15[%c30, %c0_19], %18 {strides = array<i32>} : memref<32x128xf32, #tpu.memory_space<vmem>>, vector<2x128xf32>,
    %cst_20 = arith.constant 0.000000e+00 : f32
    %20 = vector.broadcast %cst_20 : f32 to vector<1x128xf32>
    %c0_21 = arith.constant 0 : index
    %c0_22 = arith.constant 0 : index
    %21 = vector.load %arg16[%c0_21, %c0_22] : memref<16x128xf32, #tpu.memory_space<vmem>>, vector<1x128xf32>
    tpu.vector_store %arg16[%c0_21, %c0_22], %20 {strides = array<i32>} : memref<16x128xf32, #tpu.memory_space<vmem>>, vector<1x128xf32>,
    %cst_23 = arith.constant 0.000000e+00 : f32
    %22 = vector.broadcast %cst_23 : f32 to vector<1x128xf32>
    %c7 = arith.constant 7 : index
    %c0_24 = arith.constant 0 : index
    %23 = vector.load %arg16[%c7, %c0_24] : memref<16x128xf32, #tpu.memory_space<vmem>>, vector<1x128xf32>
    tpu.vector_store %arg16[%c7, %c0_24], %22 {strides = array<i32>} : memref<16x128xf32, #tpu.memory_space<vmem>>, vector<1x128xf32>,
    %cst_25 = arith.constant 0.000000e+00 : f32
    %24 = vector.broadcast %cst_25 : f32 to vector<1x128xf32>
    %c8 = arith.constant 8 : index
    %c0_26 = arith.constant 0 : index
    %25 = vector.load %arg16[%c8, %c0_26] : memref<16x128xf32, #tpu.memory_space<vmem>>, vector<1x128xf32>
    tpu.vector_store %arg16[%c8, %c0_26], %24 {strides = array<i32>} : memref<16x128xf32, #tpu.memory_space<vmem>>, vector<1x128xf32>,
    %cst_27 = arith.constant 0.000000e+00 : f32
    %26 = vector.broadcast %cst_27 : f32 to vector<1x128xf32>
    %c15_28 = arith.constant 15 : index
    %c0_29 = arith.constant 0 : index
    %27 = vector.load %arg16[%c15_28, %c0_29] : memref<16x128xf32, #tpu.memory_space<vmem>>, vector<1x128xf32>
    tpu.vector_store %arg16[%c15_28, %c0_29], %26 {strides = array<i32>} : memref<16x128xf32, #tpu.memory_space<vmem>>, vector<1x128xf32>,
    %c0_30 = arith.constant 0 : index
    %c0_31 = arith.constant 0 : index
    %28 = vector.load %arg7[%c0_30, %c0_31] : memref<1x32xf32, #tpu.memory_space<vmem>>, vector<1x32xf32>
    %c0_32 = arith.constant 0 : index
    %c0_33 = arith.constant 0 : index
    %29 = tpu.strided_load %arg1[%c0_32, %c0_33] {strides = array<i32: 2, 1>} : memref<112x32xf32, #tpu.memory_space<vmem>>, vector<56x32xf32>
    %c1 = arith.constant 1 : index
    %c0_34 = arith.constant 0 : index
    %30 = tpu.strided_load %arg1[%c1, %c0_34] {strides = array<i32: 2, 1>} : memref<112x32xf32, #tpu.memory_space<vmem>>, vector<56x32xf32>
    %cst_35 = arith.constant 0.000000e+00 : f32
    %31 = vector.broadcast %cst_35 : f32 to vector<54x32xf32>
    %cst_36 = arith.constant 0.000000e+00 : f32
    %32 = vector.broadcast %cst_36 : f32 to vector<54x32xf32>
    %c0_37 = arith.constant 0 : index
    %c0_38 = arith.constant 0 : index
    %c0_39 = arith.constant 0 : index
    %33 = vector.load %arg2[%c0_37, %c0_38, %c0_39] : memref<5x32x32xf32, #tpu.memory_space<vmem>>, vector<1x32x32xf32>
    %34 = vector.shape_cast %33 : vector<1x32x32xf32> to vector<32x32xf32>
    %35 = vector.extract_strided_slice %29 {offsets = [0, 0], sizes = [54, 32], strides = [1, 1]} : vector<56x32xf32> to vector<54x32xf32>
    %cst_40 = arith.constant dense<0.000000e+00> : vector<54x32xf32>
    %36 = tpu.matmul %35, %34, %cst_40 {dimension_numbers = #tpu.dot_dimension_numbers<[1], [0], [0], [1], [0, 0, 1, 1], [], []>} : vector<54x32xf32>, vector<32x32xf32>, vector<54x32xf32> -> vector<54x32xf32>
    %37 = arith.addf %31, %36 : vector<54x32xf32>
    %38 = vector.extract_strided_slice %30 {offsets = [0, 0], sizes = [54, 32], strides = [1, 1]} : vector<56x32xf32> to vector<54x32xf32>
    %cst_41 = arith.constant dense<0.000000e+00> : vector<54x32xf32>
    %39 = tpu.matmul %38, %34, %cst_41 {dimension_numbers = #tpu.dot_dimension_numbers<[1], [0], [0], [1], [0, 0, 1, 1], [], []>} : vector<54x32xf32>, vector<32x32xf32>, vector<54x32xf32> -> vector<54x32xf32>
    %40 = arith.addf %32, %39 : vector<54x32xf32>
    %c1_42 = arith.constant 1 : index
    %c0_43 = arith.constant 0 : index
    %c0_44 = arith.constant 0 : index
    %41 = vector.load %arg2[%c1_42, %c0_43, %c0_44] : memref<5x32x32xf32, #tpu.memory_space<vmem>>, vector<1x32x32xf32>
    %42 = vector.shape_cast %41 : vector<1x32x32xf32> to vector<32x32xf32>
    %43 = vector.extract_strided_slice %30 {offsets = [0, 0], sizes = [54, 32], strides = [1, 1]} : vector<56x32xf32> to vector<54x32xf32>
    %cst_45 = arith.constant dense<0.000000e+00> : vector<54x32xf32>
    %44 = tpu.matmul %43, %42, %cst_45 {dimension_numbers = #tpu.dot_dimension_numbers<[1], [0], [0], [1], [0, 0, 1, 1], [], []>} : vector<54x32xf32>, vector<32x32xf32>, vector<54x32xf32> -> vector<54x32xf32>
    %45 = arith.addf %37, %44 : vector<54x32xf32>
    %46 = vector.extract_strided_slice %29 {offsets = [1, 0], sizes = [54, 32], strides = [1, 1]} : vector<56x32xf32> to vector<54x32xf32>
    %cst_46 = arith.constant dense<0.000000e+00> : vector<54x32xf32>
    %47 = tpu.matmul %46, %42, %cst_46 {dimension_numbers = #tpu.dot_dimension_numbers<[1], [0], [0], [1], [0, 0, 1, 1], [], []>} : vector<54x32xf32>, vector<32x32xf32>, vector<54x32xf32> -> vector<54x32xf32>
    %48 = arith.addf %40, %47 : vector<54x32xf32>
    %c2 = arith.constant 2 : index
    %c0_47 = arith.constant 0 : index
    %c0_48 = arith.constant 0 : index
    %49 = vector.load %arg2[%c2, %c0_47, %c0_48] : memref<5x32x32xf32, #tpu.memory_space<vmem>>, vector<1x32x32xf32>
    %50 = vector.shape_cast %49 : vector<1x32x32xf32> to vector<32x32xf32>
    %51 = vector.extract_strided_slice %29 {offsets = [1, 0], sizes = [54, 32], strides = [1, 1]} : vector<56x32xf32> to vector<54x32xf32>
    %cst_49 = arith.constant dense<0.000000e+00> : vector<54x32xf32>
    %52 = tpu.matmul %51, %50, %cst_49 {dimension_numbers = #tpu.dot_dimension_numbers<[1], [0], [0], [1], [0, 0, 1, 1], [], []>} : vector<54x32xf32>, vector<32x32xf32>, vector<54x32xf32> -> vector<54x32xf32>
    %53 = arith.addf %45, %52 : vector<54x32xf32>
    %54 = vector.extract_strided_slice %30 {offsets = [1, 0], sizes = [54, 32], strides = [1, 1]} : vector<56x32xf32> to vector<54x32xf32>
    %cst_50 = arith.constant dense<0.000000e+00> : vector<54x32xf32>
    %55 = tpu.matmul %54, %50, %cst_50 {dimension_numbers = #tpu.dot_dimension_numbers<[1], [0], [0], [1], [0, 0, 1, 1], [], []>} : vector<54x32xf32>, vector<32x32xf32>, vector<54x32xf32> -> vector<54x32xf32>
    %56 = arith.addf %48, %55 : vector<54x32xf32>
    %c3 = arith.constant 3 : index
    %c0_51 = arith.constant 0 : index
    %c0_52 = arith.constant 0 : index
    %57 = vector.load %arg2[%c3, %c0_51, %c0_52] : memref<5x32x32xf32, #tpu.memory_space<vmem>>, vector<1x32x32xf32>
    %58 = vector.shape_cast %57 : vector<1x32x32xf32> to vector<32x32xf32>
    %59 = vector.extract_strided_slice %30 {offsets = [1, 0], sizes = [54, 32], strides = [1, 1]} : vector<56x32xf32> to vector<54x32xf32>
    %cst_53 = arith.constant dense<0.000000e+00> : vector<54x32xf32>
    %60 = tpu.matmul %59, %58, %cst_53 {dimension_numbers = #tpu.dot_dimension_numbers<[1], [0], [0], [1], [0, 0, 1, 1], [], []>} : vector<54x32xf32>, vector<32x32xf32>, vector<54x32xf32> -> vector<54x32xf32>
    %61 = arith.addf %53, %60 : vector<54x32xf32>
    %62 = vector.extract_strided_slice %29 {offsets = [2, 0], sizes = [54, 32], strides = [1, 1]} : vector<56x32xf32> to vector<54x32xf32>
    %cst_54 = arith.constant dense<0.000000e+00> : vector<54x32xf32>
    %63 = tpu.matmul %62, %58, %cst_54 {dimension_numbers = #tpu.dot_dimension_numbers<[1], [0], [0], [1], [0, 0, 1, 1], [], []>} : vector<54x32xf32>, vector<32x32xf32>, vector<54x32xf32> -> vector<54x32xf32>
    %64 = arith.addf %56, %63 : vector<54x32xf32>
    %c4 = arith.constant 4 : index
    %c0_55 = arith.constant 0 : index
    %c0_56 = arith.constant 0 : index
    %65 = vector.load %arg2[%c4, %c0_55, %c0_56] : memref<5x32x32xf32, #tpu.memory_space<vmem>>, vector<1x32x32xf32>
    %66 = vector.shape_cast %65 : vector<1x32x32xf32> to vector<32x32xf32>
    %67 = vector.extract_strided_slice %29 {offsets = [2, 0], sizes = [54, 32], strides = [1, 1]} : vector<56x32xf32> to vector<54x32xf32>
    %cst_57 = arith.constant dense<0.000000e+00> : vector<54x32xf32>
    %68 = tpu.matmul %67, %66, %cst_57 {dimension_numbers = #tpu.dot_dimension_numbers<[1], [0], [0], [1], [0, 0, 1, 1], [], []>} : vector<54x32xf32>, vector<32x32xf32>, vector<54x32xf32> -> vector<54x32xf32>
    %69 = arith.addf %61, %68 : vector<54x32xf32>
    %70 = vector.extract_strided_slice %30 {offsets = [2, 0], sizes = [54, 32], strides = [1, 1]} : vector<56x32xf32> to vector<54x32xf32>
    %cst_58 = arith.constant dense<0.000000e+00> : vector<54x32xf32>
    %71 = tpu.matmul %70, %66, %cst_58 {dimension_numbers = #tpu.dot_dimension_numbers<[1], [0], [0], [1], [0, 0, 1, 1], [], []>} : vector<54x32xf32>, vector<32x32xf32>, vector<54x32xf32> -> vector<54x32xf32>
    %72 = arith.addf %64, %71 : vector<54x32xf32>
    %73 = arith.maximumf %69, %72 : vector<54x32xf32>
    %74 = vector.broadcast %28 : vector<1x32xf32> to vector<54x32xf32>
    %75 = arith.addf %73, %74 : vector<54x32xf32>
    %cst_59 = arith.constant 0.000000e+00 : f32
    %76 = vector.broadcast %cst_59 : f32 to vector<54x32xf32>
    %77 = arith.cmpf oge, %75, %76 : vector<54x32xf32>
    %cst_60 = arith.constant 0.00999999977 : f32
    %78 = vector.broadcast %cst_60 : f32 to vector<54x32xf32>
    %79 = arith.mulf %78, %75 : vector<54x32xf32>
    %80 = arith.select %77, %75, %79 : vector<54x32xi1>, vector<54x32xf32>
    %81 = vector.extract_strided_slice %80 {offsets = [0, 0], sizes = [26, 32], strides = [1, 1]} : vector<54x32xf32> to vector<26x32xf32>
    %c2_61 = arith.constant 2 : index
    %c0_62 = arith.constant 0 : index
    %82 = vector.load %arg13[%c2_61, %c0_62] : memref<64x32xf32, #tpu.memory_space<vmem>>, vector<26x32xf32>
    tpu.vector_store %arg13[%c2_61, %c0_62], %81 {strides = array<i32>} : memref<64x32xf32, #tpu.memory_space<vmem>>, vector<26x32xf32>,
    %83 = vector.extract_strided_slice %80 {offsets = [28, 0], sizes = [26, 32], strides = [1, 1]} : vector<54x32xf32> to vector<26x32xf32>
    %c34 = arith.constant 34 : index
    %c0_63 = arith.constant 0 : index
    %84 = vector.load %arg13[%c34, %c0_63] : memref<64x32xf32, #tpu.memory_space<vmem>>, vector<26x32xf32>
    tpu.vector_store %arg13[%c34, %c0_63], %83 {strides = array<i32>} : memref<64x32xf32, #tpu.memory_space<vmem>>, vector<26x32xf32>,
    %c0_64 = arith.constant 0 : index
    %c0_65 = arith.constant 0 : index
    %85 = vector.load %arg8[%c0_64, %c0_65] : memref<1x64xf32, #tpu.memory_space<vmem>>, vector<1x64xf32>
    %c0_66 = arith.constant 0 : index
    %c0_67 = arith.constant 0 : index
    %86 = tpu.strided_load %arg13[%c0_66, %c0_67] {strides = array<i32: 2, 1>} : memref<64x32xf32, #tpu.memory_space<vmem>>, vector<31x32xf32>
    %c1_68 = arith.constant 1 : index
    %c0_69 = arith.constant 0 : index
    %87 = tpu.strided_load %arg13[%c1_68, %c0_69] {strides = array<i32: 2, 1>} : memref<64x32xf32, #tpu.memory_space<vmem>>, vector<31x32xf32>
    %cst_70 = arith.constant 0.000000e+00 : f32
    %88 = vector.broadcast %cst_70 : f32 to vector<29x64xf32>
    %cst_71 = arith.constant 0.000000e+00 : f32
    %89 = vector.broadcast %cst_71 : f32 to vector<29x64xf32>
    %c0_72 = arith.constant 0 : index
    %c0_73 = arith.constant 0 : index
    %c0_74 = arith.constant 0 : index
    %90 = vector.load %arg3[%c0_72, %c0_73, %c0_74] : memref<5x32x64xf32, #tpu.memory_space<vmem>>, vector<1x32x64xf32>
    %91 = vector.shape_cast %90 : vector<1x32x64xf32> to vector<32x64xf32>
    %92 = vector.extract_strided_slice %86 {offsets = [0, 0], sizes = [29, 32], strides = [1, 1]} : vector<31x32xf32> to vector<29x32xf32>
    %cst_75 = arith.constant dense<0.000000e+00> : vector<29x64xf32>
    %93 = tpu.matmul %92, %91, %cst_75 {dimension_numbers = #tpu.dot_dimension_numbers<[1], [0], [0], [1], [0, 0, 1, 1], [], []>} : vector<29x32xf32>, vector<32x64xf32>, vector<29x64xf32> -> vector<29x64xf32>
    %94 = arith.addf %88, %93 : vector<29x64xf32>
    %95 = vector.extract_strided_slice %87 {offsets = [0, 0], sizes = [29, 32], strides = [1, 1]} : vector<31x32xf32> to vector<29x32xf32>
    %cst_76 = arith.constant dense<0.000000e+00> : vector<29x64xf32>
    %96 = tpu.matmul %95, %91, %cst_76 {dimension_numbers = #tpu.dot_dimension_numbers<[1], [0], [0], [1], [0, 0, 1, 1], [], []>} : vector<29x32xf32>, vector<32x64xf32>, vector<29x64xf32> -> vector<29x64xf32>
    %97 = arith.addf %89, %96 : vector<29x64xf32>
    %c1_77 = arith.constant 1 : index
    %c0_78 = arith.constant 0 : index
    %c0_79 = arith.constant 0 : index
    %98 = vector.load %arg3[%c1_77, %c0_78, %c0_79] : memref<5x32x64xf32, #tpu.memory_space<vmem>>, vector<1x32x64xf32>
    %99 = vector.shape_cast %98 : vector<1x32x64xf32> to vector<32x64xf32>
    %100 = vector.extract_strided_slice %87 {offsets = [0, 0], sizes = [29, 32], strides = [1, 1]} : vector<31x32xf32> to vector<29x32xf32>
    %cst_80 = arith.constant dense<0.000000e+00> : vector<29x64xf32>
    %101 = tpu.matmul %100, %99, %cst_80 {dimension_numbers = #tpu.dot_dimension_numbers<[1], [0], [0], [1], [0, 0, 1, 1], [], []>} : vector<29x32xf32>, vector<32x64xf32>, vector<29x64xf32> -> vector<29x64xf32>
    %102 = arith.addf %94, %101 : vector<29x64xf32>
    %103 = vector.extract_strided_slice %86 {offsets = [1, 0], sizes = [29, 32], strides = [1, 1]} : vector<31x32xf32> to vector<29x32xf32>
    %cst_81 = arith.constant dense<0.000000e+00> : vector<29x64xf32>
    %104 = tpu.matmul %103, %99, %cst_81 {dimension_numbers = #tpu.dot_dimension_numbers<[1], [0], [0], [1], [0, 0, 1, 1], [], []>} : vector<29x32xf32>, vector<32x64xf32>, vector<29x64xf32> -> vector<29x64xf32>
    %105 = arith.addf %97, %104 : vector<29x64xf32>
    %c2_82 = arith.constant 2 : index
    %c0_83 = arith.constant 0 : index
    %c0_84 = arith.constant 0 : index
    %106 = vector.load %arg3[%c2_82, %c0_83, %c0_84] : memref<5x32x64xf32, #tpu.memory_space<vmem>>, vector<1x32x64xf32>
    %107 = vector.shape_cast %106 : vector<1x32x64xf32> to vector<32x64xf32>
    %108 = vector.extract_strided_slice %86 {offsets = [1, 0], sizes = [29, 32], strides = [1, 1]} : vector<31x32xf32> to vector<29x32xf32>
    %cst_85 = arith.constant dense<0.000000e+00> : vector<29x64xf32>
    %109 = tpu.matmul %108, %107, %cst_85 {dimension_numbers = #tpu.dot_dimension_numbers<[1], [0], [0], [1], [0, 0, 1, 1], [], []>} : vector<29x32xf32>, vector<32x64xf32>, vector<29x64xf32> -> vector<29x64xf32>
    %110 = arith.addf %102, %109 : vector<29x64xf32>
    %111 = vector.extract_strided_slice %87 {offsets = [1, 0], sizes = [29, 32], strides = [1, 1]} : vector<31x32xf32> to vector<29x32xf32>
    %cst_86 = arith.constant dense<0.000000e+00> : vector<29x64xf32>
    %112 = tpu.matmul %111, %107, %cst_86 {dimension_numbers = #tpu.dot_dimension_numbers<[1], [0], [0], [1], [0, 0, 1, 1], [], []>} : vector<29x32xf32>, vector<32x64xf32>, vector<29x64xf32> -> vector<29x64xf32>
    %113 = arith.addf %105, %112 : vector<29x64xf32>
    %c3_87 = arith.constant 3 : index
    %c0_88 = arith.constant 0 : index
    %c0_89 = arith.constant 0 : index
    %114 = vector.load %arg3[%c3_87, %c0_88, %c0_89] : memref<5x32x64xf32, #tpu.memory_space<vmem>>, vector<1x32x64xf32>
    %115 = vector.shape_cast %114 : vector<1x32x64xf32> to vector<32x64xf32>
    %116 = vector.extract_strided_slice %87 {offsets = [1, 0], sizes = [29, 32], strides = [1, 1]} : vector<31x32xf32> to vector<29x32xf32>
    %cst_90 = arith.constant dense<0.000000e+00> : vector<29x64xf32>
    %117 = tpu.matmul %116, %115, %cst_90 {dimension_numbers = #tpu.dot_dimension_numbers<[1], [0], [0], [1], [0, 0, 1, 1], [], []>} : vector<29x32xf32>, vector<32x64xf32>, vector<29x64xf32> -> vector<29x64xf32>
    %118 = arith.addf %110, %117 : vector<29x64xf32>
    %119 = vector.extract_strided_slice %86 {offsets = [2, 0], sizes = [29, 32], strides = [1, 1]} : vector<31x32xf32> to vector<29x32xf32>
    %cst_91 = arith.constant dense<0.000000e+00> : vector<29x64xf32>
    %120 = tpu.matmul %119, %115, %cst_91 {dimension_numbers = #tpu.dot_dimension_numbers<[1], [0], [0], [1], [0, 0, 1, 1], [], []>} : vector<29x32xf32>, vector<32x64xf32>, vector<29x64xf32> -> vector<29x64xf32>
    %121 = arith.addf %113, %120 : vector<29x64xf32>
    %c4_92 = arith.constant 4 : index
    %c0_93 = arith.constant 0 : index
    %c0_94 = arith.constant 0 : index
    %122 = vector.load %arg3[%c4_92, %c0_93, %c0_94] : memref<5x32x64xf32, #tpu.memory_space<vmem>>, vector<1x32x64xf32>
    %123 = vector.shape_cast %122 : vector<1x32x64xf32> to vector<32x64xf32>
    %124 = vector.extract_strided_slice %86 {offsets = [2, 0], sizes = [29, 32], strides = [1, 1]} : vector<31x32xf32> to vector<29x32xf32>
    %cst_95 = arith.constant dense<0.000000e+00> : vector<29x64xf32>
    %125 = tpu.matmul %124, %123, %cst_95 {dimension_numbers = #tpu.dot_dimension_numbers<[1], [0], [0], [1], [0, 0, 1, 1], [], []>} : vector<29x32xf32>, vector<32x64xf32>, vector<29x64xf32> -> vector<29x64xf32>
    %126 = arith.addf %118, %125 : vector<29x64xf32>
    %127 = vector.extract_strided_slice %87 {offsets = [2, 0], sizes = [29, 32], strides = [1, 1]} : vector<31x32xf32> to vector<29x32xf32>
    %cst_96 = arith.constant dense<0.000000e+00> : vector<29x64xf32>
    %128 = tpu.matmul %127, %123, %cst_96 {dimension_numbers = #tpu.dot_dimension_numbers<[1], [0], [0], [1], [0, 0, 1, 1], [], []>} : vector<29x32xf32>, vector<32x64xf32>, vector<29x64xf32> -> vector<29x64xf32>
    %129 = arith.addf %121, %128 : vector<29x64xf32>
    %130 = arith.maximumf %126, %129 : vector<29x64xf32>
    %131 = vector.broadcast %85 : vector<1x64xf32> to vector<29x64xf32>
    %132 = arith.addf %130, %131 : vector<29x64xf32>
    %cst_97 = arith.constant 0.000000e+00 : f32
    %133 = vector.broadcast %cst_97 : f32 to vector<29x64xf32>
    %134 = arith.cmpf oge, %132, %133 : vector<29x64xf32>
    %cst_98 = arith.constant 0.00999999977 : f32
    %135 = vector.broadcast %cst_98 : f32 to vector<29x64xf32>
    %136 = arith.mulf %135, %132 : vector<29x64xf32>
    %137 = arith.select %134, %132, %136 : vector<29x64xi1>, vector<29x64xf32>
    %138 = vector.extract_strided_slice %137 {offsets = [0, 0], sizes = [13, 64], strides = [1, 1]} : vector<29x64xf32> to vector<13x64xf32>
    %c2_99 = arith.constant 2 : index
    %c0_100 = arith.constant 0 : index
    %139 = vector.load %arg14[%c2_99, %c0_100] : memref<48x64xf32, #tpu.memory_space<vmem>>, vector<13x64xf32>
    tpu.vector_store %arg14[%c2_99, %c0_100], %138 {strides = array<i32>} : memref<48x64xf32, #tpu.memory_space<vmem>>, vector<13x64xf32>,
    %140 = vector.extract_strided_slice %137 {offsets = [16, 0], sizes = [13, 64], strides = [1, 1]} : vector<29x64xf32> to vector<13x64xf32>
    %c26 = arith.constant 26 : index
    %c0_101 = arith.constant 0 : index
    %141 = vector.load %arg14[%c26, %c0_101] : memref<48x64xf32, #tpu.memory_space<vmem>>, vector<13x64xf32>
    tpu.vector_store %arg14[%c26, %c0_101], %140 {strides = array<i32>} : memref<48x64xf32, #tpu.memory_space<vmem>>, vector<13x64xf32>,
    %c0_102 = arith.constant 0 : index
    %c0_103 = arith.constant 0 : index
    %142 = vector.load %arg9[%c0_102, %c0_103] : memref<1x128xf32, #tpu.memory_space<vmem>>, vector<1x128xf32>
    %cst_104 = arith.constant 0.000000e+00 : f32
    %143 = vector.broadcast %cst_104 : f32 to vector<38x128xf32>
    %c0_105 = arith.constant 0 : index
    %c0_106 = arith.constant 0 : index
    %144 = vector.load %arg14[%c0_105, %c0_106] : memref<48x64xf32, #tpu.memory_space<vmem>>, vector<38x64xf32>
    %c0_107 = arith.constant 0 : index
    %c0_108 = arith.constant 0 : index
    %c0_109 = arith.constant 0 : index
    %145 = vector.load %arg4[%c0_107, %c0_108, %c0_109] : memref<4x64x128xf32, #tpu.memory_space<vmem>>, vector<1x64x128xf32>
    %146 = vector.shape_cast %145 : vector<1x64x128xf32> to vector<64x128xf32>
    %cst_110 = arith.constant dense<0.000000e+00> : vector<38x128xf32>
    %147 = tpu.matmul %144, %146, %cst_110 {dimension_numbers = #tpu.dot_dimension_numbers<[1], [0], [0], [1], [0, 0, 1, 1], [], []>} : vector<38x64xf32>, vector<64x128xf32>, vector<38x128xf32> -> vector<38x128xf32>
    %148 = arith.addf %143, %147 : vector<38x128xf32>
    %c1_111 = arith.constant 1 : index
    %c0_112 = arith.constant 0 : index
    %149 = vector.load %arg14[%c1_111, %c0_112] : memref<48x64xf32, #tpu.memory_space<vmem>>, vector<38x64xf32>
    %c1_113 = arith.constant 1 : index
    %c0_114 = arith.constant 0 : index
    %c0_115 = arith.constant 0 : index
    %150 = vector.load %arg4[%c1_113, %c0_114, %c0_115] : memref<4x64x128xf32, #tpu.memory_space<vmem>>, vector<1x64x128xf32>
    %151 = vector.shape_cast %150 : vector<1x64x128xf32> to vector<64x128xf32>
    %cst_116 = arith.constant dense<0.000000e+00> : vector<38x128xf32>
    %152 = tpu.matmul %149, %151, %cst_116 {dimension_numbers = #tpu.dot_dimension_numbers<[1], [0], [0], [1], [0, 0, 1, 1], [], []>} : vector<38x64xf32>, vector<64x128xf32>, vector<38x128xf32> -> vector<38x128xf32>
    %153 = arith.addf %148, %152 : vector<38x128xf32>
    %c2_117 = arith.constant 2 : index
    %c0_118 = arith.constant 0 : index
    %154 = vector.load %arg14[%c2_117, %c0_118] : memref<48x64xf32, #tpu.memory_space<vmem>>, vector<38x64xf32>
    %c2_119 = arith.constant 2 : index
    %c0_120 = arith.constant 0 : index
    %c0_121 = arith.constant 0 : index
    %155 = vector.load %arg4[%c2_119, %c0_120, %c0_121] : memref<4x64x128xf32, #tpu.memory_space<vmem>>, vector<1x64x128xf32>
    %156 = vector.shape_cast %155 : vector<1x64x128xf32> to vector<64x128xf32>
    %cst_122 = arith.constant dense<0.000000e+00> : vector<38x128xf32>
    %157 = tpu.matmul %154, %156, %cst_122 {dimension_numbers = #tpu.dot_dimension_numbers<[1], [0], [0], [1], [0, 0, 1, 1], [], []>} : vector<38x64xf32>, vector<64x128xf32>, vector<38x128xf32> -> vector<38x128xf32>
    %158 = arith.addf %153, %157 : vector<38x128xf32>
    %c3_123 = arith.constant 3 : index
    %c0_124 = arith.constant 0 : index
    %159 = vector.load %arg14[%c3_123, %c0_124] : memref<48x64xf32, #tpu.memory_space<vmem>>, vector<38x64xf32>
    %c3_125 = arith.constant 3 : index
    %c0_126 = arith.constant 0 : index
    %c0_127 = arith.constant 0 : index
    %160 = vector.load %arg4[%c3_125, %c0_126, %c0_127] : memref<4x64x128xf32, #tpu.memory_space<vmem>>, vector<1x64x128xf32>
    %161 = vector.shape_cast %160 : vector<1x64x128xf32> to vector<64x128xf32>
    %cst_128 = arith.constant dense<0.000000e+00> : vector<38x128xf32>
    %162 = tpu.matmul %159, %161, %cst_128 {dimension_numbers = #tpu.dot_dimension_numbers<[1], [0], [0], [1], [0, 0, 1, 1], [], []>} : vector<38x64xf32>, vector<64x128xf32>, vector<38x128xf32> -> vector<38x128xf32>
    %163 = arith.addf %158, %162 : vector<38x128xf32>
    %164 = vector.broadcast %142 : vector<1x128xf32> to vector<38x128xf32>
    %165 = arith.addf %163, %164 : vector<38x128xf32>
    %cst_129 = arith.constant 0.000000e+00 : f32
    %166 = vector.broadcast %cst_129 : f32 to vector<38x128xf32>
    %167 = arith.cmpf oge, %165, %166 : vector<38x128xf32>
    %cst_130 = arith.constant 0.00999999977 : f32
    %168 = vector.broadcast %cst_130 : f32 to vector<38x128xf32>
    %169 = arith.mulf %168, %165 : vector<38x128xf32>
    %170 = arith.select %167, %165, %169 : vector<38x128xi1>, vector<38x128xf32>
    %171 = vector.extract_strided_slice %170 {offsets = [0, 0], sizes = [14, 128], strides = [1, 1]} : vector<38x128xf32> to vector<14x128xf32>
    %c0_131 = arith.constant 0 : index
    %c0_132 = arith.constant 0 : index
    %172 = vector.load %arg15[%c0_131, %c0_132] : memref<32x128xf32, #tpu.memory_space<vmem>>, vector<14x128xf32>
    tpu.vector_store %arg15[%c0_131, %c0_132], %171 {strides = array<i32>} : memref<32x128xf32, #tpu.memory_space<vmem>>, vector<14x128xf32>,
    %173 = vector.extract_strided_slice %170 {offsets = [24, 0], sizes = [14, 128], strides = [1, 1]} : vector<38x128xf32> to vector<14x128xf32>
    %c16 = arith.constant 16 : index
    %c0_133 = arith.constant 0 : index
    %174 = vector.load %arg15[%c16, %c0_133] : memref<32x128xf32, #tpu.memory_space<vmem>>, vector<14x128xf32>
    tpu.vector_store %arg15[%c16, %c0_133], %173 {strides = array<i32>} : memref<32x128xf32, #tpu.memory_space<vmem>>, vector<14x128xf32>,
    %c0_134 = arith.constant 0 : index
    %c0_135 = arith.constant 0 : index
    %175 = vector.load %arg10[%c0_134, %c0_135] : memref<1x128xf32, #tpu.memory_space<vmem>>, vector<1x128xf32>
    %c0_136 = arith.constant 0 : index
    %c0_137 = arith.constant 0 : index
    %176 = tpu.strided_load %arg15[%c0_136, %c0_137] {strides = array<i32: 2, 1>} : memref<32x128xf32, #tpu.memory_space<vmem>>, vector<15x128xf32>
    %c1_138 = arith.constant 1 : index
    %c0_139 = arith.constant 0 : index
    %177 = tpu.strided_load %arg15[%c1_138, %c0_139] {strides = array<i32: 2, 1>} : memref<32x128xf32, #tpu.memory_space<vmem>>, vector<15x128xf32>
    %cst_140 = arith.constant 0.000000e+00 : f32
    %178 = vector.broadcast %cst_140 : f32 to vector<14x128xf32>
    %cst_141 = arith.constant 0.000000e+00 : f32
    %179 = vector.broadcast %cst_141 : f32 to vector<14x128xf32>
    %c0_142 = arith.constant 0 : index
    %c0_143 = arith.constant 0 : index
    %c0_144 = arith.constant 0 : index
    %180 = vector.load %arg5[%c0_142, %c0_143, %c0_144] : memref<3x128x128xf32, #tpu.memory_space<vmem>>, vector<1x128x128xf32>
    %181 = vector.shape_cast %180 : vector<1x128x128xf32> to vector<128x128xf32>
    %182 = vector.extract_strided_slice %176 {offsets = [0, 0], sizes = [14, 128], strides = [1, 1]} : vector<15x128xf32> to vector<14x128xf32>
    %cst_145 = arith.constant dense<0.000000e+00> : vector<14x128xf32>
    %183 = tpu.matmul %182, %181, %cst_145 {dimension_numbers = #tpu.dot_dimension_numbers<[1], [0], [0], [1], [0, 0, 1, 1], [], []>} : vector<14x128xf32>, vector<128x128xf32>, vector<14x128xf32> -> vector<14x128xf32>
    %184 = arith.addf %178, %183 : vector<14x128xf32>
    %185 = vector.extract_strided_slice %177 {offsets = [0, 0], sizes = [14, 128], strides = [1, 1]} : vector<15x128xf32> to vector<14x128xf32>
    %cst_146 = arith.constant dense<0.000000e+00> : vector<14x128xf32>
    %186 = tpu.matmul %185, %181, %cst_146 {dimension_numbers = #tpu.dot_dimension_numbers<[1], [0], [0], [1], [0, 0, 1, 1], [], []>} : vector<14x128xf32>, vector<128x128xf32>, vector<14x128xf32> -> vector<14x128xf32>
    %187 = arith.addf %179, %186 : vector<14x128xf32>
    %c1_147 = arith.constant 1 : index
    %c0_148 = arith.constant 0 : index
    %c0_149 = arith.constant 0 : index
    %188 = vector.load %arg5[%c1_147, %c0_148, %c0_149] : memref<3x128x128xf32, #tpu.memory_space<vmem>>, vector<1x128x128xf32>
    %189 = vector.shape_cast %188 : vector<1x128x128xf32> to vector<128x128xf32>
    %190 = vector.extract_strided_slice %177 {offsets = [0, 0], sizes = [14, 128], strides = [1, 1]} : vector<15x128xf32> to vector<14x128xf32>
    %cst_150 = arith.constant dense<0.000000e+00> : vector<14x128xf32>
    %191 = tpu.matmul %190, %189, %cst_150 {dimension_numbers = #tpu.dot_dimension_numbers<[1], [0], [0], [1], [0, 0, 1, 1], [], []>} : vector<14x128xf32>, vector<128x128xf32>, vector<14x128xf32> -> vector<14x128xf32>
    %192 = arith.addf %184, %191 : vector<14x128xf32>
    %193 = vector.extract_strided_slice %176 {offsets = [1, 0], sizes = [14, 128], strides = [1, 1]} : vector<15x128xf32> to vector<14x128xf32>
    %cst_151 = arith.constant dense<0.000000e+00> : vector<14x128xf32>
    %194 = tpu.matmul %193, %189, %cst_151 {dimension_numbers = #tpu.dot_dimension_numbers<[1], [0], [0], [1], [0, 0, 1, 1], [], []>} : vector<14x128xf32>, vector<128x128xf32>, vector<14x128xf32> -> vector<14x128xf32>
    %195 = arith.addf %187, %194 : vector<14x128xf32>
    %c2_152 = arith.constant 2 : index
    %c0_153 = arith.constant 0 : index
    %c0_154 = arith.constant 0 : index
    %196 = vector.load %arg5[%c2_152, %c0_153, %c0_154] : memref<3x128x128xf32, #tpu.memory_space<vmem>>, vector<1x128x128xf32>
    %197 = vector.shape_cast %196 : vector<1x128x128xf32> to vector<128x128xf32>
    %198 = vector.extract_strided_slice %176 {offsets = [1, 0], sizes = [14, 128], strides = [1, 1]} : vector<15x128xf32> to vector<14x128xf32>
    %cst_155 = arith.constant dense<0.000000e+00> : vector<14x128xf32>
    %199 = tpu.matmul %198, %197, %cst_155 {dimension_numbers = #tpu.dot_dimension_numbers<[1], [0], [0], [1], [0, 0, 1, 1], [], []>} : vector<14x128xf32>, vector<128x128xf32>, vector<14x128xf32> -> vector<14x128xf32>
    %200 = arith.addf %192, %199 : vector<14x128xf32>
    %201 = vector.extract_strided_slice %177 {offsets = [1, 0], sizes = [14, 128], strides = [1, 1]} : vector<15x128xf32> to vector<14x128xf32>
    %cst_156 = arith.constant dense<0.000000e+00> : vector<14x128xf32>
    %202 = tpu.matmul %201, %197, %cst_156 {dimension_numbers = #tpu.dot_dimension_numbers<[1], [0], [0], [1], [0, 0, 1, 1], [], []>} : vector<14x128xf32>, vector<128x128xf32>, vector<14x128xf32> -> vector<14x128xf32>
    %203 = arith.addf %195, %202 : vector<14x128xf32>
    %204 = arith.maximumf %200, %203 : vector<14x128xf32>
    %205 = vector.broadcast %175 : vector<1x128xf32> to vector<14x128xf32>
    %206 = arith.addf %204, %205 : vector<14x128xf32>
    %cst_157 = arith.constant 0.000000e+00 : f32
    %207 = vector.broadcast %cst_157 : f32 to vector<14x128xf32>
    %208 = arith.cmpf oge, %206, %207 : vector<14x128xf32>
    %cst_158 = arith.constant 0.00999999977 : f32
    %209 = vector.broadcast %cst_158 : f32 to vector<14x128xf32>
    %210 = arith.mulf %209, %206 : vector<14x128xf32>
    %211 = arith.select %208, %206, %210 : vector<14x128xi1>, vector<14x128xf32>
    %212 = vector.extract_strided_slice %211 {offsets = [0, 0], sizes = [6, 128], strides = [1, 1]} : vector<14x128xf32> to vector<6x128xf32>
    %c1_159 = arith.constant 1 : index
    %c0_160 = arith.constant 0 : index
    %213 = vector.load %arg16[%c1_159, %c0_160] : memref<16x128xf32, #tpu.memory_space<vmem>>, vector<6x128xf32>
    tpu.vector_store %arg16[%c1_159, %c0_160], %212 {strides = array<i32>} : memref<16x128xf32, #tpu.memory_space<vmem>>, vector<6x128xf32>,
    %214 = vector.extract_strided_slice %211 {offsets = [8, 0], sizes = [6, 128], strides = [1, 1]} : vector<14x128xf32> to vector<6x128xf32>
    %c9 = arith.constant 9 : index
    %c0_161 = arith.constant 0 : index
    %215 = vector.load %arg16[%c9, %c0_161] : memref<16x128xf32, #tpu.memory_space<vmem>>, vector<6x128xf32>
    tpu.vector_store %arg16[%c9, %c0_161], %214 {strides = array<i32>} : memref<16x128xf32, #tpu.memory_space<vmem>>, vector<6x128xf32>,
    %c0_162 = arith.constant 0 : index
    %c0_163 = arith.constant 0 : index
    %216 = vector.load %arg11[%c0_162, %c0_163] : memref<1x256xf32, #tpu.memory_space<vmem>>, vector<1x256xf32>
    %cst_164 = arith.constant 0.000000e+00 : f32
    %217 = vector.broadcast %cst_164 : f32 to vector<14x256xf32>
    %c0_165 = arith.constant 0 : index
    %c0_166 = arith.constant 0 : index
    %218 = vector.load %arg16[%c0_165, %c0_166] : memref<16x128xf32, #tpu.memory_space<vmem>>, vector<14x128xf32>
    %c0_167 = arith.constant 0 : index
    %c0_168 = arith.constant 0 : index
    %c0_169 = arith.constant 0 : index
    %219 = vector.load %arg6[%c0_167, %c0_168, %c0_169] : memref<3x128x256xf32, #tpu.memory_space<vmem>>, vector<1x128x256xf32>
    %220 = vector.shape_cast %219 : vector<1x128x256xf32> to vector<128x256xf32>
    %cst_170 = arith.constant dense<0.000000e+00> : vector<14x256xf32>
    %221 = tpu.matmul %218, %220, %cst_170 {dimension_numbers = #tpu.dot_dimension_numbers<[1], [0], [0], [1], [0, 0, 1, 1], [], []>} : vector<14x128xf32>, vector<128x256xf32>, vector<14x256xf32> -> vector<14x256xf32>
    %222 = arith.addf %217, %221 : vector<14x256xf32>
    %c1_171 = arith.constant 1 : index
    %c0_172 = arith.constant 0 : index
    %223 = vector.load %arg16[%c1_171, %c0_172] : memref<16x128xf32, #tpu.memory_space<vmem>>, vector<14x128xf32>
    %c1_173 = arith.constant 1 : index
    %c0_174 = arith.constant 0 : index
    %c0_175 = arith.constant 0 : index
    %224 = vector.load %arg6[%c1_173, %c0_174, %c0_175] : memref<3x128x256xf32, #tpu.memory_space<vmem>>, vector<1x128x256xf32>
    %225 = vector.shape_cast %224 : vector<1x128x256xf32> to vector<128x256xf32>
    %cst_176 = arith.constant dense<0.000000e+00> : vector<14x256xf32>
    %226 = tpu.matmul %223, %225, %cst_176 {dimension_numbers = #tpu.dot_dimension_numbers<[1], [0], [0], [1], [0, 0, 1, 1], [], []>} : vector<14x128xf32>, vector<128x256xf32>, vector<14x256xf32> -> vector<14x256xf32>
    %227 = arith.addf %222, %226 : vector<14x256xf32>
    %c2_177 = arith.constant 2 : index
    %c0_178 = arith.constant 0 : index
    %228 = vector.load %arg16[%c2_177, %c0_178] : memref<16x128xf32, #tpu.memory_space<vmem>>, vector<14x128xf32>
    %c2_179 = arith.constant 2 : index
    %c0_180 = arith.constant 0 : index
    %c0_181 = arith.constant 0 : index
    %229 = vector.load %arg6[%c2_179, %c0_180, %c0_181] : memref<3x128x256xf32, #tpu.memory_space<vmem>>, vector<1x128x256xf32>
    %230 = vector.shape_cast %229 : vector<1x128x256xf32> to vector<128x256xf32>
    %cst_182 = arith.constant dense<0.000000e+00> : vector<14x256xf32>
    %231 = tpu.matmul %228, %230, %cst_182 {dimension_numbers = #tpu.dot_dimension_numbers<[1], [0], [0], [1], [0, 0, 1, 1], [], []>} : vector<14x128xf32>, vector<128x256xf32>, vector<14x256xf32> -> vector<14x256xf32>
    %232 = arith.addf %227, %231 : vector<14x256xf32>
    %233 = vector.broadcast %216 : vector<1x256xf32> to vector<14x256xf32>
    %234 = arith.addf %232, %233 : vector<14x256xf32>
    %cst_183 = arith.constant 0.000000e+00 : f32
    %235 = vector.broadcast %cst_183 : f32 to vector<14x256xf32>
    %236 = arith.cmpf oge, %234, %235 : vector<14x256xf32>
    %cst_184 = arith.constant 0.00999999977 : f32
    %237 = vector.broadcast %cst_184 : f32 to vector<14x256xf32>
    %238 = arith.mulf %237, %234 : vector<14x256xf32>
    %239 = arith.select %236, %234, %238 : vector<14x256xi1>, vector<14x256xf32>
    %240 = vector.extract_strided_slice %239 {offsets = [0, 0], sizes = [6, 256], strides = [1, 1]} : vector<14x256xf32> to vector<6x256xf32>
    %c0_185 = arith.constant 0 : index
    %c0_186 = arith.constant 0 : index
    %c0_187 = arith.constant 0 : index
    %241 = vector.load %arg12[%c0_185, %c0_186, %c0_187] : memref<2x6x256xf32, #tpu.memory_space<vmem>>, vector<1x6x256xf32>
    %242 = vector.shape_cast %241 : vector<1x6x256xf32> to vector<6x256xf32>
    %243 = vector.shape_cast %240 : vector<6x256xf32> to vector<1x6x256xf32>
    tpu.vector_store %arg12[%c0_185, %c0_186, %c0_187], %243 {strides = array<i32>} : memref<2x6x256xf32, #tpu.memory_space<vmem>>, vector<1x6x256xf32>,
    %244 = vector.extract_strided_slice %239 {offsets = [8, 0], sizes = [6, 256], strides = [1, 1]} : vector<14x256xf32> to vector<6x256xf32>
    %c1_188 = arith.constant 1 : index
    %c0_189 = arith.constant 0 : index
    %c0_190 = arith.constant 0 : index
    %245 = vector.load %arg12[%c1_188, %c0_189, %c0_190] : memref<2x6x256xf32, #tpu.memory_space<vmem>>, vector<1x6x256xf32>
    %246 = vector.shape_cast %245 : vector<1x6x256xf32> to vector<6x256xf32>
    %247 = vector.shape_cast %244 : vector<6x256xf32> to vector<1x6x256xf32>
    tpu.vector_store %arg12[%c1_188, %c0_189, %c0_190], %247 {strides = array<i32>} : memref<2x6x256xf32, #tpu.memory_space<vmem>>, vector<1x6x256xf32>,
    return
  }
  func.func @transform_0(%arg0: i32) -> (i32, i32) {
    %c0_i32 = arith.constant 0 : i32
    %c0_i32_0 = arith.constant 0 : i32
    return %arg0, %c0_i32 : i32, i32
  }
  func.func @transform_1(%arg0: i32) -> (i32, i32, i32) {
    %c0_i32 = arith.constant 0 : i32
    %c0_i32_0 = arith.constant 0 : i32
    %c0_i32_1 = arith.constant 0 : i32
    %c0_i32_2 = arith.constant 0 : i32
    return %c0_i32, %c0_i32_0, %c0_i32_1 : i32, i32, i32
  }
  func.func @transform_2(%arg0: i32) -> (i32, i32, i32) {
    %c0_i32 = arith.constant 0 : i32
    %c0_i32_0 = arith.constant 0 : i32
    %c0_i32_1 = arith.constant 0 : i32
    %c0_i32_2 = arith.constant 0 : i32
    return %c0_i32, %c0_i32_0, %c0_i32_1 : i32, i32, i32
  }
  func.func @transform_3(%arg0: i32) -> (i32, i32, i32) {
    %c0_i32 = arith.constant 0 : i32
    %c0_i32_0 = arith.constant 0 : i32
    %c0_i32_1 = arith.constant 0 : i32
    %c0_i32_2 = arith.constant 0 : i32
    return %c0_i32, %c0_i32_0, %c0_i32_1 : i32, i32, i32
  }
  func.func @transform_4(%arg0: i32) -> (i32, i32, i32) {
    %c0_i32 = arith.constant 0 : i32
    %c0_i32_0 = arith.constant 0 : i32
    %c0_i32_1 = arith.constant 0 : i32
    %c0_i32_2 = arith.constant 0 : i32
    return %c0_i32, %c0_i32_0, %c0_i32_1 : i32, i32, i32
  }
  func.func @transform_5(%arg0: i32) -> (i32, i32, i32) {
    %c0_i32 = arith.constant 0 : i32
    %c0_i32_0 = arith.constant 0 : i32
    %c0_i32_1 = arith.constant 0 : i32
    %c0_i32_2 = arith.constant 0 : i32
    return %c0_i32, %c0_i32_0, %c0_i32_1 : i32, i32, i32
  }
  func.func @transform_6(%arg0: i32) -> (i32, i32) {
    %c0_i32 = arith.constant 0 : i32
    %c0_i32_0 = arith.constant 0 : i32
    %c0_i32_1 = arith.constant 0 : i32
    return %c0_i32, %c0_i32_0 : i32, i32
  }
  func.func @transform_7(%arg0: i32) -> (i32, i32) {
    %c0_i32 = arith.constant 0 : i32
    %c0_i32_0 = arith.constant 0 : i32
    %c0_i32_1 = arith.constant 0 : i32
    return %c0_i32, %c0_i32_0 : i32, i32
  }
  func.func @transform_8(%arg0: i32) -> (i32, i32) {
    %c0_i32 = arith.constant 0 : i32
    %c0_i32_0 = arith.constant 0 : i32
    %c0_i32_1 = arith.constant 0 : i32
    return %c0_i32, %c0_i32_0 : i32, i32
  }
  func.func @transform_9(%arg0: i32) -> (i32, i32) {
    %c0_i32 = arith.constant 0 : i32
    %c0_i32_0 = arith.constant 0 : i32
    %c0_i32_1 = arith.constant 0 : i32
    return %c0_i32, %c0_i32_0 : i32, i32
  }
  func.func @transform_10(%arg0: i32) -> (i32, i32) {
    %c0_i32 = arith.constant 0 : i32
    %c0_i32_0 = arith.constant 0 : i32
    %c0_i32_1 = arith.constant 0 : i32
    return %c0_i32, %c0_i32_0 : i32, i32
  }
  func.func @transform_11(%arg0: i32) -> (i32, i32, i32) {
    %c0_i32 = arith.constant 0 : i32
    %c0_i32_0 = arith.constant 0 : i32
    %c0_i32_1 = arith.constant 0 : i32
    return %arg0, %c0_i32, %c0_i32_0 : i32, i32, i32
  }
}

</mosaic_0001>

<llo_original>
// kernel: cnn_big_diff_forward.3
$region0: #{cnn_big_diff_forward.3}
  #allocation0 [shape = 'u32[]', space=smem, size = 0x4, offset = 0x4, fixed_abs, tag = 'smem constant byte address 0x4 - core index']
  #allocation1 [shape = 'u32[72,128]{1,0:T(1,128)}', space=vmem, size = 0x9000, scoped, tag = 'internal scratch']
  %s0 = inlined_call_operand.vmem [shape: f32[2,3072], index: 0, kind: input, shape index: {}]
  %s1 = inlined_call_operand.hbm [shape: f32[3072,128], index: 1, kind: input, shape index: {}]
  %s2 = inlined_call_operand.hbm [shape: f32[1,128], index: 2, kind: input, shape index: {}]
  %s3 = inlined_call_operand.hbm [shape: f32[2,128], index: 3, kind: output, shape index: {}]
  %s4 = sld [smem:[#allocation0]]
  $region30: #{cnn_big_diff_forward.3} parent=0
    _
  %s6 = ssub.s32 1, %s4
  %s7 = scalar_select 0, %s6, %s4
  $region1: #{cnn_big_diff_forward.3} parent=0
    #allocation2 [shape = 'u8[1572864]{0}', space=vmem, size = 0x180000, scoped, tag = 'input window, operand 1, single buffered']
    #allocation3 [shape = 's32[1]{0}', space=sflag, size = 0x4, scoped, tag = 'scoped memory for cnn_big_diff_forward.3']
    #allocation4 [shape = 's32[1]{0}', space=sflag, size = 0x4, scoped, tag = 'scoped memory for cnn_big_diff_forward.3']
    #allocation5 [shape = 'u8[512]{0}', space=vmem, size = 0x400, scoped, tag = 'input window, operand 2, single buffered']
    #allocation6 [shape = 's32[1]{0}', space=sflag, size = 0x4, scoped, tag = 'scoped memory for cnn_big_diff_forward.3']
    #allocation7 [shape = 'u8[1024]{0}', space=vmem, size = 0x400, scoped, tag = 'output window, operand 0, single buffered']
    %8 = vsyncpa [#allocation3], 0
    %9 = vsyncpa [#allocation6], 0
    %10 = vsyncpa [#allocation4], 0
    // Predicated region
    $region2: #{cnn_big_diff_forward.3} parent=1 // pred_check
      _
    $region3: #{cnn_big_diff_forward.3} parent=1 // pred_check_branch
      %12 = sbr.rel (0) target = $region5
    $region4: #{cnn_big_diff_forward.3} parent=1 // pred_region
      _
    $region5: #{cnn_big_diff_forward.3} parent=1 // pred_fallthru
      _
    // Predicated region
    $region6: #{cnn_big_diff_forward.3} parent=1 // pred_check
      _
    $region7: #{cnn_big_diff_forward.3} parent=1 // pred_check_branch
      %14 = sbr.rel (0) target = $region9
    $region8: #{cnn_big_diff_forward.3} parent=1 // pred_region
      %16 = vsyncadd [#allocation3], 0
      %s17 = sshll.u32 %s1, 4
      %s18 = int_to_ptr.hbm [resolvable:$true] %s17
      %s19 = sshll.u32 [#allocation2], 4
      %s20 = int_to_ptr.vmem [resolvable:$true] %s19
      %25 = dma.hbm_to_vmem [thread:$0]  %s18, 49152, %s20, [#allocation3], 128, 128, 8
    $region9: #{cnn_big_diff_forward.3} parent=1 // pred_fallthru
      _
    // Predicated region
    $region10: #{cnn_big_diff_forward.3} parent=1 // pred_check
      _
    $region11: #{cnn_big_diff_forward.3} parent=1 // pred_check_branch
      %27 = sbr.rel (0) target = $region13
    $region12: #{cnn_big_diff_forward.3} parent=1 // pred_region
      %29 = vsyncadd [#allocation6], 0
      %s31 = sshll.u32 %s2, 4
      %s32 = int_to_ptr.hbm [resolvable:$true] %s31
      %s33 = sshll.u32 [#allocation5], 4
      %s34 = int_to_ptr.vmem [resolvable:$true] %s33
      %36 = dma.hbm_to_vmem [thread:$0]  %s32, 16, %s34, [#allocation6]
    $region13: #{cnn_big_diff_forward.3} parent=1 // pred_fallthru
      _
    // Predicated region
    $region14: #{cnn_big_diff_forward.3} parent=1 // pred_check
      _
    $region15: #{cnn_big_diff_forward.3} parent=1 // pred_check_branch
      %38 = sbr.rel (0) target = $region17
    $region16: #{cnn_big_diff_forward.3} parent=1 // pred_region
      %40 = dma.done [#allocation3], 49152
    $region17: #{cnn_big_diff_forward.3} parent=1 // pred_fallthru
      _
    // Predicated region
    $region18: #{cnn_big_diff_forward.3} parent=1 // pred_check
      _
    $region19: #{cnn_big_diff_forward.3} parent=1 // pred_check_branch
      %42 = sbr.rel (0) target = $region21
    $region20: #{cnn_big_diff_forward.3} parent=1 // pred_region
      %44 = dma.done [#allocation6], 16
    $region21: #{cnn_big_diff_forward.3} parent=1 // pred_fallthru
      _
    %v45 = vld [vmem:[%s0] sm:$0xff]
    %v46 = vld [vmem:[%s0 + $0x8] sm:$0xff]
    %v47 = vld [vmem:[%s0 + $0x10] sm:$0xff]
    %v48 = vld [vmem:[%s0 + $0x18] sm:$0xff]
    %v49 = vld [vmem:[%s0 + $0x20] sm:$0xff]
    %v50 = vld [vmem:[%s0 + $0x28] sm:$0xff]
    %v51 = vld [vmem:[#allocation2] sm:$0xff]
    %v52 = vld [vmem:[#allocation2 + $0x8] sm:$0xff]
    %v53 = vld [vmem:[#allocation2 + $0x10] sm:$0xff]
    %v54 = vld [vmem:[#allocation2 + $0x18] sm:$0xff]
    %v55 = vld [vmem:[#allocation2 + $0x20] sm:$0xff]
    %v56 = vld [vmem:[#allocation2 + $0x28] sm:$0xff]
    %v57 = vld [vmem:[#allocation2 + $0x30] sm:$0xff]
    %v58 = vld [vmem:[#allocation2 + $0x38] sm:$0xff]
    %v59 = vld [vmem:[#allocation2 + $0x40] sm:$0xff]
    %v60 = vld [vmem:[#allocation2 + $0x48] sm:$0xff]
    %v61 = vld [vmem:[#allocation2 + $0x50] sm:$0xff]
    %v62 = vld [vmem:[#allocation2 + $0x58] sm:$0xff]
    %v63 = vld [vmem:[#allocation2 + $0x60] sm:$0xff]
    %v64 = vld [vmem:[#allocation2 + $0x68] sm:$0xff]
    %v65 = vld [vmem:[#allocation2 + $0x70] sm:$0xff]
    %v66 = vld [vmem:[#allocation2 + $0x78] sm:$0xff]
    %v67 = vld [vmem:[#allocation2 + $0x80] sm:$0xff]
    %v68 = vld [vmem:[#allocation2 + $0x88] sm:$0xff]
    %v69 = vld [vmem:[#allocation2 + $0x90] sm:$0xff]
    %v70 = vld [vmem:[#allocation2 + $0x98] sm:$0xff]
    %v71 = vld [vmem:[#allocation2 + $0xa0] sm:$0xff]
    %v72 = vld [vmem:[#allocation2 + $0xa8] sm:$0xff]
    %v73 = vld [vmem:[#allocation2 + $0xb0] sm:$0xff]
    %v74 = vld [vmem:[#allocation2 + $0xb8] sm:$0xff]
    %v75 = vld [vmem:[#allocation2 + $0xc0] sm:$0xff]
    %v76 = vld [vmem:[#allocation2 + $0xc8] sm:$0xff]
    %v77 = vld [vmem:[#allocation2 + $0xd0] sm:$0xff]
    %v78 = vld [vmem:[#allocation2 + $0xd8] sm:$0xff]
    %v79 = vld [vmem:[#allocation2 + $0xe0] sm:$0xff]
    %v80 = vld [vmem:[#allocation2 + $0xe8] sm:$0xff]
    %v81 = vld [vmem:[#allocation2 + $0xf0] sm:$0xff]
    %v82 = vld [vmem:[#allocation2 + $0xf8] sm:$0xff]
    %v83 = vld [vmem:[#allocation2 + $0x100] sm:$0xff]
    %v84 = vld [vmem:[#allocation2 + $0x108] sm:$0xff]
    %v85 = vld [vmem:[#allocation2 + $0x110] sm:$0xff]
    %v86 = vld [vmem:[#allocation2 + $0x118] sm:$0xff]
    %v87 = vld [vmem:[#allocation2 + $0x120] sm:$0xff]
    %v88 = vld [vmem:[#allocation2 + $0x128] sm:$0xff]
    %v89 = vld [vmem:[#allocation2 + $0x130] sm:$0xff]
    %v90 = vld [vmem:[#allocation2 + $0x138] sm:$0xff]
    %v91 = vld [vmem:[#allocation2 + $0x140] sm:$0xff]
    %v92 = vld [vmem:[#allocation2 + $0x148] sm:$0xff]
    %v93 = vld [vmem:[#allocation2 + $0x150] sm:$0xff]
    %v94 = vld [vmem:[#allocation2 + $0x158] sm:$0xff]
    %v95 = vld [vmem:[#allocation2 + $0x160] sm:$0xff]
    %v96 = vld [vmem:[#allocation2 + $0x168] sm:$0xff]
    %v97 = vld [vmem:[#allocation2 + $0x170] sm:$0xff]
    %v98 = vld [vmem:[#allocation2 + $0x178] sm:$0xff]
    %v99 = vld [vmem:[#allocation2 + $0x180] sm:$0xff]
    %v100 = vld [vmem:[#allocation2 + $0x188] sm:$0xff]
    %v101 = vld [vmem:[#allocation2 + $0x190] sm:$0xff]
    %v102 = vld [vmem:[#allocation2 + $0x198] sm:$0xff]
    %v103 = vld [vmem:[#allocation2 + $0x1a0] sm:$0xff]
    %v104 = vld [vmem:[#allocation2 + $0x1a8] sm:$0xff]
    %v105 = vld [vmem:[#allocation2 + $0x1b0] sm:$0xff]
    %v106 = vld [vmem:[#allocation2 + $0x1b8] sm:$0xff]
    %v107 = vld [vmem:[#allocation2 + $0x1c0] sm:$0xff]
    %v108 = vld [vmem:[#allocation2 + $0x1c8] sm:$0xff]
    %v109 = vld [vmem:[#allocation2 + $0x1d0] sm:$0xff]
    %v110 = vld [vmem:[#allocation2 + $0x1d8] sm:$0xff]
    %v111 = vld [vmem:[#allocation2 + $0x1e0] sm:$0xff]
    %v112 = vld [vmem:[#allocation2 + $0x1e8] sm:$0xff]
    %v113 = vld [vmem:[#allocation2 + $0x1f0] sm:$0xff]
    %v114 = vld [vmem:[#allocation2 + $0x1f8] sm:$0xff]
    %v115 = vld [vmem:[#allocation2 + $0x200] sm:$0xff]
    %v116 = vld [vmem:[#allocation2 + $0x208] sm:$0xff]
    %v117 = vld [vmem:[#allocation2 + $0x210] sm:$0xff]
    %v118 = vld [vmem:[#allocation2 + $0x218] sm:$0xff]
    %v119 = vld [vmem:[#allocation2 + $0x220] sm:$0xff]
    %v120 = vld [vmem:[#allocation2 + $0x228] sm:$0xff]
    %v121 = vld [vmem:[#allocation2 + $0x230] sm:$0xff]
    %v122 = vld [vmem:[#allocation2 + $0x238] sm:$0xff]
    %v123 = vld [vmem:[#allocation2 + $0x240] sm:$0xff]
    %v124 = vld [vmem:[#allocation2 + $0x248] sm:$0xff]
    %v125 = vld [vmem:[#allocation2 + $0x250] sm:$0xff]
    %v126 = vld [vmem:[#allocation2 + $0x258] sm:$0xff]
    %v127 = vld [vmem:[#allocation2 + $0x260] sm:$0xff]
    %v128 = vld [vmem:[#allocation2 + $0x268] sm:$0xff]
    %v129 = vld [vmem:[#allocation2 + $0x270] sm:$0xff]
    %v130 = vld [vmem:[#allocation2 + $0x278] sm:$0xff]
    %v131 = vld [vmem:[#allocation2 + $0x280] sm:$0xff]
    %v132 = vld [vmem:[#allocation2 + $0x288] sm:$0xff]
    %v133 = vld [vmem:[#allocation2 + $0x290] sm:$0xff]
    %v134 = vld [vmem:[#allocation2 + $0x298] sm:$0xff]
    %v135 = vld [vmem:[#allocation2 + $0x2a0] sm:$0xff]
    %v136 = vld [vmem:[#allocation2 + $0x2a8] sm:$0xff]
    %v137 = vld [vmem:[#allocation2 + $0x2b0] sm:$0xff]
    %v138 = vld [vmem:[#allocation2 + $0x2b8] sm:$0xff]
    %v139 = vld [vmem:[#allocation2 + $0x2c0] sm:$0xff]
    %v140 = vld [vmem:[#allocation2 + $0x2c8] sm:$0xff]
    %v141 = vld [vmem:[#allocation2 + $0x2d0] sm:$0xff]
    %v142 = vld [vmem:[#allocation2 + $0x2d8] sm:$0xff]
    %v143 = vld [vmem:[#allocation2 + $0x2e0] sm:$0xff]
    %v144 = vld [vmem:[#allocation2 + $0x2e8] sm:$0xff]
    %v145 = vld [vmem:[#allocation2 + $0x2f0] sm:$0xff]
    %v146 = vld [vmem:[#allocation2 + $0x2f8] sm:$0xff]
    %v147 = vld [vmem:[#allocation2 + $0x300] sm:$0xff]
    %v148 = vld [vmem:[#allocation2 + $0x308] sm:$0xff]
    %v149 = vld [vmem:[#allocation2 + $0x310] sm:$0xff]
    %v150 = vld [vmem:[#allocation2 + $0x318] sm:$0xff]
    %v151 = vld [vmem:[#allocation2 + $0x320] sm:$0xff]
    %v152 = vld [vmem:[#allocation2 + $0x328] sm:$0xff]
    %v153 = vld [vmem:[#allocation2 + $0x330] sm:$0xff]
    %v154 = vld [vmem:[#allocation2 + $0x338] sm:$0xff]
    %v155 = vld [vmem:[#allocation2 + $0x340] sm:$0xff]
    %v156 = vld [vmem:[#allocation2 + $0x348] sm:$0xff]
    %v157 = vld [vmem:[#allocation2 + $0x350] sm:$0xff]
    %v158 = vld [vmem:[#allocation2 + $0x358] sm:$0xff]
    %v159 = vld [vmem:[#allocation2 + $0x360] sm:$0xff]
    %v160 = vld [vmem:[#allocation2 + $0x368] sm:$0xff]
    %v161 = vld [vmem:[#allocation2 + $0x370] sm:$0xff]
    %v162 = vld [vmem:[#allocation2 + $0x378] sm:$0xff]
    %v163 = vld [vmem:[#allocation2 + $0x380] sm:$0xff]
    %v164 = vld [vmem:[#allocation2 + $0x388] sm:$0xff]
    %v165 = vld [vmem:[#allocation2 + $0x390] sm:$0xff]
    %v166 = vld [vmem:[#allocation2 + $0x398] sm:$0xff]
    %v167 = vld [vmem:[#allocation2 + $0x3a0] sm:$0xff]
    %v168 = vld [vmem:[#allocation2 + $0x3a8] sm:$0xff]
    %v169 = vld [vmem:[#allocation2 + $0x3b0] sm:$0xff]
    %v170 = vld [vmem:[#allocation2 + $0x3b8] sm:$0xff]
    %v171 = vld [vmem:[#allocation2 + $0x3c0] sm:$0xff]
    %v172 = vld [vmem:[#allocation2 + $0x3c8] sm:$0xff]
    %v173 = vld [vmem:[#allocation2 + $0x3d0] sm:$0xff]
    %v174 = vld [vmem:[#allocation2 + $0x3d8] sm:$0xff]
    %v175 = vld [vmem:[#allocation2 + $0x3e0] sm:$0xff]
    %v176 = vld [vmem:[#allocation2 + $0x3e8] sm:$0xff]
    %v177 = vld [vmem:[#allocation2 + $0x3f0] sm:$0xff]
    %v178 = vld [vmem:[#allocation2 + $0x3f8] sm:$0xff]
    %v179 = vld [vmem:[#allocation2 + $0x400] sm:$0xff]
    %v180 = vld [vmem:[#allocation2 + $0x408] sm:$0xff]
    %v181 = vld [vmem:[#allocation2 + $0x410] sm:$0xff]
    %v182 = vld [vmem:[#allocation2 + $0x418] sm:$0xff]
    %v183 = vld [vmem:[#allocation2 + $0x420] sm:$0xff]
    %v184 = vld [vmem:[#allocation2 + $0x428] sm:$0xff]
    %v185 = vld [vmem:[#allocation2 + $0x430] sm:$0xff]
    %v186 = vld [vmem:[#allocation2 + $0x438] sm:$0xff]
    %v187 = vld [vmem:[#allocation2 + $0x440] sm:$0xff]
    %v188 = vld [vmem:[#allocation2 + $0x448] sm:$0xff]
    %v189 = vld [vmem:[#allocation2 + $0x450] sm:$0xff]
    %v190 = vld [vmem:[#allocation2 + $0x458] sm:$0xff]
    %v191 = vld [vmem:[#allocation2 + $0x460] sm:$0xff]
    %v192 = vld [vmem:[#allocation2 + $0x468] sm:$0xff]
    %v193 = vld [vmem:[#allocation2 + $0x470] sm:$0xff]
    %v194 = vld [vmem:[#allocation2 + $0x478] sm:$0xff]
    %v195 = vld [vmem:[#allocation2 + $0x480] sm:$0xff]
    %v196 = vld [vmem:[#allocation2 + $0x488] sm:$0xff]
    %v197 = vld [vmem:[#allocation2 + $0x490] sm:$0xff]
    %v198 = vld [vmem:[#allocation2 + $0x498] sm:$0xff]
    %v199 = vld [vmem:[#allocation2 + $0x4a0] sm:$0xff]
    %v200 = vld [vmem:[#allocation2 + $0x4a8] sm:$0xff]
    %v201 = vld [vmem:[#allocation2 + $0x4b0] sm:$0xff]
    %v202 = vld [vmem:[#allocation2 + $0x4b8] sm:$0xff]
    %v203 = vld [vmem:[#allocation2 + $0x4c0] sm:$0xff]
    %v204 = vld [vmem:[#allocation2 + $0x4c8] sm:$0xff]
    %v205 = vld [vmem:[#allocation2 + $0x4d0] sm:$0xff]
    %v206 = vld [vmem:[#allocation2 + $0x4d8] sm:$0xff]
    %v207 = vld [vmem:[#allocation2 + $0x4e0] sm:$0xff]
    %v208 = vld [vmem:[#allocation2 + $0x4e8] sm:$0xff]
    %v209 = vld [vmem:[#allocation2 + $0x4f0] sm:$0xff]
    %v210 = vld [vmem:[#allocation2 + $0x4f8] sm:$0xff]
    %v211 = vld [vmem:[#allocation2 + $0x500] sm:$0xff]
    %v212 = vld [vmem:[#allocation2 + $0x508] sm:$0xff]
    %v213 = vld [vmem:[#allocation2 + $0x510] sm:$0xff]
    %v214 = vld [vmem:[#allocation2 + $0x518] sm:$0xff]
    %v215 = vld [vmem:[#allocation2 + $0x520] sm:$0xff]
    %v216 = vld [vmem:[#allocation2 + $0x528] sm:$0xff]
    %v217 = vld [vmem:[#allocation2 + $0x530] sm:$0xff]
    %v218 = vld [vmem:[#allocation2 + $0x538] sm:$0xff]
    %v219 = vld [vmem:[#allocation2 + $0x540] sm:$0xff]
    %v220 = vld [vmem:[#allocation2 + $0x548] sm:$0xff]
    %v221 = vld [vmem:[#allocation2 + $0x550] sm:$0xff]
    %v222 = vld [vmem:[#allocation2 + $0x558] sm:$0xff]
    %v223 = vld [vmem:[#allocation2 + $0x560] sm:$0xff]
    %v224 = vld [vmem:[#allocation2 + $0x568] sm:$0xff]
    %v225 = vld [vmem:[#allocation2 + $0x570] sm:$0xff]
    %v226 = vld [vmem:[#allocation2 + $0x578] sm:$0xff]
    %v227 = vld [vmem:[#allocation2 + $0x580] sm:$0xff]
    %v228 = vld [vmem:[#allocation2 + $0x588] sm:$0xff]
    %v229 = vld [vmem:[#allocation2 + $0x590] sm:$0xff]
    %v230 = vld [vmem:[#allocation2 + $0x598] sm:$0xff]
    %v231 = vld [vmem:[#allocation2 + $0x5a0] sm:$0xff]
    %v232 = vld [vmem:[#allocation2 + $0x5a8] sm:$0xff]
    %v233 = vld [vmem:[#allocation2 + $0x5b0] sm:$0xff]
    %v234 = vld [vmem:[#allocation2 + $0x5b8] sm:$0xff]
    %v235 = vld [vmem:[#allocation2 + $0x5c0] sm:$0xff]
    %v236 = vld [vmem:[#allocation2 + $0x5c8] sm:$0xff]
    %v237 = vld [vmem:[#allocation2 + $0x5d0] sm:$0xff]
    %v238 = vld [vmem:[#allocation2 + $0x5d8] sm:$0xff]
    %v239 = vld [vmem:[#allocation2 + $0x5e0] sm:$0xff]
    %v240 = vld [vmem:[#allocation2 + $0x5e8] sm:$0xff]
    %v241 = vld [vmem:[#allocation2 + $0x5f0] sm:$0xff]
    %v242 = vld [vmem:[#allocation2 + $0x5f8] sm:$0xff]
    %v243 = vld [vmem:[#allocation2 + $0x600] sm:$0xff]
    %v244 = vld [vmem:[#allocation2 + $0x608] sm:$0xff]
    %v245 = vld [vmem:[#allocation2 + $0x610] sm:$0xff]
    %v246 = vld [vmem:[#allocation2 + $0x618] sm:$0xff]
    %v247 = vld [vmem:[#allocation2 + $0x620] sm:$0xff]
    %v248 = vld [vmem:[#allocation2 + $0x628] sm:$0xff]
    %v249 = vld [vmem:[#allocation2 + $0x630] sm:$0xff]
    %v250 = vld [vmem:[#allocation2 + $0x638] sm:$0xff]
    %v251 = vld [vmem:[#allocation2 + $0x640] sm:$0xff]
    %v252 = vld [vmem:[#allocation2 + $0x648] sm:$0xff]
    %v253 = vld [vmem:[#allocation2 + $0x650] sm:$0xff]
    %v254 = vld [vmem:[#allocation2 + $0x658] sm:$0xff]
    %v255 = vld [vmem:[#allocation2 + $0x660] sm:$0xff]
    %v256 = vld [vmem:[#allocation2 + $0x668] sm:$0xff]
    %v257 = vld [vmem:[#allocation2 + $0x670] sm:$0xff]
    %v258 = vld [vmem:[#allocation2 + $0x678] sm:$0xff]
    %v259 = vld [vmem:[#allocation2 + $0x680] sm:$0xff]
    %v260 = vld [vmem:[#allocation2 + $0x688] sm:$0xff]
    %v261 = vld [vmem:[#allocation2 + $0x690] sm:$0xff]
    %v262 = vld [vmem:[#allocation2 + $0x698] sm:$0xff]
    %v263 = vld [vmem:[#allocation2 + $0x6a0] sm:$0xff]
    %v264 = vld [vmem:[#allocation2 + $0x6a8] sm:$0xff]
    %v265 = vld [vmem:[#allocation2 + $0x6b0] sm:$0xff]
    %v266 = vld [vmem:[#allocation2 + $0x6b8] sm:$0xff]
    %v267 = vld [vmem:[#allocation2 + $0x6c0] sm:$0xff]
    %v268 = vld [vmem:[#allocation2 + $0x6c8] sm:$0xff]
    %v269 = vld [vmem:[#allocation2 + $0x6d0] sm:$0xff]
    %v270 = vld [vmem:[#allocation2 + $0x6d8] sm:$0xff]
    %v271 = vld [vmem:[#allocation2 + $0x6e0] sm:$0xff]
    %v272 = vld [vmem:[#allocation2 + $0x6e8] sm:$0xff]
    %v273 = vld [vmem:[#allocation2 + $0x6f0] sm:$0xff]
    %v274 = vld [vmem:[#allocation2 + $0x6f8] sm:$0xff]
    %v275 = vld [vmem:[#allocation2 + $0x700] sm:$0xff]
    %v276 = vld [vmem:[#allocation2 + $0x708] sm:$0xff]
    %v277 = vld [vmem:[#allocation2 + $0x710] sm:$0xff]
    %v278 = vld [vmem:[#allocation2 + $0x718] sm:$0xff]
    %v279 = vld [vmem:[#allocation2 + $0x720] sm:$0xff]
    %v280 = vld [vmem:[#allocation2 + $0x728] sm:$0xff]
    %v281 = vld [vmem:[#allocation2 + $0x730] sm:$0xff]
    %v282 = vld [vmem:[#allocation2 + $0x738] sm:$0xff]
    %v283 = vld [vmem:[#allocation2 + $0x740] sm:$0xff]
    %v284 = vld [vmem:[#allocation2 + $0x748] sm:$0xff]
    %v285 = vld [vmem:[#allocation2 + $0x750] sm:$0xff]
    %v286 = vld [vmem:[#allocation2 + $0x758] sm:$0xff]
    %v287 = vld [vmem:[#allocation2 + $0x760] sm:$0xff]
    %v288 = vld [vmem:[#allocation2 + $0x768] sm:$0xff]
    %v289 = vld [vmem:[#allocation2 + $0x770] sm:$0xff]
    %v290 = vld [vmem:[#allocation2 + $0x778] sm:$0xff]
    %v291 = vld [vmem:[#allocation2 + $0x780] sm:$0xff]
    %v292 = vld [vmem:[#allocation2 + $0x788] sm:$0xff]
    %v293 = vld [vmem:[#allocation2 + $0x790] sm:$0xff]
    %v294 = vld [vmem:[#allocation2 + $0x798] sm:$0xff]
    %v295 = vld [vmem:[#allocation2 + $0x7a0] sm:$0xff]
    %v296 = vld [vmem:[#allocation2 + $0x7a8] sm:$0xff]
    %v297 = vld [vmem:[#allocation2 + $0x7b0] sm:$0xff]
    %v298 = vld [vmem:[#allocation2 + $0x7b8] sm:$0xff]
    %v299 = vld [vmem:[#allocation2 + $0x7c0] sm:$0xff]
    %v300 = vld [vmem:[#allocation2 + $0x7c8] sm:$0xff]
    %v301 = vld [vmem:[#allocation2 + $0x7d0] sm:$0xff]
    %v302 = vld [vmem:[#allocation2 + $0x7d8] sm:$0xff]
    %v303 = vld [vmem:[#allocation2 + $0x7e0] sm:$0xff]
    %v304 = vld [vmem:[#allocation2 + $0x7e8] sm:$0xff]
    %v305 = vld [vmem:[#allocation2 + $0x7f0] sm:$0xff]
    %v306 = vld [vmem:[#allocation2 + $0x7f8] sm:$0xff]
    %v307 = vld [vmem:[#allocation2 + $0x800] sm:$0xff]
    %v308 = vld [vmem:[#allocation2 + $0x808] sm:$0xff]
    %v309 = vld [vmem:[#allocation2 + $0x810] sm:$0xff]
    %v310 = vld [vmem:[#allocation2 + $0x818] sm:$0xff]
    %v311 = vld [vmem:[#allocation2 + $0x820] sm:$0xff]
    %v312 = vld [vmem:[#allocation2 + $0x828] sm:$0xff]
    %v313 = vld [vmem:[#allocation2 + $0x830] sm:$0xff]
    %v314 = vld [vmem:[#allocation2 + $0x838] sm:$0xff]
    %v315 = vld [vmem:[#allocation2 + $0x840] sm:$0xff]
    %v316 = vld [vmem:[#allocation2 + $0x848] sm:$0xff]
    %v317 = vld [vmem:[#allocation2 + $0x850] sm:$0xff]
    %v318 = vld [vmem:[#allocation2 + $0x858] sm:$0xff]
    %v319 = vld [vmem:[#allocation2 + $0x860] sm:$0xff]
    %v320 = vld [vmem:[#allocation2 + $0x868] sm:$0xff]
    %v321 = vld [vmem:[#allocation2 + $0x870] sm:$0xff]
    %v322 = vld [vmem:[#allocation2 + $0x878] sm:$0xff]
    %v323 = vld [vmem:[#allocation2 + $0x880] sm:$0xff]
    %v324 = vld [vmem:[#allocation2 + $0x888] sm:$0xff]
    %v325 = vld [vmem:[#allocation2 + $0x890] sm:$0xff]
    %v326 = vld [vmem:[#allocation2 + $0x898] sm:$0xff]
    %v327 = vld [vmem:[#allocation2 + $0x8a0] sm:$0xff]
    %v328 = vld [vmem:[#allocation2 + $0x8a8] sm:$0xff]
    %v329 = vld [vmem:[#allocation2 + $0x8b0] sm:$0xff]
    %v330 = vld [vmem:[#allocation2 + $0x8b8] sm:$0xff]
    %v331 = vld [vmem:[#allocation2 + $0x8c0] sm:$0xff]
    %v332 = vld [vmem:[#allocation2 + $0x8c8] sm:$0xff]
    %v333 = vld [vmem:[#allocation2 + $0x8d0] sm:$0xff]
    %v334 = vld [vmem:[#allocation2 + $0x8d8] sm:$0xff]
    %v335 = vld [vmem:[#allocation2 + $0x8e0] sm:$0xff]
    %v336 = vld [vmem:[#allocation2 + $0x8e8] sm:$0xff]
    %v337 = vld [vmem:[#allocation2 + $0x8f0] sm:$0xff]
    %v338 = vld [vmem:[#allocation2 + $0x8f8] sm:$0xff]
    %v339 = vld [vmem:[#allocation2 + $0x900] sm:$0xff]
    %v340 = vld [vmem:[#allocation2 + $0x908] sm:$0xff]
    %v341 = vld [vmem:[#allocation2 + $0x910] sm:$0xff]
    %v342 = vld [vmem:[#allocation2 + $0x918] sm:$0xff]
    %v343 = vld [vmem:[#allocation2 + $0x920] sm:$0xff]
    %v344 = vld [vmem:[#allocation2 + $0x928] sm:$0xff]
    %v345 = vld [vmem:[#allocation2 + $0x930] sm:$0xff]
    %v346 = vld [vmem:[#allocation2 + $0x938] sm:$0xff]
    %v347 = vld [vmem:[#allocation2 + $0x940] sm:$0xff]
    %v348 = vld [vmem:[#allocation2 + $0x948] sm:$0xff]
    %v349 = vld [vmem:[#allocation2 + $0x950] sm:$0xff]
    %v350 = vld [vmem:[#allocation2 + $0x958] sm:$0xff]
    %v351 = vld [vmem:[#allocation2 + $0x960] sm:$0xff]
    %v352 = vld [vmem:[#allocation2 + $0x968] sm:$0xff]
    %v353 = vld [vmem:[#allocation2 + $0x970] sm:$0xff]
    %v354 = vld [vmem:[#allocation2 + $0x978] sm:$0xff]
    %v355 = vld [vmem:[#allocation2 + $0x980] sm:$0xff]
    %v356 = vld [vmem:[#allocation2 + $0x988] sm:$0xff]
    %v357 = vld [vmem:[#allocation2 + $0x990] sm:$0xff]
    %v358 = vld [vmem:[#allocation2 + $0x998] sm:$0xff]
    %v359 = vld [vmem:[#allocation2 + $0x9a0] sm:$0xff]
    %v360 = vld [vmem:[#allocation2 + $0x9a8] sm:$0xff]
    %v361 = vld [vmem:[#allocation2 + $0x9b0] sm:$0xff]
    %v362 = vld [vmem:[#allocation2 + $0x9b8] sm:$0xff]
    %v363 = vld [vmem:[#allocation2 + $0x9c0] sm:$0xff]
    %v364 = vld [vmem:[#allocation2 + $0x9c8] sm:$0xff]
    %v365 = vld [vmem:[#allocation2 + $0x9d0] sm:$0xff]
    %v366 = vld [vmem:[#allocation2 + $0x9d8] sm:$0xff]
    %v367 = vld [vmem:[#allocation2 + $0x9e0] sm:$0xff]
    %v368 = vld [vmem:[#allocation2 + $0x9e8] sm:$0xff]
    %v369 = vld [vmem:[#allocation2 + $0x9f0] sm:$0xff]
    %v370 = vld [vmem:[#allocation2 + $0x9f8] sm:$0xff]
    %v371 = vld [vmem:[#allocation2 + $0xa00] sm:$0xff]
    %v372 = vld [vmem:[#allocation2 + $0xa08] sm:$0xff]
    %v373 = vld [vmem:[#allocation2 + $0xa10] sm:$0xff]
    %v374 = vld [vmem:[#allocation2 + $0xa18] sm:$0xff]
    %v375 = vld [vmem:[#allocation2 + $0xa20] sm:$0xff]
    %v376 = vld [vmem:[#allocation2 + $0xa28] sm:$0xff]
    %v377 = vld [vmem:[#allocation2 + $0xa30] sm:$0xff]
    %v378 = vld [vmem:[#allocation2 + $0xa38] sm:$0xff]
    %v379 = vld [vmem:[#allocation2 + $0xa40] sm:$0xff]
    %v380 = vld [vmem:[#allocation2 + $0xa48] sm:$0xff]
    %v381 = vld [vmem:[#allocation2 + $0xa50] sm:$0xff]
    %v382 = vld [vmem:[#allocation2 + $0xa58] sm:$0xff]
    %v383 = vld [vmem:[#allocation2 + $0xa60] sm:$0xff]
    %v384 = vld [vmem:[#allocation2 + $0xa68] sm:$0xff]
    %v385 = vld [vmem:[#allocation2 + $0xa70] sm:$0xff]
    %v386 = vld [vmem:[#allocation2 + $0xa78] sm:$0xff]
    %v387 = vld [vmem:[#allocation2 + $0xa80] sm:$0xff]
    %v388 = vld [vmem:[#allocation2 + $0xa88] sm:$0xff]
    %v389 = vld [vmem:[#allocation2 + $0xa90] sm:$0xff]
    %v390 = vld [vmem:[#allocation2 + $0xa98] sm:$0xff]
    %v391 = vld [vmem:[#allocation2 + $0xaa0] sm:$0xff]
    %v392 = vld [vmem:[#allocation2 + $0xaa8] sm:$0xff]
    %v393 = vld [vmem:[#allocation2 + $0xab0] sm:$0xff]
    %v394 = vld [vmem:[#allocation2 + $0xab8] sm:$0xff]
    %v395 = vld [vmem:[#allocation2 + $0xac0] sm:$0xff]
    %v396 = vld [vmem:[#allocation2 + $0xac8] sm:$0xff]
    %v397 = vld [vmem:[#allocation2 + $0xad0] sm:$0xff]
    %v398 = vld [vmem:[#allocation2 + $0xad8] sm:$0xff]
    %v399 = vld [vmem:[#allocation2 + $0xae0] sm:$0xff]
    %v400 = vld [vmem:[#allocation2 + $0xae8] sm:$0xff]
    %v401 = vld [vmem:[#allocation2 + $0xaf0] sm:$0xff]
    %v402 = vld [vmem:[#allocation2 + $0xaf8] sm:$0xff]
    %v403 = vld [vmem:[#allocation2 + $0xb00] sm:$0xff]
    %v404 = vld [vmem:[#allocation2 + $0xb08] sm:$0xff]
    %v405 = vld [vmem:[#allocation2 + $0xb10] sm:$0xff]
    %v406 = vld [vmem:[#allocation2 + $0xb18] sm:$0xff]
    %v407 = vld [vmem:[#allocation2 + $0xb20] sm:$0xff]
    %v408 = vld [vmem:[#allocation2 + $0xb28] sm:$0xff]
    %v409 = vld [vmem:[#allocation2 + $0xb30] sm:$0xff]
    %v410 = vld [vmem:[#allocation2 + $0xb38] sm:$0xff]
    %v411 = vld [vmem:[#allocation2 + $0xb40] sm:$0xff]
    %v412 = vld [vmem:[#allocation2 + $0xb48] sm:$0xff]
    %v413 = vld [vmem:[#allocation2 + $0xb50] sm:$0xff]
    %v414 = vld [vmem:[#allocation2 + $0xb58] sm:$0xff]
    %v415 = vld [vmem:[#allocation2 + $0xb60] sm:$0xff]
    %v416 = vld [vmem:[#allocation2 + $0xb68] sm:$0xff]
    %v417 = vld [vmem:[#allocation2 + $0xb70] sm:$0xff]
    %v418 = vld [vmem:[#allocation2 + $0xb78] sm:$0xff]
    %v419 = vld [vmem:[#allocation2 + $0xb80] sm:$0xff]
    %v420 = vld [vmem:[#allocation2 + $0xb88] sm:$0xff]
    %v421 = vld [vmem:[#allocation2 + $0xb90] sm:$0xff]
    %v422 = vld [vmem:[#allocation2 + $0xb98] sm:$0xff]
    %v423 = vld [vmem:[#allocation2 + $0xba0] sm:$0xff]
    %v424 = vld [vmem:[#allocation2 + $0xba8] sm:$0xff]
    %v425 = vld [vmem:[#allocation2 + $0xbb0] sm:$0xff]
    %v426 = vld [vmem:[#allocation2 + $0xbb8] sm:$0xff]
    %v427 = vld [vmem:[#allocation2 + $0xbc0] sm:$0xff]
    %v428 = vld [vmem:[#allocation2 + $0xbc8] sm:$0xff]
    %v429 = vld [vmem:[#allocation2 + $0xbd0] sm:$0xff]
    %v430 = vld [vmem:[#allocation2 + $0xbd8] sm:$0xff]
    %v431 = vld [vmem:[#allocation2 + $0xbe0] sm:$0xff]
    %v432 = vld [vmem:[#allocation2 + $0xbe8] sm:$0xff]
    %v433 = vld [vmem:[#allocation2 + $0xbf0] sm:$0xff]
    %v434 = vld [vmem:[#allocation2 + $0xbf8] sm:$0xff]
    %v435 = vld [vmem:[#allocation5] sm:$0x1]
    %v437 = vperm.slane %v435, 0
    %445 = vst [vmem:[#allocation1] ss:$4 sm:$0xff] %v45
    %s446 = scalar_lea.vmem [#allocation1], 32
    %447 = vst [vmem:[%s446] ss:$4 sm:$0xff] %v46
    %v448 = vld.sshfl [vmem:[#allocation1] sm:$0xff pattern:$0x73625140]
    %v449 = vld.sshfl [vmem:[#allocation1 + $0x8] sm:$0xff pattern:$0x73625140]
    %v450 = vld.sshfl [vmem:[#allocation1 + $0x10] sm:$0xff pattern:$0x73625140]
    %v451 = vld.sshfl [vmem:[#allocation1 + $0x18] sm:$0xff pattern:$0x73625140]
    %v452 = vld.sshfl [vmem:[#allocation1 + $0x20] sm:$0xff pattern:$0x73625140]
    %v453 = vld.sshfl [vmem:[#allocation1 + $0x28] sm:$0xff pattern:$0x73625140]
    %v454 = vld.sshfl [vmem:[#allocation1 + $0x30] sm:$0xff pattern:$0x73625140]
    %v455 = vld.sshfl [vmem:[#allocation1 + $0x38] sm:$0xff pattern:$0x73625140]
    %456 = vst [vmem:[#allocation1] ss:$4 sm:$0xff] %v47
    %457 = vst [vmem:[%s446] ss:$4 sm:$0xff] %v48
    %v458 = vld.sshfl [vmem:[#allocation1] sm:$0xff pattern:$0x73625140]
    %v459 = vld.sshfl [vmem:[#allocation1 + $0x8] sm:$0xff pattern:$0x73625140]
    %v460 = vld.sshfl [vmem:[#allocation1 + $0x10] sm:$0xff pattern:$0x73625140]
    %v461 = vld.sshfl [vmem:[#allocation1 + $0x18] sm:$0xff pattern:$0x73625140]
    %v462 = vld.sshfl [vmem:[#allocation1 + $0x20] sm:$0xff pattern:$0x73625140]
    %v463 = vld.sshfl [vmem:[#allocation1 + $0x28] sm:$0xff pattern:$0x73625140]
    %v464 = vld.sshfl [vmem:[#allocation1 + $0x30] sm:$0xff pattern:$0x73625140]
    %v465 = vld.sshfl [vmem:[#allocation1 + $0x38] sm:$0xff pattern:$0x73625140]
    %466 = vst [vmem:[#allocation1] ss:$4 sm:$0xff] %v49
    %467 = vst [vmem:[%s446] ss:$4 sm:$0xff] %v50
    %v468 = vld.sshfl [vmem:[#allocation1] sm:$0xff pattern:$0x73625140]
    %v469 = vld.sshfl [vmem:[#allocation1 + $0x8] sm:$0xff pattern:$0x73625140]
    %v470 = vld.sshfl [vmem:[#allocation1 + $0x10] sm:$0xff pattern:$0x73625140]
    %v471 = vld.sshfl [vmem:[#allocation1 + $0x18] sm:$0xff pattern:$0x73625140]
    %v472 = vld.sshfl [vmem:[#allocation1 + $0x20] sm:$0xff pattern:$0x73625140]
    %v473 = vld.sshfl [vmem:[#allocation1 + $0x28] sm:$0xff pattern:$0x73625140]
    %v474 = vld.sshfl [vmem:[#allocation1 + $0x30] sm:$0xff pattern:$0x73625140]
    %v475 = vld.sshfl [vmem:[#allocation1 + $0x38] sm:$0xff pattern:$0x73625140]
    %500 = vmatpush.msra.mxu0 %v66
    %501 = vmatpush.msra.mxu0 %v65
    %502 = vmatpush.msra.mxu0 %v64
    %503 = vmatpush.msra.mxu0 %v63
    %504 = vmatpush.msra.mxu0 %v62
    %505 = vmatpush.msra.mxu0 %v61
    %506 = vmatpush.msra.mxu0 %v60
    %507 = vmatpush.msra.mxu0 %v59
    %508 = vmatpush.msra.mxu0 %v58
    %509 = vmatpush.msra.mxu0 %v57
    %510 = vmatpush.msra.mxu0 %v56
    %511 = vmatpush.msra.mxu0 %v55
    %512 = vmatpush.msra.mxu0 %v54
    %513 = vmatpush.msra.mxu0 %v53
    %514 = vmatpush.msra.mxu0 %v52
    %515 = vmatpush.msra.mxu0 %v51
    %516 = vmatmul.f32.gmra.mxu0 %v448
    %v517 = vpop.f32.mrf.mxu0
    %v518 = vadd.f32 %v437, %v517
    %519 = vdwg.mxu0
    %520 = vmatpush.msra.mxu0 %v82
    %521 = vmatpush.msra.mxu0 %v81
    %522 = vmatpush.msra.mxu0 %v80
    %523 = vmatpush.msra.mxu0 %v79
    %524 = vmatpush.msra.mxu0 %v78
    %525 = vmatpush.msra.mxu0 %v77
    %526 = vmatpush.msra.mxu0 %v76
    %527 = vmatpush.msra.mxu0 %v75
    %528 = vmatpush.msra.mxu0 %v74
    %529 = vmatpush.msra.mxu0 %v73
    %530 = vmatpush.msra.mxu0 %v72
    %531 = vmatpush.msra.mxu0 %v71
    %532 = vmatpush.msra.mxu0 %v70
    %533 = vmatpush.msra.mxu0 %v69
    %534 = vmatpush.msra.mxu0 %v68
    %535 = vmatpush.msra.mxu0 %v67
    %536 = vmatmul.f32.gmra.mxu0 %v449
    %v537 = vpop.f32.mrf.mxu0
    %v538 = vadd.f32 %v518, %v537
    %539 = vdwg.mxu0
    %540 = vmatpush.msra.mxu0 %v98
    %541 = vmatpush.msra.mxu0 %v97
    %542 = vmatpush.msra.mxu0 %v96
    %543 = vmatpush.msra.mxu0 %v95
    %544 = vmatpush.msra.mxu0 %v94
    %545 = vmatpush.msra.mxu0 %v93
    %546 = vmatpush.msra.mxu0 %v92
    %547 = vmatpush.msra.mxu0 %v91
    %548 = vmatpush.msra.mxu0 %v90
    %549 = vmatpush.msra.mxu0 %v89
    %550 = vmatpush.msra.mxu0 %v88
    %551 = vmatpush.msra.mxu0 %v87
    %552 = vmatpush.msra.mxu0 %v86
    %553 = vmatpush.msra.mxu0 %v85
    %554 = vmatpush.msra.mxu0 %v84
    %555 = vmatpush.msra.mxu0 %v83
    %556 = vmatmul.f32.gmra.mxu0 %v450
    %v557 = vpop.f32.mrf.mxu0
    %v558 = vadd.f32 %v538, %v557
    %559 = vdwg.mxu0
    %560 = vmatpush.msra.mxu0 %v114
    %561 = vmatpush.msra.mxu0 %v113
    %562 = vmatpush.msra.mxu0 %v112
    %563 = vmatpush.msra.mxu0 %v111
    %564 = vmatpush.msra.mxu0 %v110
    %565 = vmatpush.msra.mxu0 %v109
    %566 = vmatpush.msra.mxu0 %v108
    %567 = vmatpush.msra.mxu0 %v107
    %568 = vmatpush.msra.mxu0 %v106
    %569 = vmatpush.msra.mxu0 %v105
    %570 = vmatpush.msra.mxu0 %v104
    %571 = vmatpush.msra.mxu0 %v103
    %572 = vmatpush.msra.mxu0 %v102
    %573 = vmatpush.msra.mxu0 %v101
    %574 = vmatpush.msra.mxu0 %v100
    %575 = vmatpush.msra.mxu0 %v99
    %576 = vmatmul.f32.gmra.mxu0 %v451
    %v577 = vpop.f32.mrf.mxu0
    %v578 = vadd.f32 %v558, %v577
    %579 = vdwg.mxu0
    %580 = vmatpush.msra.mxu0 %v130
    %581 = vmatpush.msra.mxu0 %v129
    %582 = vmatpush.msra.mxu0 %v128
    %583 = vmatpush.msra.mxu0 %v127
    %584 = vmatpush.msra.mxu0 %v126
    %585 = vmatpush.msra.mxu0 %v125
    %586 = vmatpush.msra.mxu0 %v124
    %587 = vmatpush.msra.mxu0 %v123
    %588 = vmatpush.msra.mxu0 %v122
    %589 = vmatpush.msra.mxu0 %v121
    %590 = vmatpush.msra.mxu0 %v120
    %591 = vmatpush.msra.mxu0 %v119
    %592 = vmatpush.msra.mxu0 %v118
    %593 = vmatpush.msra.mxu0 %v117
    %594 = vmatpush.msra.mxu0 %v116
    %595 = vmatpush.msra.mxu0 %v115
    %596 = vmatmul.f32.gmra.mxu0 %v452
    %v597 = vpop.f32.mrf.mxu0
    %v598 = vadd.f32 %v578, %v597
    %599 = vdwg.mxu0
    %600 = vmatpush.msra.mxu0 %v146
    %601 = vmatpush.msra.mxu0 %v145
    %602 = vmatpush.msra.mxu0 %v144
    %603 = vmatpush.msra.mxu0 %v143
    %604 = vmatpush.msra.mxu0 %v142
    %605 = vmatpush.msra.mxu0 %v141
    %606 = vmatpush.msra.mxu0 %v140
    %607 = vmatpush.msra.mxu0 %v139
    %608 = vmatpush.msra.mxu0 %v138
    %609 = vmatpush.msra.mxu0 %v137
    %610 = vmatpush.msra.mxu0 %v136
    %611 = vmatpush.msra.mxu0 %v135
    %612 = vmatpush.msra.mxu0 %v134
    %613 = vmatpush.msra.mxu0 %v133
    %614 = vmatpush.msra.mxu0 %v132
    %615 = vmatpush.msra.mxu0 %v131
    %616 = vmatmul.f32.gmra.mxu0 %v453
    %v617 = vpop.f32.mrf.mxu0
    %v618 = vadd.f32 %v598, %v617
    %619 = vdwg.mxu0
    %620 = vmatpush.msra.mxu0 %v162
    %621 = vmatpush.msra.mxu0 %v161
    %622 = vmatpush.msra.mxu0 %v160
    %623 = vmatpush.msra.mxu0 %v159
    %624 = vmatpush.msra.mxu0 %v158
    %625 = vmatpush.msra.mxu0 %v157
    %626 = vmatpush.msra.mxu0 %v156
    %627 = vmatpush.msra.mxu0 %v155
    %628 = vmatpush.msra.mxu0 %v154
    %629 = vmatpush.msra.mxu0 %v153
    %630 = vmatpush.msra.mxu0 %v152
    %631 = vmatpush.msra.mxu0 %v151
    %632 = vmatpush.msra.mxu0 %v150
    %633 = vmatpush.msra.mxu0 %v149
    %634 = vmatpush.msra.mxu0 %v148
    %635 = vmatpush.msra.mxu0 %v147
    %636 = vmatmul.f32.gmra.mxu0 %v454
    %v637 = vpop.f32.mrf.mxu0
    %v638 = vadd.f32 %v618, %v637
    %639 = vdwg.mxu0
    %640 = vmatpush.msra.mxu0 %v178
    %641 = vmatpush.msra.mxu0 %v177
    %642 = vmatpush.msra.mxu0 %v176
    %643 = vmatpush.msra.mxu0 %v175
    %644 = vmatpush.msra.mxu0 %v174
    %645 = vmatpush.msra.mxu0 %v173
    %646 = vmatpush.msra.mxu0 %v172
    %647 = vmatpush.msra.mxu0 %v171
    %648 = vmatpush.msra.mxu0 %v170
    %649 = vmatpush.msra.mxu0 %v169
    %650 = vmatpush.msra.mxu0 %v168
    %651 = vmatpush.msra.mxu0 %v167
    %652 = vmatpush.msra.mxu0 %v166
    %653 = vmatpush.msra.mxu0 %v165
    %654 = vmatpush.msra.mxu0 %v164
    %655 = vmatpush.msra.mxu0 %v163
    %656 = vmatmul.f32.gmra.mxu0 %v455
    %v657 = vpop.f32.mrf.mxu0
    %v658 = vadd.f32 %v638, %v657
    %659 = vdwg.mxu0
    %660 = vmatpush.msra.mxu0 %v194
    %661 = vmatpush.msra.mxu0 %v193
    %662 = vmatpush.msra.mxu0 %v192
    %663 = vmatpush.msra.mxu0 %v191
    %664 = vmatpush.msra.mxu0 %v190
    %665 = vmatpush.msra.mxu0 %v189
    %666 = vmatpush.msra.mxu0 %v188
    %667 = vmatpush.msra.mxu0 %v187
    %668 = vmatpush.msra.mxu0 %v186
    %669 = vmatpush.msra.mxu0 %v185
    %670 = vmatpush.msra.mxu0 %v184
    %671 = vmatpush.msra.mxu0 %v183
    %672 = vmatpush.msra.mxu0 %v182
    %673 = vmatpush.msra.mxu0 %v181
    %674 = vmatpush.msra.mxu0 %v180
    %675 = vmatpush.msra.mxu0 %v179
    %676 = vmatmul.f32.gmra.mxu0 %v458
    %v677 = vpop.f32.mrf.mxu0
    %v678 = vadd.f32 %v658, %v677
    %679 = vdwg.mxu0
    %680 = vmatpush.msra.mxu0 %v210
    %681 = vmatpush.msra.mxu0 %v209
    %682 = vmatpush.msra.mxu0 %v208
    %683 = vmatpush.msra.mxu0 %v207
    %684 = vmatpush.msra.mxu0 %v206
    %685 = vmatpush.msra.mxu0 %v205
    %686 = vmatpush.msra.mxu0 %v204
    %687 = vmatpush.msra.mxu0 %v203
    %688 = vmatpush.msra.mxu0 %v202
    %689 = vmatpush.msra.mxu0 %v201
    %690 = vmatpush.msra.mxu0 %v200
    %691 = vmatpush.msra.mxu0 %v199
    %692 = vmatpush.msra.mxu0 %v198
    %693 = vmatpush.msra.mxu0 %v197
    %694 = vmatpush.msra.mxu0 %v196
    %695 = vmatpush.msra.mxu0 %v195
    %696 = vmatmul.f32.gmra.mxu0 %v459
    %v697 = vpop.f32.mrf.mxu0
    %v698 = vadd.f32 %v678, %v697
    %699 = vdwg.mxu0
    %700 = vmatpush.msra.mxu0 %v226
    %701 = vmatpush.msra.mxu0 %v225
    %702 = vmatpush.msra.mxu0 %v224
    %703 = vmatpush.msra.mxu0 %v223
    %704 = vmatpush.msra.mxu0 %v222
    %705 = vmatpush.msra.mxu0 %v221
    %706 = vmatpush.msra.mxu0 %v220
    %707 = vmatpush.msra.mxu0 %v219
    %708 = vmatpush.msra.mxu0 %v218
    %709 = vmatpush.msra.mxu0 %v217
    %710 = vmatpush.msra.mxu0 %v216
    %711 = vmatpush.msra.mxu0 %v215
    %712 = vmatpush.msra.mxu0 %v214
    %713 = vmatpush.msra.mxu0 %v213
    %714 = vmatpush.msra.mxu0 %v212
    %715 = vmatpush.msra.mxu0 %v211
    %716 = vmatmul.f32.gmra.mxu0 %v460
    %v717 = vpop.f32.mrf.mxu0
    %v718 = vadd.f32 %v698, %v717
    %719 = vdwg.mxu0
    %720 = vmatpush.msra.mxu0 %v242
    %721 = vmatpush.msra.mxu0 %v241
    %722 = vmatpush.msra.mxu0 %v240
    %723 = vmatpush.msra.mxu0 %v239
    %724 = vmatpush.msra.mxu0 %v238
    %725 = vmatpush.msra.mxu0 %v237
    %726 = vmatpush.msra.mxu0 %v236
    %727 = vmatpush.msra.mxu0 %v235
    %728 = vmatpush.msra.mxu0 %v234
    %729 = vmatpush.msra.mxu0 %v233
    %730 = vmatpush.msra.mxu0 %v232
    %731 = vmatpush.msra.mxu0 %v231
    %732 = vmatpush.msra.mxu0 %v230
    %733 = vmatpush.msra.mxu0 %v229
    %734 = vmatpush.msra.mxu0 %v228
    %735 = vmatpush.msra.mxu0 %v227
    %736 = vmatmul.f32.gmra.mxu0 %v461
    %v737 = vpop.f32.mrf.mxu0
    %v738 = vadd.f32 %v718, %v737
    %739 = vdwg.mxu0
    %740 = vmatpush.msra.mxu0 %v258
    %741 = vmatpush.msra.mxu0 %v257
    %742 = vmatpush.msra.mxu0 %v256
    %743 = vmatpush.msra.mxu0 %v255
    %744 = vmatpush.msra.mxu0 %v254
    %745 = vmatpush.msra.mxu0 %v253
    %746 = vmatpush.msra.mxu0 %v252
    %747 = vmatpush.msra.mxu0 %v251
    %748 = vmatpush.msra.mxu0 %v250
    %749 = vmatpush.msra.mxu0 %v249
    %750 = vmatpush.msra.mxu0 %v248
    %751 = vmatpush.msra.mxu0 %v247
    %752 = vmatpush.msra.mxu0 %v246
    %753 = vmatpush.msra.mxu0 %v245
    %754 = vmatpush.msra.mxu0 %v244
    %755 = vmatpush.msra.mxu0 %v243
    %756 = vmatmul.f32.gmra.mxu0 %v462
    %v757 = vpop.f32.mrf.mxu0
    %v758 = vadd.f32 %v738, %v757
    %759 = vdwg.mxu0
    %760 = vmatpush.msra.mxu0 %v274
    %761 = vmatpush.msra.mxu0 %v273
    %762 = vmatpush.msra.mxu0 %v272
    %763 = vmatpush.msra.mxu0 %v271
    %764 = vmatpush.msra.mxu0 %v270
    %765 = vmatpush.msra.mxu0 %v269
    %766 = vmatpush.msra.mxu0 %v268
    %767 = vmatpush.msra.mxu0 %v267
    %768 = vmatpush.msra.mxu0 %v266
    %769 = vmatpush.msra.mxu0 %v265
    %770 = vmatpush.msra.mxu0 %v264
    %771 = vmatpush.msra.mxu0 %v263
    %772 = vmatpush.msra.mxu0 %v262
    %773 = vmatpush.msra.mxu0 %v261
    %774 = vmatpush.msra.mxu0 %v260
    %775 = vmatpush.msra.mxu0 %v259
    %776 = vmatmul.f32.gmra.mxu0 %v463
    %v777 = vpop.f32.mrf.mxu0
    %v778 = vadd.f32 %v758, %v777
    %779 = vdwg.mxu0
    %780 = vmatpush.msra.mxu0 %v290
    %781 = vmatpush.msra.mxu0 %v289
    %782 = vmatpush.msra.mxu0 %v288
    %783 = vmatpush.msra.mxu0 %v287
    %784 = vmatpush.msra.mxu0 %v286
    %785 = vmatpush.msra.mxu0 %v285
    %786 = vmatpush.msra.mxu0 %v284
    %787 = vmatpush.msra.mxu0 %v283
    %788 = vmatpush.msra.mxu0 %v282
    %789 = vmatpush.msra.mxu0 %v281
    %790 = vmatpush.msra.mxu0 %v280
    %791 = vmatpush.msra.mxu0 %v279
    %792 = vmatpush.msra.mxu0 %v278
    %793 = vmatpush.msra.mxu0 %v277
    %794 = vmatpush.msra.mxu0 %v276
    %795 = vmatpush.msra.mxu0 %v275
    %796 = vmatmul.f32.gmra.mxu0 %v464
    %v797 = vpop.f32.mrf.mxu0
    %v798 = vadd.f32 %v778, %v797
    %799 = vdwg.mxu0
    %800 = vmatpush.msra.mxu0 %v306
    %801 = vmatpush.msra.mxu0 %v305
    %802 = vmatpush.msra.mxu0 %v304
    %803 = vmatpush.msra.mxu0 %v303
    %804 = vmatpush.msra.mxu0 %v302
    %805 = vmatpush.msra.mxu0 %v301
    %806 = vmatpush.msra.mxu0 %v300
    %807 = vmatpush.msra.mxu0 %v299
    %808 = vmatpush.msra.mxu0 %v298
    %809 = vmatpush.msra.mxu0 %v297
    %810 = vmatpush.msra.mxu0 %v296
    %811 = vmatpush.msra.mxu0 %v295
    %812 = vmatpush.msra.mxu0 %v294
    %813 = vmatpush.msra.mxu0 %v293
    %814 = vmatpush.msra.mxu0 %v292
    %815 = vmatpush.msra.mxu0 %v291
    %816 = vmatmul.f32.gmra.mxu0 %v465
    %v817 = vpop.f32.mrf.mxu0
    %v818 = vadd.f32 %v798, %v817
    %819 = vdwg.mxu0
    %820 = vmatpush.msra.mxu0 %v322
    %821 = vmatpush.msra.mxu0 %v321
    %822 = vmatpush.msra.mxu0 %v320
    %823 = vmatpush.msra.mxu0 %v319
    %824 = vmatpush.msra.mxu0 %v318
    %825 = vmatpush.msra.mxu0 %v317
    %826 = vmatpush.msra.mxu0 %v316
    %827 = vmatpush.msra.mxu0 %v315
    %828 = vmatpush.msra.mxu0 %v314
    %829 = vmatpush.msra.mxu0 %v313
    %830 = vmatpush.msra.mxu0 %v312
    %831 = vmatpush.msra.mxu0 %v311
    %832 = vmatpush.msra.mxu0 %v310
    %833 = vmatpush.msra.mxu0 %v309
    %834 = vmatpush.msra.mxu0 %v308
    %835 = vmatpush.msra.mxu0 %v307
    %836 = vmatmul.f32.gmra.mxu0 %v468
    %v837 = vpop.f32.mrf.mxu0
    %v838 = vadd.f32 %v818, %v837
    %839 = vdwg.mxu0
    %840 = vmatpush.msra.mxu0 %v338
    %841 = vmatpush.msra.mxu0 %v337
    %842 = vmatpush.msra.mxu0 %v336
    %843 = vmatpush.msra.mxu0 %v335
    %844 = vmatpush.msra.mxu0 %v334
    %845 = vmatpush.msra.mxu0 %v333
    %846 = vmatpush.msra.mxu0 %v332
    %847 = vmatpush.msra.mxu0 %v331
    %848 = vmatpush.msra.mxu0 %v330
    %849 = vmatpush.msra.mxu0 %v329
    %850 = vmatpush.msra.mxu0 %v328
    %851 = vmatpush.msra.mxu0 %v327
    %852 = vmatpush.msra.mxu0 %v326
    %853 = vmatpush.msra.mxu0 %v325
    %854 = vmatpush.msra.mxu0 %v324
    %855 = vmatpush.msra.mxu0 %v323
    %856 = vmatmul.f32.gmra.mxu0 %v469
    %v857 = vpop.f32.mrf.mxu0
    %v858 = vadd.f32 %v838, %v857
    %859 = vdwg.mxu0
    %860 = vmatpush.msra.mxu0 %v354
    %861 = vmatpush.msra.mxu0 %v353
    %862 = vmatpush.msra.mxu0 %v352
    %863 = vmatpush.msra.mxu0 %v351
    %864 = vmatpush.msra.mxu0 %v350
    %865 = vmatpush.msra.mxu0 %v349
    %866 = vmatpush.msra.mxu0 %v348
    %867 = vmatpush.msra.mxu0 %v347
    %868 = vmatpush.msra.mxu0 %v346
    %869 = vmatpush.msra.mxu0 %v345
    %870 = vmatpush.msra.mxu0 %v344
    %871 = vmatpush.msra.mxu0 %v343
    %872 = vmatpush.msra.mxu0 %v342
    %873 = vmatpush.msra.mxu0 %v341
    %874 = vmatpush.msra.mxu0 %v340
    %875 = vmatpush.msra.mxu0 %v339
    %876 = vmatmul.f32.gmra.mxu0 %v470
    %v877 = vpop.f32.mrf.mxu0
    %v878 = vadd.f32 %v858, %v877
    %879 = vdwg.mxu0
    %880 = vmatpush.msra.mxu0 %v370
    %881 = vmatpush.msra.mxu0 %v369
    %882 = vmatpush.msra.mxu0 %v368
    %883 = vmatpush.msra.mxu0 %v367
    %884 = vmatpush.msra.mxu0 %v366
    %885 = vmatpush.msra.mxu0 %v365
    %886 = vmatpush.msra.mxu0 %v364
    %887 = vmatpush.msra.mxu0 %v363
    %888 = vmatpush.msra.mxu0 %v362
    %889 = vmatpush.msra.mxu0 %v361
    %890 = vmatpush.msra.mxu0 %v360
    %891 = vmatpush.msra.mxu0 %v359
    %892 = vmatpush.msra.mxu0 %v358
    %893 = vmatpush.msra.mxu0 %v357
    %894 = vmatpush.msra.mxu0 %v356
    %895 = vmatpush.msra.mxu0 %v355
    %896 = vmatmul.f32.gmra.mxu0 %v471
    %v897 = vpop.f32.mrf.mxu0
    %v898 = vadd.f32 %v878, %v897
    %899 = vdwg.mxu0
    %900 = vmatpush.msra.mxu0 %v386
    %901 = vmatpush.msra.mxu0 %v385
    %902 = vmatpush.msra.mxu0 %v384
    %903 = vmatpush.msra.mxu0 %v383
    %904 = vmatpush.msra.mxu0 %v382
    %905 = vmatpush.msra.mxu0 %v381
    %906 = vmatpush.msra.mxu0 %v380
    %907 = vmatpush.msra.mxu0 %v379
    %908 = vmatpush.msra.mxu0 %v378
    %909 = vmatpush.msra.mxu0 %v377
    %910 = vmatpush.msra.mxu0 %v376
    %911 = vmatpush.msra.mxu0 %v375
    %912 = vmatpush.msra.mxu0 %v374
    %913 = vmatpush.msra.mxu0 %v373
    %914 = vmatpush.msra.mxu0 %v372
    %915 = vmatpush.msra.mxu0 %v371
    %916 = vmatmul.f32.gmra.mxu0 %v472
    %v917 = vpop.f32.mrf.mxu0
    %v918 = vadd.f32 %v898, %v917
    %919 = vdwg.mxu0
    %920 = vmatpush.msra.mxu0 %v402
    %921 = vmatpush.msra.mxu0 %v401
    %922 = vmatpush.msra.mxu0 %v400
    %923 = vmatpush.msra.mxu0 %v399
    %924 = vmatpush.msra.mxu0 %v398
    %925 = vmatpush.msra.mxu0 %v397
    %926 = vmatpush.msra.mxu0 %v396
    %927 = vmatpush.msra.mxu0 %v395
    %928 = vmatpush.msra.mxu0 %v394
    %929 = vmatpush.msra.mxu0 %v393
    %930 = vmatpush.msra.mxu0 %v392
    %931 = vmatpush.msra.mxu0 %v391
    %932 = vmatpush.msra.mxu0 %v390
    %933 = vmatpush.msra.mxu0 %v389
    %934 = vmatpush.msra.mxu0 %v388
    %935 = vmatpush.msra.mxu0 %v387
    %936 = vmatmul.f32.gmra.mxu0 %v473
    %v937 = vpop.f32.mrf.mxu0
    %v938 = vadd.f32 %v918, %v937
    %939 = vdwg.mxu0
    %940 = vmatpush.msra.mxu0 %v418
    %941 = vmatpush.msra.mxu0 %v417
    %942 = vmatpush.msra.mxu0 %v416
    %943 = vmatpush.msra.mxu0 %v415
    %944 = vmatpush.msra.mxu0 %v414
    %945 = vmatpush.msra.mxu0 %v413
    %946 = vmatpush.msra.mxu0 %v412
    %947 = vmatpush.msra.mxu0 %v411
    %948 = vmatpush.msra.mxu0 %v410
    %949 = vmatpush.msra.mxu0 %v409
    %950 = vmatpush.msra.mxu0 %v408
    %951 = vmatpush.msra.mxu0 %v407
    %952 = vmatpush.msra.mxu0 %v406
    %953 = vmatpush.msra.mxu0 %v405
    %954 = vmatpush.msra.mxu0 %v404
    %955 = vmatpush.msra.mxu0 %v403
    %956 = vmatmul.f32.gmra.mxu0 %v474
    %v957 = vpop.f32.mrf.mxu0
    %v958 = vadd.f32 %v938, %v957
    %959 = vdwg.mxu0
    %960 = vmatpush.msra.mxu0 %v434
    %961 = vmatpush.msra.mxu0 %v433
    %962 = vmatpush.msra.mxu0 %v432
    %963 = vmatpush.msra.mxu0 %v431
    %964 = vmatpush.msra.mxu0 %v430
    %965 = vmatpush.msra.mxu0 %v429
    %966 = vmatpush.msra.mxu0 %v428
    %967 = vmatpush.msra.mxu0 %v427
    %968 = vmatpush.msra.mxu0 %v426
    %969 = vmatpush.msra.mxu0 %v425
    %970 = vmatpush.msra.mxu0 %v424
    %971 = vmatpush.msra.mxu0 %v423
    %972 = vmatpush.msra.mxu0 %v422
    %973 = vmatpush.msra.mxu0 %v421
    %974 = vmatpush.msra.mxu0 %v420
    %975 = vmatpush.msra.mxu0 %v419
    %976 = vmatmul.f32.gmra.mxu0 %v475
    %v977 = vpop.f32.mrf.mxu0
    %v978 = vadd.f32 %v958, %v977
    %979 = vdwg.mxu0
    %980 = vst [vmem:[#allocation7] sm:$0x3] %v978
    // Predicated region
    $region22: #{cnn_big_diff_forward.3} parent=1 // pred_check
      _
    $region23: #{cnn_big_diff_forward.3} parent=1 // pred_check_branch
      %982 = sbr.rel (0) target = $region25
    $region24: #{cnn_big_diff_forward.3} parent=1 // pred_region
      %984 = vsyncadd [#allocation4], 0
      %s986 = sshll.u32 [#allocation7], 4
      %s987 = int_to_ptr.vmem [resolvable:$true] %s986
      %s988 = sshll.u32 %s3, 4
      %s989 = int_to_ptr.hbm [resolvable:$true] %s988
      %991 = dma.vmem_to_hbm [thread:$0]  %s987, 32, %s989, [#allocation4]
    $region25: #{cnn_big_diff_forward.3} parent=1 // pred_fallthru
      _
    // Predicated region
    $region26: #{cnn_big_diff_forward.3} parent=1 // pred_check
      _
    $region27: #{cnn_big_diff_forward.3} parent=1 // pred_check_branch
      %993 = sbr.rel (0) target = $region29
    $region28: #{cnn_big_diff_forward.3} parent=1 // pred_region
      %995 = dma.done [#allocation4], 32
    $region29: #{cnn_big_diff_forward.3} parent=1 // pred_fallthru
      _
    %996 = vsyncpa [#allocation3], 1
    %997 = vsyncpa [#allocation6], 1
    %998 = vsyncpa [#allocation4], 1

// kernel: cnn_big_diff_forward.2
$region0: #{cnn_big_diff_forward.2}
  #allocation0 [shape = 'u32[]', space=smem, size = 0x4, offset = 0x4, fixed_abs, tag = 'smem constant byte address 0x4 - core index']
  #allocation1 [shape = 'u32[72,128]{1,0:T(1,128)}', space=vmem, size = 0x9000, scoped, tag = 'internal scratch']
  #allocation2 [shape = 'f32[64,32]{1,0:T(8,128)}', space=vmem, size = 0x8000, scoped, tag = 'scratch operand']
  #allocation3 [shape = 'f32[48,64]{1,0:T(8,128)}', space=vmem, size = 0x6000, scoped, tag = 'scratch operand']
  #allocation4 [shape = 'f32[32,128]{1,0:T(8,128)}', space=vmem, size = 0x4000, scoped, tag = 'scratch operand']
  #allocation5 [shape = 'f32[16,128]{1,0:T(8,128)}', space=vmem, size = 0x2000, scoped, tag = 'scratch operand']
  %s0 = inlined_call_operand.vmem [shape: f32[224,32], index: 0, kind: input, shape index: {}]
  %s1 = inlined_call_operand.hbm [shape: f32[5,32,32], index: 1, kind: input, shape index: {}]
  %s2 = inlined_call_operand.hbm [shape: f32[5,32,64], index: 2, kind: input, shape index: {}]
  %s3 = inlined_call_operand.hbm [shape: f32[4,64,128], index: 3, kind: input, shape index: {}]
  %s4 = inlined_call_operand.hbm [shape: f32[3,128,128], index: 4, kind: input, shape index: {}]
  %s5 = inlined_call_operand.hbm [shape: f32[3,128,256], index: 5, kind: input, shape index: {}]
  %s6 = inlined_call_operand.hbm [shape: f32[1,32], index: 6, kind: input, shape index: {}]
  %s7 = inlined_call_operand.hbm [shape: f32[1,64], index: 7, kind: input, shape index: {}]
  %s8 = inlined_call_operand.hbm [shape: f32[1,128], index: 8, kind: input, shape index: {}]
  %s9 = inlined_call_operand.hbm [shape: f32[1,128], index: 9, kind: input, shape index: {}]
  %s10 = inlined_call_operand.hbm [shape: f32[1,256], index: 10, kind: input, shape index: {}]
  %s11 = inlined_call_operand.vmem [shape: f32[4,6,256], index: 11, kind: output, shape index: {}]
  %s12 = sld [smem:[#allocation0]]
  $region117: #{cnn_big_diff_forward.2} parent=0
    _
  %s14 = ssub.s32 1, %s12
  %s15 = scalar_select 0, %s14, %s12
  $region1: #{cnn_big_diff_forward.2} parent=0
    #allocation6 [shape = 'u8[81920]{0}', space=vmem, size = 0x14000, scoped, tag = 'input window, operand 1, single buffered']
    #allocation7 [shape = 's32[2]{0}', space=sflag, size = 0x8, scoped, tag = 'scoped memory for cnn_big_diff_forward.2']
    #allocation8 [shape = 'u8[81920]{0}', space=vmem, size = 0x14000, scoped, tag = 'input window, operand 2, single buffered']
    #allocation9 [shape = 's32[1]{0}', space=sflag, size = 0x4, scoped, tag = 'scoped memory for cnn_big_diff_forward.2']
    #allocation10 [shape = 'u8[131072]{0}', space=vmem, size = 0x20000, scoped, tag = 'input window, operand 3, single buffered']
    #allocation11 [shape = 'u8[196608]{0}', space=vmem, size = 0x30000, scoped, tag = 'input window, operand 4, single buffered']
    #allocation12 [shape = 's32[1]{0}', space=sflag, size = 0x4, scoped, tag = 'scoped memory for cnn_big_diff_forward.2']
    #allocation13 [shape = 'u8[393216]{0}', space=vmem, size = 0x60000, scoped, tag = 'input window, operand 5, single buffered']
    #allocation14 [shape = 'u8[512]{0}', space=vmem, size = 0x400, scoped, tag = 'input window, operand 6, single buffered']
    #allocation15 [shape = 's32[1]{0}', space=sflag, size = 0x4, scoped, tag = 'scoped memory for cnn_big_diff_forward.2']
    #allocation16 [shape = 'u8[512]{0}', space=vmem, size = 0x400, scoped, tag = 'input window, operand 7, single buffered']
    #allocation17 [shape = 'u8[512]{0}', space=vmem, size = 0x400, scoped, tag = 'input window, operand 8, single buffered']
    #allocation18 [shape = 's32[1]{0}', space=sflag, size = 0x4, scoped, tag = 'scoped memory for cnn_big_diff_forward.2']
    #allocation19 [shape = 'u8[512]{0}', space=vmem, size = 0x400, scoped, tag = 'input window, operand 9, single buffered']
    #allocation20 [shape = 'u8[1024]{0}', space=vmem, size = 0x400, scoped, tag = 'input window, operand 10, single buffered']
    #allocation21 [shape = 's32[1]{0}', space=sflag, size = 0x4, scoped, tag = 'scoped memory for cnn_big_diff_forward.2']
    %16 = vsyncpa [#allocation7], 0
    %17 = vsyncpa [#allocation9], 0
    %18 = vsyncpa [#allocation12], 0
    %19 = vsyncpa [#allocation15], 0
    %20 = vsyncpa [#allocation18], 0
    %21 = vsyncpa [#allocation21], 0
    loop: start=0, step=1, limit=4
    $region2: #{cnn_big_diff_forward.2} parent=1 // loop_pre_header
      _
    $region3: #{cnn_big_diff_forward.2} parent=1 // loop_header
      %s23 = sphi 0, %s27
      %p24 = scmp.ge.s32.totalorder %s23, 4
      %s33 = sphi 0, %s35
      %s36 = sphi 0, %s33
      %s37 = sphi 0, %s36
      %s53 = sphi 0, %s37
      %s57 = sphi 0, %s57
      %s59 = sphi 0, %s57
      %s60 = sphi 0, %s59
      %s74 = sphi 0, %s60
      %s78 = sphi 0, %s78
      %s80 = sphi 0, %s78
      %s81 = sphi 0, %s80
      %s95 = sphi 0, %s81
      %s99 = sphi 0, %s99
      %s101 = sphi 0, %s99
      %s102 = sphi 0, %s101
      %s116 = sphi 0, %s102
      %s120 = sphi 0, %s120
      %s122 = sphi 0, %s120
      %s123 = sphi 0, %s122
      %s137 = sphi 0, %s123
      %s141 = sphi 0, %s141
      %s143 = sphi 0, %s141
      %s144 = sphi 0, %s143
      %s158 = sphi 0, %s144
      %s162 = sphi 0, %s162
      %s164 = sphi 0, %s162
      %s165 = sphi 0, %s164
      %s179 = sphi 0, %s165
      %s183 = sphi 0, %s183
      %s185 = sphi 0, %s183
      %s186 = sphi 0, %s185
      %s200 = sphi 0, %s186
      %s204 = sphi 0, %s204
      %s206 = sphi 0, %s204
      %s207 = sphi 0, %s206
      %s221 = sphi 0, %s207
      %s225 = sphi 0, %s225
      %s227 = sphi 0, %s225
      %s228 = sphi 0, %s227
      %s242 = sphi 0, %s228
      %s246 = sphi 0, %s246
      %s248 = sphi 0, %s246
      %s249 = sphi 0, %s248
      %s263 = sphi 0, %s249
      %s269 = sphi 0, %s271
      %s272 = sphi 0, %s269
      %s273 = sphi 0, %s272
      %s289 = sphi 0, %s273
    $region4: #{cnn_big_diff_forward.2} parent=1 // loop_header_branch
      %26 = sbr.rel (%p24) target = $region8
    $region5: #{cnn_big_diff_forward.2} parent=1 // loop_body
      %s28 = ssub.s32 %s23, 1
      %s29 = ssub.s32 %s23, 2
      %s30 = sadd.s32 %s23, 1
      %s31 = ssub.s32 %s23, %s30
      %p32 = scmp.eq.s32.totalorder %s31, 0
      %s34 = sadd.s32 %s33, 1
      %s35 = scalar_select %p32, %s33, %s34
      %p38 = pneg %p32
      %p39 = scmp.eq.s32.totalorder %s23, 1
      %p40 = por %p38, %p39
      %p41 = scmp.ne.s32.totalorder %s33, %s36
      %p42 = scmp.eq.s32.totalorder %s23, 0
      %p43 = por %p41, %p42
      %p44 = scmp.ne.s32.totalorder %s33, %s36
      %p45 = scmp.eq.s32.totalorder %s28, 1
      %p46 = por %p44, %p45
      %p47 = scmp.ne.s32.totalorder %s36, %s37
      %p48 = scmp.eq.s32.totalorder %s28, 0
      %p49 = por %p47, %p48
      %p50 = scmp.ne.s32.totalorder %s36, %s37
      %p51 = scmp.eq.s32.totalorder %s29, 1
      %p52 = por %p50, %p51
      %p54 = scmp.ne.s32.totalorder %s37, %s53
      %p55 = scmp.eq.s32.totalorder %s29, 0
      %p56 = por %p54, %p55
      %s58 = sadd.s32 %s57, 1
      %p61 = scmp.eq.s32.totalorder %s23, 1
      %p62 = scmp.ne.s32.totalorder %s57, %s59
      %p63 = scmp.eq.s32.totalorder %s23, 0
      %p64 = por %p62, %p63
      %p65 = scmp.ne.s32.totalorder %s57, %s59
      %p66 = scmp.eq.s32.totalorder %s28, 1
      %p67 = por %p65, %p66
      %p68 = scmp.ne.s32.totalorder %s59, %s60
      %p69 = scmp.eq.s32.totalorder %s28, 0
      %p70 = por %p68, %p69
      %p71 = scmp.ne.s32.totalorder %s59, %s60
      %p72 = scmp.eq.s32.totalorder %s29, 1
      %p73 = por %p71, %p72
      %p75 = scmp.ne.s32.totalorder %s60, %s74
      %p76 = scmp.eq.s32.totalorder %s29, 0
      %p77 = por %p75, %p76
      %s79 = sadd.s32 %s78, 1
      %p82 = scmp.eq.s32.totalorder %s23, 1
      %p83 = scmp.ne.s32.totalorder %s78, %s80
      %p84 = scmp.eq.s32.totalorder %s23, 0
      %p85 = por %p83, %p84
      %p86 = scmp.ne.s32.totalorder %s78, %s80
      %p87 = scmp.eq.s32.totalorder %s28, 1
      %p88 = por %p86, %p87
      %p89 = scmp.ne.s32.totalorder %s80, %s81
      %p90 = scmp.eq.s32.totalorder %s28, 0
      %p91 = por %p89, %p90
      %p92 = scmp.ne.s32.totalorder %s80, %s81
      %p93 = scmp.eq.s32.totalorder %s29, 1
      %p94 = por %p92, %p93
      %p96 = scmp.ne.s32.totalorder %s81, %s95
      %p97 = scmp.eq.s32.totalorder %s29, 0
      %p98 = por %p96, %p97
      %s100 = sadd.s32 %s99, 1
      %p103 = scmp.eq.s32.totalorder %s23, 1
      %p104 = scmp.ne.s32.totalorder %s99, %s101
      %p105 = scmp.eq.s32.totalorder %s23, 0
      %p106 = por %p104, %p105
      %p107 = scmp.ne.s32.totalorder %s99, %s101
      %p108 = scmp.eq.s32.totalorder %s28, 1
      %p109 = por %p107, %p108
      %p110 = scmp.ne.s32.totalorder %s101, %s102
      %p111 = scmp.eq.s32.totalorder %s28, 0
      %p112 = por %p110, %p111
      %p113 = scmp.ne.s32.totalorder %s101, %s102
      %p114 = scmp.eq.s32.totalorder %s29, 1
      %p115 = por %p113, %p114
      %p117 = scmp.ne.s32.totalorder %s102, %s116
      %p118 = scmp.eq.s32.totalorder %s29, 0
      %p119 = por %p117, %p118
      %s121 = sadd.s32 %s120, 1
      %p124 = scmp.eq.s32.totalorder %s23, 1
      %p125 = scmp.ne.s32.totalorder %s120, %s122
      %p126 = scmp.eq.s32.totalorder %s23, 0
      %p127 = por %p125, %p126
      %p128 = scmp.ne.s32.totalorder %s120, %s122
      %p129 = scmp.eq.s32.totalorder %s28, 1
      %p130 = por %p128, %p129
      %p131 = scmp.ne.s32.totalorder %s122, %s123
      %p132 = scmp.eq.s32.totalorder %s28, 0
      %p133 = por %p131, %p132
      %p134 = scmp.ne.s32.totalorder %s122, %s123
      %p135 = scmp.eq.s32.totalorder %s29, 1
      %p136 = por %p134, %p135
      %p138 = scmp.ne.s32.totalorder %s123, %s137
      %p139 = scmp.eq.s32.totalorder %s29, 0
      %p140 = por %p138, %p139
      %s142 = sadd.s32 %s141, 1
      %p145 = scmp.eq.s32.totalorder %s23, 1
      %p146 = scmp.ne.s32.totalorder %s141, %s143
      %p147 = scmp.eq.s32.totalorder %s23, 0
      %p148 = por %p146, %p147
      %p149 = scmp.ne.s32.totalorder %s141, %s143
      %p150 = scmp.eq.s32.totalorder %s28, 1
      %p151 = por %p149, %p150
      %p152 = scmp.ne.s32.totalorder %s143, %s144
      %p153 = scmp.eq.s32.totalorder %s28, 0
      %p154 = por %p152, %p153
      %p155 = scmp.ne.s32.totalorder %s143, %s144
      %p156 = scmp.eq.s32.totalorder %s29, 1
      %p157 = por %p155, %p156
      %p159 = scmp.ne.s32.totalorder %s144, %s158
      %p160 = scmp.eq.s32.totalorder %s29, 0
      %p161 = por %p159, %p160
      %s163 = sadd.s32 %s162, 1
      %p166 = scmp.eq.s32.totalorder %s23, 1
      %p167 = scmp.ne.s32.totalorder %s162, %s164
      %p168 = scmp.eq.s32.totalorder %s23, 0
      %p169 = por %p167, %p168
      %p170 = scmp.ne.s32.totalorder %s162, %s164
      %p171 = scmp.eq.s32.totalorder %s28, 1
      %p172 = por %p170, %p171
      %p173 = scmp.ne.s32.totalorder %s164, %s165
      %p174 = scmp.eq.s32.totalorder %s28, 0
      %p175 = por %p173, %p174
      %p176 = scmp.ne.s32.totalorder %s164, %s165
      %p177 = scmp.eq.s32.totalorder %s29, 1
      %p178 = por %p176, %p177
      %p180 = scmp.ne.s32.totalorder %s165, %s179
      %p181 = scmp.eq.s32.totalorder %s29, 0
      %p182 = por %p180, %p181
      %s184 = sadd.s32 %s183, 1
      %p187 = scmp.eq.s32.totalorder %s23, 1
      %p188 = scmp.ne.s32.totalorder %s183, %s185
      %p189 = scmp.eq.s32.totalorder %s23, 0
      %p190 = por %p188, %p189
      %p191 = scmp.ne.s32.totalorder %s183, %s185
      %p192 = scmp.eq.s32.totalorder %s28, 1
      %p193 = por %p191, %p192
      %p194 = scmp.ne.s32.totalorder %s185, %s186
      %p195 = scmp.eq.s32.totalorder %s28, 0
      %p196 = por %p194, %p195
      %p197 = scmp.ne.s32.totalorder %s185, %s186
      %p198 = scmp.eq.s32.totalorder %s29, 1
      %p199 = por %p197, %p198
      %p201 = scmp.ne.s32.totalorder %s186, %s200
      %p202 = scmp.eq.s32.totalorder %s29, 0
      %p203 = por %p201, %p202
      %s205 = sadd.s32 %s204, 1
      %p208 = scmp.eq.s32.totalorder %s23, 1
      %p209 = scmp.ne.s32.totalorder %s204, %s206
      %p210 = scmp.eq.s32.totalorder %s23, 0
      %p211 = por %p209, %p210
      %p212 = scmp.ne.s32.totalorder %s204, %s206
      %p213 = scmp.eq.s32.totalorder %s28, 1
      %p214 = por %p212, %p213
      %p215 = scmp.ne.s32.totalorder %s206, %s207
      %p216 = scmp.eq.s32.totalorder %s28, 0
      %p217 = por %p215, %p216
      %p218 = scmp.ne.s32.totalorder %s206, %s207
      %p219 = scmp.eq.s32.totalorder %s29, 1
      %p220 = por %p218, %p219
      %p222 = scmp.ne.s32.totalorder %s207, %s221
      %p223 = scmp.eq.s32.totalorder %s29, 0
      %p224 = por %p222, %p223
      %s226 = sadd.s32 %s225, 1
      %p229 = scmp.eq.s32.totalorder %s23, 1
      %p230 = scmp.ne.s32.totalorder %s225, %s227
      %p231 = scmp.eq.s32.totalorder %s23, 0
      %p232 = por %p230, %p231
      %p233 = scmp.ne.s32.totalorder %s225, %s227
      %p234 = scmp.eq.s32.totalorder %s28, 1
      %p235 = por %p233, %p234
      %p236 = scmp.ne.s32.totalorder %s227, %s228
      %p237 = scmp.eq.s32.totalorder %s28, 0
      %p238 = por %p236, %p237
      %p239 = scmp.ne.s32.totalorder %s227, %s228
      %p240 = scmp.eq.s32.totalorder %s29, 1
      %p241 = por %p239, %p240
      %p243 = scmp.ne.s32.totalorder %s228, %s242
      %p244 = scmp.eq.s32.totalorder %s29, 0
      %p245 = por %p243, %p244
      %s247 = sadd.s32 %s246, 1
      %p250 = scmp.eq.s32.totalorder %s23, 1
      %p251 = scmp.ne.s32.totalorder %s246, %s248
      %p252 = scmp.eq.s32.totalorder %s23, 0
      %p253 = por %p251, %p252
      %p254 = scmp.ne.s32.totalorder %s246, %s248
      %p255 = scmp.eq.s32.totalorder %s28, 1
      %p256 = por %p254, %p255
      %p257 = scmp.ne.s32.totalorder %s248, %s249
      %p258 = scmp.eq.s32.totalorder %s28, 0
      %p259 = por %p257, %p258
      %p260 = scmp.ne.s32.totalorder %s248, %s249
      %p261 = scmp.eq.s32.totalorder %s29, 1
      %p262 = por %p260, %p261
      %p264 = scmp.ne.s32.totalorder %s249, %s263
      %p265 = scmp.eq.s32.totalorder %s29, 0
      %p266 = por %p264, %p265
      %s267 = ssub.s32 %s23, %s30
      %p268 = scmp.eq.s32.totalorder %s267, 0
      %s270 = sadd.s32 %s269, 1
      %s271 = scalar_select %p268, %s269, %s270
      %p274 = pneg %p268
      %p275 = scmp.eq.s32.totalorder %s23, 1
      %p276 = por %p274, %p275
      %p277 = scmp.ne.s32.totalorder %s269, %s272
      %p278 = scmp.eq.s32.totalorder %s23, 0
      %p279 = por %p277, %p278
      %p280 = scmp.ne.s32.totalorder %s269, %s272
      %p281 = scmp.eq.s32.totalorder %s28, 1
      %p282 = por %p280, %p281
      %p283 = scmp.ne.s32.totalorder %s272, %s273
      %p284 = scmp.eq.s32.totalorder %s28, 0
      %p285 = por %p283, %p284
      %p286 = scmp.ne.s32.totalorder %s272, %s273
      %p287 = scmp.eq.s32.totalorder %s29, 1
      %p288 = por %p286, %p287
      %p290 = scmp.ne.s32.totalorder %s273, %s289
      %p291 = scmp.eq.s32.totalorder %s29, 0
      %p292 = por %p290, %p291
      %p293 = scmp.le.s32.totalorder 1, %s23
      %p294 = scmp.lt.s32.totalorder %s23, 3
      %p295 = pnand %p293, %p294
      %p296 = pneg %p295
      // Predicated region
      $region9: #{cnn_big_diff_forward.2} parent=5 // pred_check
        _
      $region10: #{cnn_big_diff_forward.2} parent=5 // pred_check_branch
        %298 = sbr.rel (%p295) target = $region12
      $region11: #{cnn_big_diff_forward.2} parent=5 // pred_region
        %s299 = ssub.s32 %s23, 1
        // Predicated region
        $region13: #{cnn_big_diff_forward.2} parent=11 // pred_check
          %p300 = pneg %p70
        $region14: #{cnn_big_diff_forward.2} parent=11 // pred_check_branch
          %302 = sbr.rel (%p300) target = $region16
        $region15: #{cnn_big_diff_forward.2} parent=11 // pred_region
          %304 = vsyncadd [#allocation7], 0
          %s305 = sshll.u32 %s1, 4
          %s306 = int_to_ptr.hbm [resolvable:$true] %s305
          %s307 = sshll.u32 [#allocation6], 4
          %s308 = int_to_ptr.vmem [resolvable:$true] %s307
          %313 = dma.hbm_to_vmem [thread:$0]  %s306, 2560, %s308, [#allocation7], 128, 128, 8
        $region16: #{cnn_big_diff_forward.2} parent=11 // pred_fallthru
          _
        // Predicated region
        $region17: #{cnn_big_diff_forward.2} parent=11 // pred_check
          %p314 = pneg %p91
        $region18: #{cnn_big_diff_forward.2} parent=11 // pred_check_branch
          %316 = sbr.rel (%p314) target = $region20
        $region19: #{cnn_big_diff_forward.2} parent=11 // pred_region
          %318 = vsyncadd [#allocation9], 0
          %s319 = sshll.u32 %s2, 4
          %s320 = int_to_ptr.hbm [resolvable:$true] %s319
          %s321 = sshll.u32 [#allocation8], 4
          %s322 = int_to_ptr.vmem [resolvable:$true] %s321
          %327 = dma.hbm_to_vmem [thread:$0]  %s320, 2560, %s322, [#allocation9], 128, 128, 8
        $region20: #{cnn_big_diff_forward.2} parent=11 // pred_fallthru
          _
        // Predicated region
        $region21: #{cnn_big_diff_forward.2} parent=11 // pred_check
          %p328 = pneg %p112
        $region22: #{cnn_big_diff_forward.2} parent=11 // pred_check_branch
          %330 = sbr.rel (%p328) target = $region24
        $region23: #{cnn_big_diff_forward.2} parent=11 // pred_region
          %332 = vsyncadd [#allocation9], 0
          %s333 = sshll.u32 %s3, 4
          %s334 = int_to_ptr.hbm [resolvable:$true] %s333
          %s335 = sshll.u32 [#allocation10], 4
          %s336 = int_to_ptr.vmem [resolvable:$true] %s335
          %341 = dma.hbm_to_vmem [thread:$0]  %s334, 4096, %s336, [#allocation9], 128, 128, 8
        $region24: #{cnn_big_diff_forward.2} parent=11 // pred_fallthru
          _
        // Predicated region
        $region25: #{cnn_big_diff_forward.2} parent=11 // pred_check
          %p342 = pneg %p133
        $region26: #{cnn_big_diff_forward.2} parent=11 // pred_check_branch
          %344 = sbr.rel (%p342) target = $region28
        $region27: #{cnn_big_diff_forward.2} parent=11 // pred_region
          %346 = vsyncadd [#allocation12], 0
          %s347 = sshll.u32 %s4, 4
          %s348 = int_to_ptr.hbm [resolvable:$true] %s347
          %s349 = sshll.u32 [#allocation11], 4
          %s350 = int_to_ptr.vmem [resolvable:$true] %s349
          %355 = dma.hbm_to_vmem [thread:$0]  %s348, 6144, %s350, [#allocation12], 128, 128, 8
        $region28: #{cnn_big_diff_forward.2} parent=11 // pred_fallthru
          _
        // Predicated region
        $region29: #{cnn_big_diff_forward.2} parent=11 // pred_check
          %p356 = pneg %p154
        $region30: #{cnn_big_diff_forward.2} parent=11 // pred_check_branch
          %358 = sbr.rel (%p356) target = $region32
        $region31: #{cnn_big_diff_forward.2} parent=11 // pred_region
          %360 = vsyncadd [#allocation12], 0
          %s361 = sshll.u32 %s5, 4
          %s362 = int_to_ptr.hbm [resolvable:$true] %s361
          %s363 = sshll.u32 [#allocation13], 4
          %s364 = int_to_ptr.vmem [resolvable:$true] %s363
          %369 = dma.hbm_to_vmem [thread:$0]  %s362, 12288, %s364, [#allocation12], 256, 256, 16
        $region32: #{cnn_big_diff_forward.2} parent=11 // pred_fallthru
          _
        // Predicated region
        $region33: #{cnn_big_diff_forward.2} parent=11 // pred_check
          %p370 = pneg %p175
        $region34: #{cnn_big_diff_forward.2} parent=11 // pred_check_branch
          %372 = sbr.rel (%p370) target = $region36
        $region35: #{cnn_big_diff_forward.2} parent=11 // pred_region
          %374 = vsyncadd [#allocation15], 0
          %s376 = sshll.u32 %s6, 4
          %s377 = int_to_ptr.hbm [resolvable:$true] %s376
          %s378 = sshll.u32 [#allocation14], 4
          %s379 = int_to_ptr.vmem [resolvable:$true] %s378
          %381 = dma.hbm_to_vmem [thread:$0]  %s377, 16, %s379, [#allocation15]
        $region36: #{cnn_big_diff_forward.2} parent=11 // pred_fallthru
          _
        // Predicated region
        $region37: #{cnn_big_diff_forward.2} parent=11 // pred_check
          %p382 = pneg %p196
        $region38: #{cnn_big_diff_forward.2} parent=11 // pred_check_branch
          %384 = sbr.rel (%p382) target = $region40
        $region39: #{cnn_big_diff_forward.2} parent=11 // pred_region
          %386 = vsyncadd [#allocation15], 0
          %s388 = sshll.u32 %s7, 4
          %s389 = int_to_ptr.hbm [resolvable:$true] %s388
          %s390 = sshll.u32 [#allocation16], 4
          %s391 = int_to_ptr.vmem [resolvable:$true] %s390
          %393 = dma.hbm_to_vmem [thread:$0]  %s389, 16, %s391, [#allocation15]
        $region40: #{cnn_big_diff_forward.2} parent=11 // pred_fallthru
          _
        // Predicated region
        $region41: #{cnn_big_diff_forward.2} parent=11 // pred_check
          %p394 = pneg %p217
        $region42: #{cnn_big_diff_forward.2} parent=11 // pred_check_branch
          %396 = sbr.rel (%p394) target = $region44
        $region43: #{cnn_big_diff_forward.2} parent=11 // pred_region
          %398 = vsyncadd [#allocation18], 0
          %s400 = sshll.u32 %s8, 4
          %s401 = int_to_ptr.hbm [resolvable:$true] %s400
          %s402 = sshll.u32 [#allocation17], 4
          %s403 = int_to_ptr.vmem [resolvable:$true] %s402
          %405 = dma.hbm_to_vmem [thread:$0]  %s401, 16, %s403, [#allocation18]
        $region44: #{cnn_big_diff_forward.2} parent=11 // pred_fallthru
          _
        // Predicated region
        $region45: #{cnn_big_diff_forward.2} parent=11 // pred_check
          %p406 = pneg %p238
        $region46: #{cnn_big_diff_forward.2} parent=11 // pred_check_branch
          %408 = sbr.rel (%p406) target = $region48
        $region47: #{cnn_big_diff_forward.2} parent=11 // pred_region
          %410 = vsyncadd [#allocation18], 0
          %s412 = sshll.u32 %s9, 4
          %s413 = int_to_ptr.hbm [resolvable:$true] %s412
          %s414 = sshll.u32 [#allocation19], 4
          %s415 = int_to_ptr.vmem [resolvable:$true] %s414
          %417 = dma.hbm_to_vmem [thread:$0]  %s413, 16, %s415, [#allocation18]
        $region48: #{cnn_big_diff_forward.2} parent=11 // pred_fallthru
          _
        // Predicated region
        $region49: #{cnn_big_diff_forward.2} parent=11 // pred_check
          %p418 = pneg %p259
        $region50: #{cnn_big_diff_forward.2} parent=11 // pred_check_branch
          %420 = sbr.rel (%p418) target = $region52
        $region51: #{cnn_big_diff_forward.2} parent=11 // pred_region
          %422 = vsyncadd [#allocation21], 0
          %s424 = sshll.u32 %s10, 4
          %s425 = int_to_ptr.hbm [resolvable:$true] %s424
          %s426 = sshll.u32 [#allocation20], 4
          %s427 = int_to_ptr.vmem [resolvable:$true] %s426
          %429 = dma.hbm_to_vmem [thread:$0]  %s425, 32, %s427, [#allocation21]
        $region52: #{cnn_big_diff_forward.2} parent=11 // pred_fallthru
          _
      $region12: #{cnn_big_diff_forward.2} parent=5 // pred_fallthru
        _
      %p430 = scmp.lt.s32.totalorder %s23, 2
      // Predicated region
      $region53: #{cnn_big_diff_forward.2} parent=5 // pred_check
        %p431 = pneg %p430
      $region54: #{cnn_big_diff_forward.2} parent=5 // pred_check_branch
        %433 = sbr.rel (%p431) target = $region56
      $region55: #{cnn_big_diff_forward.2} parent=5 // pred_region
        // Predicated region
        $region57: #{cnn_big_diff_forward.2} parent=55 // pred_check
          %p434 = pneg %p43
        $region58: #{cnn_big_diff_forward.2} parent=55 // pred_check_branch
          %436 = sbr.rel (%p434) target = $region60
        $region59: #{cnn_big_diff_forward.2} parent=55 // pred_region
          %s437 = smul.u32 14, %s23
          %p438 = scmp.lt.s32.totalorder %s437, 27
          %s439 = scalar_select %p438, %s437, 27
          %s440 = smul.addr %s439, 8
          %s441 = scalar_lea.vmem %s0, %s440
          %s442 = smul.u32 14, %s23
        $region60: #{cnn_big_diff_forward.2} parent=55 // pred_fallthru
          _
      $region56: #{cnn_big_diff_forward.2} parent=5 // pred_fallthru
        _
      %p443 = scmp.le.s32.totalorder 1, %s23
      %p444 = scmp.lt.s32.totalorder %s23, 3
      %p445 = pnand %p443, %p444
      %p446 = pneg %p445
      // Predicated region
      $region61: #{cnn_big_diff_forward.2} parent=5 // pred_check
        _
      $region62: #{cnn_big_diff_forward.2} parent=5 // pred_check_branch
        %448 = sbr.rel (%p445) target = $region64
      $region63: #{cnn_big_diff_forward.2} parent=5 // pred_region
        %s449 = ssub.s32 %s23, 1
        // Predicated region
        $region65: #{cnn_big_diff_forward.2} parent=63 // pred_check
          %p450 = pneg %p70
        $region66: #{cnn_big_diff_forward.2} parent=63 // pred_check_branch
          %452 = sbr.rel (%p450) target = $region68
        $region67: #{cnn_big_diff_forward.2} parent=63 // pred_region
          %454 = dma.done [#allocation7], 2560
        $region68: #{cnn_big_diff_forward.2} parent=63 // pred_fallthru
          _
        // Predicated region
        $region69: #{cnn_big_diff_forward.2} parent=63 // pred_check
          %p455 = pneg %p91
        $region70: #{cnn_big_diff_forward.2} parent=63 // pred_check_branch
          %457 = sbr.rel (%p455) target = $region72
        $region71: #{cnn_big_diff_forward.2} parent=63 // pred_region
          %459 = dma.done [#allocation9], 2560
        $region72: #{cnn_big_diff_forward.2} parent=63 // pred_fallthru
          _
        // Predicated region
        $region73: #{cnn_big_diff_forward.2} parent=63 // pred_check
          %p460 = pneg %p112
        $region74: #{cnn_big_diff_forward.2} parent=63 // pred_check_branch
          %462 = sbr.rel (%p460) target = $region76
        $region75: #{cnn_big_diff_forward.2} parent=63 // pred_region
          %464 = dma.done [#allocation9], 4096
        $region76: #{cnn_big_diff_forward.2} parent=63 // pred_fallthru
          _
        // Predicated region
        $region77: #{cnn_big_diff_forward.2} parent=63 // pred_check
          %p465 = pneg %p133
        $region78: #{cnn_big_diff_forward.2} parent=63 // pred_check_branch
          %467 = sbr.rel (%p465) target = $region80
        $region79: #{cnn_big_diff_forward.2} parent=63 // pred_region
          %469 = dma.done [#allocation12], 6144
        $region80: #{cnn_big_diff_forward.2} parent=63 // pred_fallthru
          _
        // Predicated region
        $region81: #{cnn_big_diff_forward.2} parent=63 // pred_check
          %p470 = pneg %p154
        $region82: #{cnn_big_diff_forward.2} parent=63 // pred_check_branch
          %472 = sbr.rel (%p470) target = $region84
        $region83: #{cnn_big_diff_forward.2} parent=63 // pred_region
          %474 = dma.done [#allocation12], 12288
        $region84: #{cnn_big_diff_forward.2} parent=63 // pred_fallthru
          _
        // Predicated region
        $region85: #{cnn_big_diff_forward.2} parent=63 // pred_check
          %p475 = pneg %p175
        $region86: #{cnn_big_diff_forward.2} parent=63 // pred_check_branch
          %477 = sbr.rel (%p475) target = $region88
        $region87: #{cnn_big_diff_forward.2} parent=63 // pred_region
          %479 = dma.done [#allocation15], 16
        $region88: #{cnn_big_diff_forward.2} parent=63 // pred_fallthru
          _
        // Predicated region
        $region89: #{cnn_big_diff_forward.2} parent=63 // pred_check
          %p480 = pneg %p196
        $region90: #{cnn_big_diff_forward.2} parent=63 // pred_check_branch
          %482 = sbr.rel (%p480) target = $region92
        $region91: #{cnn_big_diff_forward.2} parent=63 // pred_region
          %484 = dma.done [#allocation15], 16
        $region92: #{cnn_big_diff_forward.2} parent=63 // pred_fallthru
          _
        // Predicated region
        $region93: #{cnn_big_diff_forward.2} parent=63 // pred_check
          %p485 = pneg %p217
        $region94: #{cnn_big_diff_forward.2} parent=63 // pred_check_branch
          %487 = sbr.rel (%p485) target = $region96
        $region95: #{cnn_big_diff_forward.2} parent=63 // pred_region
          %489 = dma.done [#allocation18], 16
        $region96: #{cnn_big_diff_forward.2} parent=63 // pred_fallthru
          _
        // Predicated region
        $region97: #{cnn_big_diff_forward.2} parent=63 // pred_check
          %p490 = pneg %p238
        $region98: #{cnn_big_diff_forward.2} parent=63 // pred_check_branch
          %492 = sbr.rel (%p490) target = $region100
        $region99: #{cnn_big_diff_forward.2} parent=63 // pred_region
          %494 = dma.done [#allocation18], 16
        $region100: #{cnn_big_diff_forward.2} parent=63 // pred_fallthru
          _
        // Predicated region
        $region101: #{cnn_big_diff_forward.2} parent=63 // pred_check
          %p495 = pneg %p259
        $region102: #{cnn_big_diff_forward.2} parent=63 // pred_check_branch
          %497 = sbr.rel (%p495) target = $region104
        $region103: #{cnn_big_diff_forward.2} parent=63 // pred_region
          %499 = dma.done [#allocation21], 32
        $region104: #{cnn_big_diff_forward.2} parent=63 // pred_fallthru
          _
        %s500 = smul.u32 14, %s28
        %p501 = scmp.lt.s32.totalorder %s500, 27
        %s502 = scalar_select %p501, %s500, 27
        %s503 = smul.addr %s502, 8
        %s504 = scalar_lea.vmem %s0, %s503
        %p505 = pneg %p49
        %p506 = pneg %p46
        %p507 = pneg %p70
        %p508 = pneg %p67
        %p509 = pneg %p91
        %p510 = pneg %p88
        %p511 = pneg %p112
        %p512 = pneg %p109
        %p513 = pneg %p133
        %p514 = pneg %p130
        %p515 = pneg %p154
        %p516 = pneg %p151
        %p517 = pneg %p175
        %p518 = pneg %p172
        %p519 = pneg %p196
        %p520 = pneg %p193
        %p521 = pneg %p217
        %p522 = pneg %p214
        %p523 = pneg %p238
        %p524 = pneg %p235
        %p525 = pneg %p259
        %p526 = pneg %p256
        %p527 = pneg %p285
        %p528 = pneg %p282
        %s529 = smul.u32 2, %s28
        %p530 = scmp.lt.s32.totalorder %s529, 3
        %s531 = scalar_select %p530, %s529, 3
        %s532 = smul.addr %s531, 2
        %s533 = smul.addr %s532, 8
        %s534 = scalar_lea.vmem %s11, %s533
        %s535 = smul.u32 14, %s28
        %p536 = scmp.lt.s32.totalorder %s535, 27
        %s537 = scalar_select %p536, %s535, 27
        %s538 = smul.addr %s537, 8
        %s539 = scalar_lea.vmem %s0, %s538
        %s540 = smul.u32 14, %s28
        %s541 = smul.u32 2, %s28
        %p542 = scmp.lt.s32.totalorder %s541, 3
        %s543 = scalar_select %p542, %s541, 3
        %s544 = smul.addr %s543, 2
        %s545 = smul.addr %s544, 8
        %s546 = scalar_lea.vmem %s11, %s545
        %s547 = smul.u32 2, %s28
        %vm548 = vcmask 254976
        %549 = vst.msk [vmem:[#allocation2] sm:$0x3] %vm548, 0.0
        %vm550 = vcmask 257024
        %551 = vst.msk [vmem:[#allocation2 + $0x1c] sm:$0xf] %vm550, 0.0
        %552 = vst.msk [vmem:[#allocation2 + $0x20] sm:$0x3] %vm548, 0.0
        %553 = vst.msk [vmem:[#allocation2 + $0x3c] sm:$0xf] %vm550, 0.0
        %vm554 = vcmask 517120
        %555 = vst.msk [vmem:[#allocation3] sm:$0x3] %vm554, 0.0
        %vm556 = vcmask 523264
        %557 = vst.msk [vmem:[#allocation3 + $0xf] sm:$0xff] %vm556, 0.0
        %vm558 = vcmask 516096
        %559 = vst.msk [vmem:[#allocation3 + $0x17] sm:$0x1] %vm558, 0.0
        %560 = vst.msk [vmem:[#allocation3 + $0x18] sm:$0x3] %vm554, 0.0
        %561 = vst.msk [vmem:[#allocation3 + $0x27] sm:$0xff] %vm556, 0.0
        %562 = vst.msk [vmem:[#allocation3 + $0x2f] sm:$0x1] %vm558, 0.0
        %563 = vst [vmem:[#allocation4 + $0xe] sm:$0x3] 0.0
        %564 = vst [vmem:[#allocation4 + $0x1e] sm:$0x3] 0.0
        %565 = vst [vmem:[#allocation5] sm:$0x1] 0.0
        %566 = vst [vmem:[#allocation5 + $0x7] sm:$0x1] 0.0
        %567 = vst [vmem:[#allocation5 + $0x8] sm:$0x1] 0.0
        %568 = vst [vmem:[#allocation5 + $0xf] sm:$0x1] 0.0
        %v569 = vld [vmem:[#allocation14] sm:$0x1]
        %v570 = vld [vmem:[%s539] ss:$2 sm:$0xff]
        %s571 = scalar_lea.vmem %s539, 16
        %v572 = vld [vmem:[%s571] ss:$2 sm:$0xff]
        %s573 = scalar_lea.vmem %s539, 32
        %v574 = vld [vmem:[%s573] ss:$2 sm:$0xff]
        %s575 = scalar_lea.vmem %s539, 48
        %v576 = vld [vmem:[%s575] ss:$2 sm:$0xff]
        %s577 = scalar_lea.vmem %s539, 64
        %v578 = vld [vmem:[%s577] ss:$2 sm:$0xff]
        %s579 = scalar_lea.vmem %s539, 80
        %v580 = vld [vmem:[%s579] ss:$2 sm:$0xff]
        %s581 = scalar_lea.vmem %s539, 96
        %v582 = vld [vmem:[%s581] ss:$2 sm:$0xff]
        %s583 = scalar_lea.vmem %s539, 1
        %v584 = vld [vmem:[%s583] ss:$2 sm:$0xff]
        %s585 = scalar_lea.vmem %s539, 17
        %v586 = vld [vmem:[%s585] ss:$2 sm:$0xff]
        %s587 = scalar_lea.vmem %s539, 33
        %v588 = vld [vmem:[%s587] ss:$2 sm:$0xff]
        %s589 = scalar_lea.vmem %s539, 49
        %v590 = vld [vmem:[%s589] ss:$2 sm:$0xff]
        %s591 = scalar_lea.vmem %s539, 65
        %v592 = vld [vmem:[%s591] ss:$2 sm:$0xff]
        %s593 = scalar_lea.vmem %s539, 81
        %v594 = vld [vmem:[%s593] ss:$2 sm:$0xff]
        %s595 = scalar_lea.vmem %s539, 97
        %v596 = vld [vmem:[%s595] ss:$2 sm:$0xff]
        %v597 = vld [vmem:[#allocation6] sm:$0xff]
        %v598 = vld [vmem:[#allocation6 + $0x8] sm:$0xff]
        %v599 = vld [vmem:[#allocation6 + $0x10] sm:$0xff]
        %v600 = vld [vmem:[#allocation6 + $0x18] sm:$0xff]
        %s601 = scalar_lea.vmem [#allocation6], 32
        %v602 = vld [vmem:[%s601] sm:$0xff]
        %v603 = vld [vmem:[%s601 + $0x8] sm:$0xff]
        %v604 = vld [vmem:[%s601 + $0x10] sm:$0xff]
        %v605 = vld [vmem:[%s601 + $0x18] sm:$0xff]
        %vm606 = vcmask 261120
        %v608 = vsel %vm606, %v584, 0
        %v611 = vsel %vm606, %v586, 0
        %v614 = vsel %vm606, %v588, 0
        %v617 = vsel %vm606, %v590, 0
        %v620 = vsel %vm606, %v592, 0
        %v623 = vsel %vm606, %v594, 0
        %v626 = vsel %vm606, %v596, 0
        %628 = vmatpush.msra.mxu0 0.0
        %629 = vmatpush.msra.mxu0 0.0
        %630 = vmatpush.msra.mxu0 0.0
        %631 = vmatpush.msra.mxu0 0.0
        %632 = vmatpush.msra.mxu0 0.0
        %633 = vmatpush.msra.mxu0 0.0
        %634 = vmatpush.msra.mxu0 0.0
        %635 = vmatpush.msra.mxu0 0.0
        %636 = vmatpush.msra.mxu0 0.0
        %637 = vmatpush.msra.mxu0 0.0
        %638 = vmatpush.msra.mxu0 0.0
        %639 = vmatpush.msra.mxu0 0.0
        %640 = vmatpush.msra.mxu0 %v605
        %641 = vmatpush.msra.mxu0 %v604
        %642 = vmatpush.msra.mxu0 %v603
        %643 = vmatpush.msra.mxu0 %v602
        %644 = vmatmul.f32.gmra.mxu0 %v608
        %v645 = vpop.f32.mrf.mxu0
        %v646 = vadd.f32 0.0, %v645
        %647 = vmatmul.f32.gmra.mxu0 %v611
        %v648 = vpop.f32.mrf.mxu0
        %v649 = vadd.f32 0.0, %v648
        %650 = vmatmul.f32.gmra.mxu0 %v614
        %v651 = vpop.f32.mrf.mxu0
        %v652 = vadd.f32 0.0, %v651
        %653 = vmatmul.f32.gmra.mxu0 %v617
        %v654 = vpop.f32.mrf.mxu0
        %v655 = vadd.f32 0.0, %v654
        %656 = vmatmul.f32.gmra.mxu0 %v620
        %v657 = vpop.f32.mrf.mxu0
        %v658 = vadd.f32 0.0, %v657
        %659 = vmatmul.f32.gmra.mxu0 %v623
        %v660 = vpop.f32.mrf.mxu0
        %v661 = vadd.f32 0.0, %v660
        %662 = vmatmul.f32.gmra.mxu0 %v626
        %v663 = vpop.f32.mrf.mxu0
        %v664 = vadd.f32 0.0, %v663
        %665 = vdwg.mxu0
        %v667 = vsel %vm606, %v570, 0
        %v670 = vsel %vm606, %v572, 0
        %v673 = vsel %vm606, %v574, 0
        %v676 = vsel %vm606, %v576, 0
        %v679 = vsel %vm606, %v578, 0
        %v682 = vsel %vm606, %v580, 0
        %v685 = vsel %vm606, %v582, 0
        %687 = vmatpush.msra.mxu0 0.0
        %688 = vmatpush.msra.mxu0 0.0
        %689 = vmatpush.msra.mxu0 0.0
        %690 = vmatpush.msra.mxu0 0.0
        %691 = vmatpush.msra.mxu0 0.0
        %692 = vmatpush.msra.mxu0 0.0
        %693 = vmatpush.msra.mxu0 0.0
        %694 = vmatpush.msra.mxu0 0.0
        %695 = vmatpush.msra.mxu0 0.0
        %696 = vmatpush.msra.mxu0 0.0
        %697 = vmatpush.msra.mxu0 0.0
        %698 = vmatpush.msra.mxu0 0.0
        %699 = vmatpush.msra.mxu0 %v600
        %700 = vmatpush.msra.mxu0 %v599
        %701 = vmatpush.msra.mxu0 %v598
        %702 = vmatpush.msra.mxu0 %v597
        %703 = vmatmul.f32.gmra.mxu0 %v667
        %v704 = vpop.f32.mrf.mxu0
        %v705 = vadd.f32 %v646, %v704
        %706 = vmatmul.f32.gmra.mxu0 %v670
        %v707 = vpop.f32.mrf.mxu0
        %v708 = vadd.f32 %v649, %v707
        %709 = vmatmul.f32.gmra.mxu0 %v673
        %v710 = vpop.f32.mrf.mxu0
        %v711 = vadd.f32 %v652, %v710
        %712 = vmatmul.f32.gmra.mxu0 %v676
        %v713 = vpop.f32.mrf.mxu0
        %v714 = vadd.f32 %v655, %v713
        %715 = vmatmul.f32.gmra.mxu0 %v679
        %v716 = vpop.f32.mrf.mxu0
        %v717 = vadd.f32 %v658, %v716
        %718 = vmatmul.f32.gmra.mxu0 %v682
        %v719 = vpop.f32.mrf.mxu0
        %v720 = vadd.f32 %v661, %v719
        %721 = vmatmul.f32.gmra.mxu0 %v685
        %v722 = vpop.f32.mrf.mxu0
        %v723 = vadd.f32 %v664, %v722
        %724 = vdwg.mxu0
        %vm725 = vcmask 1046528
        %v726 = vrot.slane %v570, 1
        %v727 = vrot.slane %v572, 1
        %v728 = vsel %vm725, %v726, %v727
        %v729 = vrot.slane %v574, 1
        %v730 = vsel %vm725, %v727, %v729
        %v731 = vrot.slane %v576, 1
        %v732 = vsel %vm725, %v729, %v731
        %v733 = vrot.slane %v578, 1
        %v734 = vsel %vm725, %v731, %v733
        %v735 = vrot.slane %v580, 1
        %v736 = vsel %vm725, %v733, %v735
        %v737 = vrot.slane %v582, 1
        %v738 = vsel %vm725, %v735, %v737
        %v739 = vsel %vm606, %v728, 0
        %v741 = vsel %vm606, %v730, 0
        %v743 = vsel %vm606, %v732, 0
        %v745 = vsel %vm606, %v734, 0
        %v747 = vsel %vm606, %v736, 0
        %v749 = vsel %vm606, %v738, 0
        %v751 = vsel %vm606, %v737, 0
        %753 = vmatpush.msra.mxu0 0.0
        %754 = vmatpush.msra.mxu0 0.0
        %755 = vmatpush.msra.mxu0 0.0
        %756 = vmatpush.msra.mxu0 0.0
        %757 = vmatpush.msra.mxu0 0.0
        %758 = vmatpush.msra.mxu0 0.0
        %759 = vmatpush.msra.mxu0 0.0
        %760 = vmatpush.msra.mxu0 0.0
        %761 = vmatpush.msra.mxu0 0.0
        %762 = vmatpush.msra.mxu0 0.0
        %763 = vmatpush.msra.mxu0 0.0
        %764 = vmatpush.msra.mxu0 0.0
        %765 = vmatpush.msra.mxu0 %v605
        %766 = vmatpush.msra.mxu0 %v604
        %767 = vmatpush.msra.mxu0 %v603
        %768 = vmatpush.msra.mxu0 %v602
        %769 = vmatmul.f32.gmra.mxu0 %v739
        %v770 = vpop.f32.mrf.mxu0
        %v771 = vadd.f32 0.0, %v770
        %772 = vmatmul.f32.gmra.mxu0 %v741
        %v773 = vpop.f32.mrf.mxu0
        %v774 = vadd.f32 0.0, %v773
        %775 = vmatmul.f32.gmra.mxu0 %v743
        %v776 = vpop.f32.mrf.mxu0
        %v777 = vadd.f32 0.0, %v776
        %778 = vmatmul.f32.gmra.mxu0 %v745
        %v779 = vpop.f32.mrf.mxu0
        %v780 = vadd.f32 0.0, %v779
        %781 = vmatmul.f32.gmra.mxu0 %v747
        %v782 = vpop.f32.mrf.mxu0
        %v783 = vadd.f32 0.0, %v782
        %784 = vmatmul.f32.gmra.mxu0 %v749
        %v785 = vpop.f32.mrf.mxu0
        %v786 = vadd.f32 0.0, %v785
        %787 = vmatmul.f32.gmra.mxu0 %v751
        %v788 = vpop.f32.mrf.mxu0
        %v789 = vadd.f32 0.0, %v788
        %790 = vdwg.mxu0
        %791 = vmatpush.msra.mxu0 0.0
        %792 = vmatpush.msra.mxu0 0.0
        %793 = vmatpush.msra.mxu0 0.0
        %794 = vmatpush.msra.mxu0 0.0
        %795 = vmatpush.msra.mxu0 0.0
        %796 = vmatpush.msra.mxu0 0.0
        %797 = vmatpush.msra.mxu0 0.0
        %798 = vmatpush.msra.mxu0 0.0
        %799 = vmatpush.msra.mxu0 0.0
        %800 = vmatpush.msra.mxu0 0.0
        %801 = vmatpush.msra.mxu0 0.0
        %802 = vmatpush.msra.mxu0 0.0
        %803 = vmatpush.msra.mxu0 %v600
        %804 = vmatpush.msra.mxu0 %v599
        %805 = vmatpush.msra.mxu0 %v598
        %806 = vmatpush.msra.mxu0 %v597
        %807 = vmatmul.f32.gmra.mxu0 %v608
        %v808 = vpop.f32.mrf.mxu0
        %v809 = vadd.f32 %v771, %v808
        %810 = vmatmul.f32.gmra.mxu0 %v611
        %v811 = vpop.f32.mrf.mxu0
        %v812 = vadd.f32 %v774, %v811
        %813 = vmatmul.f32.gmra.mxu0 %v614
        %v814 = vpop.f32.mrf.mxu0
        %v815 = vadd.f32 %v777, %v814
        %816 = vmatmul.f32.gmra.mxu0 %v617
        %v817 = vpop.f32.mrf.mxu0
        %v818 = vadd.f32 %v780, %v817
        %819 = vmatmul.f32.gmra.mxu0 %v620
        %v820 = vpop.f32.mrf.mxu0
        %v821 = vadd.f32 %v783, %v820
        %822 = vmatmul.f32.gmra.mxu0 %v623
        %v823 = vpop.f32.mrf.mxu0
        %v824 = vadd.f32 %v786, %v823
        %825 = vmatmul.f32.gmra.mxu0 %v626
        %v826 = vpop.f32.mrf.mxu0
        %v827 = vadd.f32 %v789, %v826
        %828 = vdwg.mxu0
        %s829 = scalar_lea.vmem [#allocation6], 64
        %v830 = vld [vmem:[%s829] sm:$0xff]
        %v831 = vld [vmem:[%s829 + $0x8] sm:$0xff]
        %v832 = vld [vmem:[%s829 + $0x10] sm:$0xff]
        %v833 = vld [vmem:[%s829 + $0x18] sm:$0xff]
        %834 = vmatpush.msra.mxu0 0.0
        %835 = vmatpush.msra.mxu0 0.0
        %836 = vmatpush.msra.mxu0 0.0
        %837 = vmatpush.msra.mxu0 0.0
        %838 = vmatpush.msra.mxu0 0.0
        %839 = vmatpush.msra.mxu0 0.0
        %840 = vmatpush.msra.mxu0 0.0
        %841 = vmatpush.msra.mxu0 0.0
        %842 = vmatpush.msra.mxu0 0.0
        %843 = vmatpush.msra.mxu0 0.0
        %844 = vmatpush.msra.mxu0 0.0
        %845 = vmatpush.msra.mxu0 0.0
        %846 = vmatpush.msra.mxu0 %v833
        %847 = vmatpush.msra.mxu0 %v832
        %848 = vmatpush.msra.mxu0 %v831
        %849 = vmatpush.msra.mxu0 %v830
        %850 = vmatmul.f32.gmra.mxu0 %v739
        %v851 = vpop.f32.mrf.mxu0
        %v852 = vadd.f32 0.0, %v851
        %853 = vmatmul.f32.gmra.mxu0 %v741
        %v854 = vpop.f32.mrf.mxu0
        %v855 = vadd.f32 0.0, %v854
        %856 = vmatmul.f32.gmra.mxu0 %v743
        %v857 = vpop.f32.mrf.mxu0
        %v858 = vadd.f32 0.0, %v857
        %859 = vmatmul.f32.gmra.mxu0 %v745
        %v860 = vpop.f32.mrf.mxu0
        %v861 = vadd.f32 0.0, %v860
        %862 = vmatmul.f32.gmra.mxu0 %v747
        %v863 = vpop.f32.mrf.mxu0
        %v864 = vadd.f32 0.0, %v863
        %865 = vmatmul.f32.gmra.mxu0 %v749
        %v866 = vpop.f32.mrf.mxu0
        %v867 = vadd.f32 0.0, %v866
        %868 = vmatmul.f32.gmra.mxu0 %v751
        %v869 = vpop.f32.mrf.mxu0
        %v870 = vadd.f32 0.0, %v869
        %871 = vdwg.mxu0
        %v872 = vadd.f32 %v705, %v852
        %v873 = vadd.f32 %v708, %v855
        %v874 = vadd.f32 %v711, %v858
        %v875 = vadd.f32 %v714, %v861
        %v876 = vadd.f32 %v717, %v864
        %v877 = vadd.f32 %v720, %v867
        %v878 = vadd.f32 %v723, %v870
        %v879 = vrot.slane %v584, 1
        %v880 = vrot.slane %v586, 1
        %v881 = vsel %vm725, %v879, %v880
        %v882 = vrot.slane %v588, 1
        %v883 = vsel %vm725, %v880, %v882
        %v884 = vrot.slane %v590, 1
        %v885 = vsel %vm725, %v882, %v884
        %v886 = vrot.slane %v592, 1
        %v887 = vsel %vm725, %v884, %v886
        %v888 = vrot.slane %v594, 1
        %v889 = vsel %vm725, %v886, %v888
        %v890 = vrot.slane %v596, 1
        %v891 = vsel %vm725, %v888, %v890
        %v892 = vsel %vm606, %v881, 0
        %v894 = vsel %vm606, %v883, 0
        %v896 = vsel %vm606, %v885, 0
        %v898 = vsel %vm606, %v887, 0
        %v900 = vsel %vm606, %v889, 0
        %v902 = vsel %vm606, %v891, 0
        %v904 = vsel %vm606, %v890, 0
        %906 = vmatpush.msra.mxu0 0.0
        %907 = vmatpush.msra.mxu0 0.0
        %908 = vmatpush.msra.mxu0 0.0
        %909 = vmatpush.msra.mxu0 0.0
        %910 = vmatpush.msra.mxu0 0.0
        %911 = vmatpush.msra.mxu0 0.0
        %912 = vmatpush.msra.mxu0 0.0
        %913 = vmatpush.msra.mxu0 0.0
        %914 = vmatpush.msra.mxu0 0.0
        %915 = vmatpush.msra.mxu0 0.0
        %916 = vmatpush.msra.mxu0 0.0
        %917 = vmatpush.msra.mxu0 0.0
        %918 = vmatpush.msra.mxu0 %v833
        %919 = vmatpush.msra.mxu0 %v832
        %920 = vmatpush.msra.mxu0 %v831
        %921 = vmatpush.msra.mxu0 %v830
        %922 = vmatmul.f32.gmra.mxu0 %v892
        %v923 = vpop.f32.mrf.mxu0
        %v924 = vadd.f32 0.0, %v923
        %925 = vmatmul.f32.gmra.mxu0 %v894
        %v926 = vpop.f32.mrf.mxu0
        %v927 = vadd.f32 0.0, %v926
        %928 = vmatmul.f32.gmra.mxu0 %v896
        %v929 = vpop.f32.mrf.mxu0
        %v930 = vadd.f32 0.0, %v929
        %931 = vmatmul.f32.gmra.mxu0 %v898
        %v932 = vpop.f32.mrf.mxu0
        %v933 = vadd.f32 0.0, %v932
        %934 = vmatmul.f32.gmra.mxu0 %v900
        %v935 = vpop.f32.mrf.mxu0
        %v936 = vadd.f32 0.0, %v935
        %937 = vmatmul.f32.gmra.mxu0 %v902
        %v938 = vpop.f32.mrf.mxu0
        %v939 = vadd.f32 0.0, %v938
        %940 = vmatmul.f32.gmra.mxu0 %v904
        %v941 = vpop.f32.mrf.mxu0
        %v942 = vadd.f32 0.0, %v941
        %943 = vdwg.mxu0
        %v944 = vadd.f32 %v809, %v924
        %v945 = vadd.f32 %v812, %v927
        %v946 = vadd.f32 %v815, %v930
        %v947 = vadd.f32 %v818, %v933
        %v948 = vadd.f32 %v821, %v936
        %v949 = vadd.f32 %v824, %v939
        %v950 = vadd.f32 %v827, %v942
        %s951 = scalar_lea.vmem [#allocation6], 96
        %v952 = vld [vmem:[%s951] sm:$0xff]
        %v953 = vld [vmem:[%s951 + $0x8] sm:$0xff]
        %v954 = vld [vmem:[%s951 + $0x10] sm:$0xff]
        %v955 = vld [vmem:[%s951 + $0x18] sm:$0xff]
        %956 = vmatpush.msra.mxu0 0.0
        %957 = vmatpush.msra.mxu0 0.0
        %958 = vmatpush.msra.mxu0 0.0
        %959 = vmatpush.msra.mxu0 0.0
        %960 = vmatpush.msra.mxu0 0.0
        %961 = vmatpush.msra.mxu0 0.0
        %962 = vmatpush.msra.mxu0 0.0
        %963 = vmatpush.msra.mxu0 0.0
        %964 = vmatpush.msra.mxu0 0.0
        %965 = vmatpush.msra.mxu0 0.0
        %966 = vmatpush.msra.mxu0 0.0
        %967 = vmatpush.msra.mxu0 0.0
        %968 = vmatpush.msra.mxu0 %v955
        %969 = vmatpush.msra.mxu0 %v954
        %970 = vmatpush.msra.mxu0 %v953
        %971 = vmatpush.msra.mxu0 %v952
        %972 = vmatmul.f32.gmra.mxu0 %v892
        %v973 = vpop.f32.mrf.mxu0
        %v974 = vadd.f32 0.0, %v973
        %975 = vmatmul.f32.gmra.mxu0 %v894
        %v976 = vpop.f32.mrf.mxu0
        %v977 = vadd.f32 0.0, %v976
        %978 = vmatmul.f32.gmra.mxu0 %v896
        %v979 = vpop.f32.mrf.mxu0
        %v980 = vadd.f32 0.0, %v979
        %981 = vmatmul.f32.gmra.mxu0 %v898
        %v982 = vpop.f32.mrf.mxu0
        %v983 = vadd.f32 0.0, %v982
        %984 = vmatmul.f32.gmra.mxu0 %v900
        %v985 = vpop.f32.mrf.mxu0
        %v986 = vadd.f32 0.0, %v985
        %987 = vmatmul.f32.gmra.mxu0 %v902
        %v988 = vpop.f32.mrf.mxu0
        %v989 = vadd.f32 0.0, %v988
        %990 = vmatmul.f32.gmra.mxu0 %v904
        %v991 = vpop.f32.mrf.mxu0
        %v992 = vadd.f32 0.0, %v991
        %993 = vdwg.mxu0
        %v994 = vadd.f32 %v872, %v974
        %v995 = vadd.f32 %v873, %v977
        %v996 = vadd.f32 %v874, %v980
        %v997 = vadd.f32 %v875, %v983
        %v998 = vadd.f32 %v876, %v986
        %v999 = vadd.f32 %v877, %v989
        %v1000 = vadd.f32 %v878, %v992
        %vm1001 = vcmask 1045504
        %v1002 = vrot.slane %v570, 2
        %v1003 = vrot.slane %v572, 2
        %v1004 = vsel %vm1001, %v1002, %v1003
        %v1005 = vrot.slane %v574, 2
        %v1006 = vsel %vm1001, %v1003, %v1005
        %v1007 = vrot.slane %v576, 2
        %v1008 = vsel %vm1001, %v1005, %v1007
        %v1009 = vrot.slane %v578, 2
        %v1010 = vsel %vm1001, %v1007, %v1009
        %v1011 = vrot.slane %v580, 2
        %v1012 = vsel %vm1001, %v1009, %v1011
        %v1013 = vrot.slane %v582, 2
        %v1014 = vsel %vm1001, %v1011, %v1013
        %v1015 = vsel %vm606, %v1004, 0
        %v1017 = vsel %vm606, %v1006, 0
        %v1019 = vsel %vm606, %v1008, 0
        %v1021 = vsel %vm606, %v1010, 0
        %v1023 = vsel %vm606, %v1012, 0
        %v1025 = vsel %vm606, %v1014, 0
        %v1027 = vsel %vm606, %v1013, 0
        %1029 = vmatpush.msra.mxu0 0.0
        %1030 = vmatpush.msra.mxu0 0.0
        %1031 = vmatpush.msra.mxu0 0.0
        %1032 = vmatpush.msra.mxu0 0.0
        %1033 = vmatpush.msra.mxu0 0.0
        %1034 = vmatpush.msra.mxu0 0.0
        %1035 = vmatpush.msra.mxu0 0.0
        %1036 = vmatpush.msra.mxu0 0.0
        %1037 = vmatpush.msra.mxu0 0.0
        %1038 = vmatpush.msra.mxu0 0.0
        %1039 = vmatpush.msra.mxu0 0.0
        %1040 = vmatpush.msra.mxu0 0.0
        %1041 = vmatpush.msra.mxu0 %v955
        %1042 = vmatpush.msra.mxu0 %v954
        %1043 = vmatpush.msra.mxu0 %v953
        %1044 = vmatpush.msra.mxu0 %v952
        %1045 = vmatmul.f32.gmra.mxu0 %v1015
        %v1046 = vpop.f32.mrf.mxu0
        %v1047 = vadd.f32 0.0, %v1046
        %1048 = vmatmul.f32.gmra.mxu0 %v1017
        %v1049 = vpop.f32.mrf.mxu0
        %v1050 = vadd.f32 0.0, %v1049
        %1051 = vmatmul.f32.gmra.mxu0 %v1019
        %v1052 = vpop.f32.mrf.mxu0
        %v1053 = vadd.f32 0.0, %v1052
        %1054 = vmatmul.f32.gmra.mxu0 %v1021
        %v1055 = vpop.f32.mrf.mxu0
        %v1056 = vadd.f32 0.0, %v1055
        %1057 = vmatmul.f32.gmra.mxu0 %v1023
        %v1058 = vpop.f32.mrf.mxu0
        %v1059 = vadd.f32 0.0, %v1058
        %1060 = vmatmul.f32.gmra.mxu0 %v1025
        %v1061 = vpop.f32.mrf.mxu0
        %v1062 = vadd.f32 0.0, %v1061
        %1063 = vmatmul.f32.gmra.mxu0 %v1027
        %v1064 = vpop.f32.mrf.mxu0
        %v1065 = vadd.f32 0.0, %v1064
        %1066 = vdwg.mxu0
        %v1067 = vadd.f32 %v944, %v1047
        %v1068 = vadd.f32 %v945, %v1050
        %v1069 = vadd.f32 %v946, %v1053
        %v1070 = vadd.f32 %v947, %v1056
        %v1071 = vadd.f32 %v948, %v1059
        %v1072 = vadd.f32 %v949, %v1062
        %v1073 = vadd.f32 %v950, %v1065
        %s1074 = scalar_lea.vmem [#allocation6], 128
        %v1075 = vld [vmem:[%s1074] sm:$0xff]
        %v1076 = vld [vmem:[%s1074 + $0x8] sm:$0xff]
        %v1077 = vld [vmem:[%s1074 + $0x10] sm:$0xff]
        %v1078 = vld [vmem:[%s1074 + $0x18] sm:$0xff]
        %1079 = vmatpush.msra.mxu0 0.0
        %1080 = vmatpush.msra.mxu0 0.0
        %1081 = vmatpush.msra.mxu0 0.0
        %1082 = vmatpush.msra.mxu0 0.0
        %1083 = vmatpush.msra.mxu0 0.0
        %1084 = vmatpush.msra.mxu0 0.0
        %1085 = vmatpush.msra.mxu0 0.0
        %1086 = vmatpush.msra.mxu0 0.0
        %1087 = vmatpush.msra.mxu0 0.0
        %1088 = vmatpush.msra.mxu0 0.0
        %1089 = vmatpush.msra.mxu0 0.0
        %1090 = vmatpush.msra.mxu0 0.0
        %1091 = vmatpush.msra.mxu0 %v1078
        %1092 = vmatpush.msra.mxu0 %v1077
        %1093 = vmatpush.msra.mxu0 %v1076
        %1094 = vmatpush.msra.mxu0 %v1075
        %1095 = vmatmul.f32.gmra.mxu0 %v1015
        %v1096 = vpop.f32.mrf.mxu0
        %v1097 = vadd.f32 0.0, %v1096
        %1098 = vmatmul.f32.gmra.mxu0 %v1017
        %v1099 = vpop.f32.mrf.mxu0
        %v1100 = vadd.f32 0.0, %v1099
        %1101 = vmatmul.f32.gmra.mxu0 %v1019
        %v1102 = vpop.f32.mrf.mxu0
        %v1103 = vadd.f32 0.0, %v1102
        %1104 = vmatmul.f32.gmra.mxu0 %v1021
        %v1105 = vpop.f32.mrf.mxu0
        %v1106 = vadd.f32 0.0, %v1105
        %1107 = vmatmul.f32.gmra.mxu0 %v1023
        %v1108 = vpop.f32.mrf.mxu0
        %v1109 = vadd.f32 0.0, %v1108
        %1110 = vmatmul.f32.gmra.mxu0 %v1025
        %v1111 = vpop.f32.mrf.mxu0
        %v1112 = vadd.f32 0.0, %v1111
        %1113 = vmatmul.f32.gmra.mxu0 %v1027
        %v1114 = vpop.f32.mrf.mxu0
        %v1115 = vadd.f32 0.0, %v1114
        %1116 = vdwg.mxu0
        %v1117 = vadd.f32 %v994, %v1097
        %v1118 = vadd.f32 %v995, %v1100
        %v1119 = vadd.f32 %v996, %v1103
        %v1120 = vadd.f32 %v997, %v1106
        %v1121 = vadd.f32 %v998, %v1109
        %v1122 = vadd.f32 %v999, %v1112
        %v1123 = vadd.f32 %v1000, %v1115
        %v1124 = vrot.slane %v584, 2
        %v1125 = vrot.slane %v586, 2
        %v1126 = vsel %vm1001, %v1124, %v1125
        %v1127 = vrot.slane %v588, 2
        %v1128 = vsel %vm1001, %v1125, %v1127
        %v1129 = vrot.slane %v590, 2
        %v1130 = vsel %vm1001, %v1127, %v1129
        %v1131 = vrot.slane %v592, 2
        %v1132 = vsel %vm1001, %v1129, %v1131
        %v1133 = vrot.slane %v594, 2
        %v1134 = vsel %vm1001, %v1131, %v1133
        %v1135 = vrot.slane %v596, 2
        %v1136 = vsel %vm1001, %v1133, %v1135
        %v1137 = vsel %vm606, %v1126, 0
        %v1139 = vsel %vm606, %v1128, 0
        %v1141 = vsel %vm606, %v1130, 0
        %v1143 = vsel %vm606, %v1132, 0
        %v1145 = vsel %vm606, %v1134, 0
        %v1147 = vsel %vm606, %v1136, 0
        %v1149 = vsel %vm606, %v1135, 0
        %1151 = vmatpush.msra.mxu0 0.0
        %1152 = vmatpush.msra.mxu0 0.0
        %1153 = vmatpush.msra.mxu0 0.0
        %1154 = vmatpush.msra.mxu0 0.0
        %1155 = vmatpush.msra.mxu0 0.0
        %1156 = vmatpush.msra.mxu0 0.0
        %1157 = vmatpush.msra.mxu0 0.0
        %1158 = vmatpush.msra.mxu0 0.0
        %1159 = vmatpush.msra.mxu0 0.0
        %1160 = vmatpush.msra.mxu0 0.0
        %1161 = vmatpush.msra.mxu0 0.0
        %1162 = vmatpush.msra.mxu0 0.0
        %1163 = vmatpush.msra.mxu0 %v1078
        %1164 = vmatpush.msra.mxu0 %v1077
        %1165 = vmatpush.msra.mxu0 %v1076
        %1166 = vmatpush.msra.mxu0 %v1075
        %1167 = vmatmul.f32.gmra.mxu0 %v1137
        %v1168 = vpop.f32.mrf.mxu0
        %v1169 = vadd.f32 0.0, %v1168
        %1170 = vmatmul.f32.gmra.mxu0 %v1139
        %v1171 = vpop.f32.mrf.mxu0
        %v1172 = vadd.f32 0.0, %v1171
        %1173 = vmatmul.f32.gmra.mxu0 %v1141
        %v1174 = vpop.f32.mrf.mxu0
        %v1175 = vadd.f32 0.0, %v1174
        %1176 = vmatmul.f32.gmra.mxu0 %v1143
        %v1177 = vpop.f32.mrf.mxu0
        %v1178 = vadd.f32 0.0, %v1177
        %1179 = vmatmul.f32.gmra.mxu0 %v1145
        %v1180 = vpop.f32.mrf.mxu0
        %v1181 = vadd.f32 0.0, %v1180
        %1182 = vmatmul.f32.gmra.mxu0 %v1147
        %v1183 = vpop.f32.mrf.mxu0
        %v1184 = vadd.f32 0.0, %v1183
        %1185 = vmatmul.f32.gmra.mxu0 %v1149
        %v1186 = vpop.f32.mrf.mxu0
        %v1187 = vadd.f32 0.0, %v1186
        %1188 = vdwg.mxu0
        %v1189 = vadd.f32 %v1067, %v1169
        %v1190 = vadd.f32 %v1068, %v1172
        %v1191 = vadd.f32 %v1069, %v1175
        %v1192 = vadd.f32 %v1070, %v1178
        %v1193 = vadd.f32 %v1071, %v1181
        %v1194 = vadd.f32 %v1072, %v1184
        %v1195 = vadd.f32 %v1073, %v1187
        %v1196 = vmax.f32 %v1117, %v1189
        %v1197 = vmax.f32 %v1118, %v1190
        %v1198 = vmax.f32 %v1119, %v1191
        %v1199 = vmax.f32 %v1120, %v1192
        %v1200 = vmax.f32 %v1121, %v1193
        %v1201 = vmax.f32 %v1122, %v1194
        %v1202 = vmax.f32 %v1123, %v1195
        %v1204 = vperm.slane %v569, 0
        %v1206 = vadd.f32 %v1196, %v1204
        %v1207 = vadd.f32 %v1197, %v1204
        %v1208 = vadd.f32 %v1198, %v1204
        %v1209 = vadd.f32 %v1199, %v1204
        %v1210 = vadd.f32 %v1200, %v1204
        %v1211 = vadd.f32 %v1201, %v1204
        %v1212 = vadd.f32 %v1202, %v1204
        %vm1213 = vcmp.ge.f32.partialorder %v1206, 0.0
        %vm1214 = vcmp.ge.f32.partialorder %v1207, 0.0
        %vm1215 = vcmp.ge.f32.partialorder %v1208, 0.0
        %vm1216 = vcmp.ge.f32.partialorder %v1209, 0.0
        %vm1217 = vcmp.ge.f32.partialorder %v1210, 0.0
        %vm1218 = vcmp.ge.f32.partialorder %v1211, 0.0
        %vm1219 = vcmp.ge.f32.partialorder %v1212, 0.0
        %v1220 = vmul.f32 %v1206, 0.01
        %v1221 = vmul.f32 %v1207, 0.01
        %v1222 = vmul.f32 %v1208, 0.01
        %v1223 = vmul.f32 %v1209, 0.01
        %v1224 = vmul.f32 %v1210, 0.01
        %v1225 = vmul.f32 %v1211, 0.01
        %v1226 = vmul.f32 %v1212, 0.01
        %v1227 = vsel %vm1213, %v1206, %v1220
        %v1228 = vsel %vm1214, %v1207, %v1221
        %v1229 = vsel %vm1215, %v1208, %v1222
        %v1230 = vsel %vm1216, %v1209, %v1223
        %v1231 = vsel %vm1217, %v1210, %v1224
        %v1232 = vsel %vm1218, %v1211, %v1225
        %v1233 = vsel %vm1219, %v1212, %v1226
        %1234 = vst.msk [vmem:[#allocation2 + $0x2] sm:$0xff] %vm606, %v1227
        %1235 = vst.msk [vmem:[#allocation2 + $0xa] sm:$0xff] %vm606, %v1228
        %1236 = vst.msk [vmem:[#allocation2 + $0x12] sm:$0xff] %vm606, %v1229
        %1237 = vst.msk [vmem:[#allocation2 + $0x1a] sm:$0x3] %vm548, %v1230
        %vm1238 = vcmask 261124
        %1239 = vst.msk [vmem:[#allocation2 + $0x1e] sm:$0xf0] %vm1238, %v1230
        %1240 = vst.msk [vmem:[#allocation2 + $0x26] sm:$0xff] %vm606, %v1231
        %1241 = vst.msk [vmem:[#allocation2 + $0x2e] sm:$0xff] %vm606, %v1232
        %vm1242 = vcmask 259072
        %1243 = vst.msk [vmem:[#allocation2 + $0x36] sm:$0x3f] %vm1242, %v1233
        %v1244 = vld [vmem:[#allocation16] sm:$0x1]
        %v1245 = vld [vmem:[#allocation2] ss:$2 sm:$0xff]
        %s1246 = scalar_lea.vmem [#allocation2], 16
        %v1247 = vld [vmem:[%s1246] ss:$2 sm:$0xff]
        %s1248 = scalar_lea.vmem [#allocation2], 32
        %v1249 = vld [vmem:[%s1248] ss:$2 sm:$0xff]
        %s1250 = scalar_lea.vmem [#allocation2], 48
        %v1251 = vld [vmem:[%s1250] ss:$2 sm:$0x7f]
        %s1252 = scalar_lea.vmem [#allocation2], 1
        %v1253 = vld [vmem:[%s1252] ss:$2 sm:$0xff]
        %s1254 = scalar_lea.vmem [#allocation2], 17
        %v1255 = vld [vmem:[%s1254] ss:$2 sm:$0xff]
        %s1256 = scalar_lea.vmem [#allocation2], 33
        %v1257 = vld [vmem:[%s1256] ss:$2 sm:$0xff]
        %s1258 = scalar_lea.vmem [#allocation2], 49
        %v1259 = vld [vmem:[%s1258] ss:$2 sm:$0x7f]
        %v1260 = vld [vmem:[#allocation8] sm:$0xff]
        %v1261 = vld [vmem:[#allocation8 + $0x8] sm:$0xff]
        %v1262 = vld [vmem:[#allocation8 + $0x10] sm:$0xff]
        %v1263 = vld [vmem:[#allocation8 + $0x18] sm:$0xff]
        %s1264 = scalar_lea.vmem [#allocation8], 32
        %v1265 = vld [vmem:[%s1264] sm:$0xff]
        %v1266 = vld [vmem:[%s1264 + $0x8] sm:$0xff]
        %v1267 = vld [vmem:[%s1264 + $0x10] sm:$0xff]
        %v1268 = vld [vmem:[%s1264 + $0x18] sm:$0xff]
        %v1270 = vsel %vm606, %v1253, 0
        %v1273 = vsel %vm606, %v1255, 0
        %v1276 = vsel %vm606, %v1257, 0
        %v1279 = vsel %vm606, %v1259, 0
        %1281 = vmatpush.msra.mxu0 0.0
        %1282 = vmatpush.msra.mxu0 0.0
        %1283 = vmatpush.msra.mxu0 0.0
        %1284 = vmatpush.msra.mxu0 0.0
        %1285 = vmatpush.msra.mxu0 0.0
        %1286 = vmatpush.msra.mxu0 0.0
        %1287 = vmatpush.msra.mxu0 0.0
        %1288 = vmatpush.msra.mxu0 0.0
        %1289 = vmatpush.msra.mxu0 0.0
        %1290 = vmatpush.msra.mxu0 0.0
        %1291 = vmatpush.msra.mxu0 0.0
        %1292 = vmatpush.msra.mxu0 0.0
        %1293 = vmatpush.msra.mxu0 %v1268
        %1294 = vmatpush.msra.mxu0 %v1267
        %1295 = vmatpush.msra.mxu0 %v1266
        %1296 = vmatpush.msra.mxu0 %v1265
        %1297 = vmatmul.f32.gmra.mxu0 %v1270
        %v1298 = vpop.f32.mrf.mxu0
        %v1299 = vadd.f32 0.0, %v1298
        %1300 = vmatmul.f32.gmra.mxu0 %v1273
        %v1301 = vpop.f32.mrf.mxu0
        %v1302 = vadd.f32 0.0, %v1301
        %1303 = vmatmul.f32.gmra.mxu0 %v1276
        %v1304 = vpop.f32.mrf.mxu0
        %v1305 = vadd.f32 0.0, %v1304
        %1306 = vmatmul.f32.gmra.mxu0 %v1279
        %v1307 = vpop.f32.mrf.mxu0
        %v1308 = vadd.f32 0.0, %v1307
        %1309 = vdwg.mxu0
        %v1311 = vsel %vm606, %v1245, 0
        %v1314 = vsel %vm606, %v1247, 0
        %v1317 = vsel %vm606, %v1249, 0
        %v1320 = vsel %vm606, %v1251, 0
        %1322 = vmatpush.msra.mxu0 0.0
        %1323 = vmatpush.msra.mxu0 0.0
        %1324 = vmatpush.msra.mxu0 0.0
        %1325 = vmatpush.msra.mxu0 0.0
        %1326 = vmatpush.msra.mxu0 0.0
        %1327 = vmatpush.msra.mxu0 0.0
        %1328 = vmatpush.msra.mxu0 0.0
        %1329 = vmatpush.msra.mxu0 0.0
        %1330 = vmatpush.msra.mxu0 0.0
        %1331 = vmatpush.msra.mxu0 0.0
        %1332 = vmatpush.msra.mxu0 0.0
        %1333 = vmatpush.msra.mxu0 0.0
        %1334 = vmatpush.msra.mxu0 %v1263
        %1335 = vmatpush.msra.mxu0 %v1262
        %1336 = vmatpush.msra.mxu0 %v1261
        %1337 = vmatpush.msra.mxu0 %v1260
        %1338 = vmatmul.f32.gmra.mxu0 %v1311
        %v1339 = vpop.f32.mrf.mxu0
        %v1340 = vadd.f32 %v1299, %v1339
        %1341 = vmatmul.f32.gmra.mxu0 %v1314
        %v1342 = vpop.f32.mrf.mxu0
        %v1343 = vadd.f32 %v1302, %v1342
        %1344 = vmatmul.f32.gmra.mxu0 %v1317
        %v1345 = vpop.f32.mrf.mxu0
        %v1346 = vadd.f32 %v1305, %v1345
        %1347 = vmatmul.f32.gmra.mxu0 %v1320
        %v1348 = vpop.f32.mrf.mxu0
        %v1349 = vadd.f32 %v1308, %v1348
        %1350 = vdwg.mxu0
        %v1351 = vrot.slane %v1245, 1
        %v1352 = vrot.slane %v1247, 1
        %v1353 = vsel %vm725, %v1351, %v1352
        %v1354 = vrot.slane %v1249, 1
        %v1355 = vsel %vm725, %v1352, %v1354
        %v1356 = vrot.slane %v1251, 1
        %v1357 = vsel %vm725, %v1354, %v1356
        %v1358 = vsel %vm606, %v1353, 0
        %v1360 = vsel %vm606, %v1355, 0
        %v1362 = vsel %vm606, %v1357, 0
        %v1364 = vsel %vm606, %v1356, 0
        %1366 = vmatpush.msra.mxu0 0.0
        %1367 = vmatpush.msra.mxu0 0.0
        %1368 = vmatpush.msra.mxu0 0.0
        %1369 = vmatpush.msra.mxu0 0.0
        %1370 = vmatpush.msra.mxu0 0.0
        %1371 = vmatpush.msra.mxu0 0.0
        %1372 = vmatpush.msra.mxu0 0.0
        %1373 = vmatpush.msra.mxu0 0.0
        %1374 = vmatpush.msra.mxu0 0.0
        %1375 = vmatpush.msra.mxu0 0.0
        %1376 = vmatpush.msra.mxu0 0.0
        %1377 = vmatpush.msra.mxu0 0.0
        %1378 = vmatpush.msra.mxu0 %v1268
        %1379 = vmatpush.msra.mxu0 %v1267
        %1380 = vmatpush.msra.mxu0 %v1266
        %1381 = vmatpush.msra.mxu0 %v1265
        %1382 = vmatmul.f32.gmra.mxu0 %v1358
        %v1383 = vpop.f32.mrf.mxu0
        %v1384 = vadd.f32 0.0, %v1383
        %1385 = vmatmul.f32.gmra.mxu0 %v1360
        %v1386 = vpop.f32.mrf.mxu0
        %v1387 = vadd.f32 0.0, %v1386
        %1388 = vmatmul.f32.gmra.mxu0 %v1362
        %v1389 = vpop.f32.mrf.mxu0
        %v1390 = vadd.f32 0.0, %v1389
        %1391 = vmatmul.f32.gmra.mxu0 %v1364
        %v1392 = vpop.f32.mrf.mxu0
        %v1393 = vadd.f32 0.0, %v1392
        %1394 = vdwg.mxu0
        %1395 = vmatpush.msra.mxu0 0.0
        %1396 = vmatpush.msra.mxu0 0.0
        %1397 = vmatpush.msra.mxu0 0.0
        %1398 = vmatpush.msra.mxu0 0.0
        %1399 = vmatpush.msra.mxu0 0.0
        %1400 = vmatpush.msra.mxu0 0.0
        %1401 = vmatpush.msra.mxu0 0.0
        %1402 = vmatpush.msra.mxu0 0.0
        %1403 = vmatpush.msra.mxu0 0.0
        %1404 = vmatpush.msra.mxu0 0.0
        %1405 = vmatpush.msra.mxu0 0.0
        %1406 = vmatpush.msra.mxu0 0.0
        %1407 = vmatpush.msra.mxu0 %v1263
        %1408 = vmatpush.msra.mxu0 %v1262
        %1409 = vmatpush.msra.mxu0 %v1261
        %1410 = vmatpush.msra.mxu0 %v1260
        %1411 = vmatmul.f32.gmra.mxu0 %v1270
        %v1412 = vpop.f32.mrf.mxu0
        %v1413 = vadd.f32 %v1384, %v1412
        %1414 = vmatmul.f32.gmra.mxu0 %v1273
        %v1415 = vpop.f32.mrf.mxu0
        %v1416 = vadd.f32 %v1387, %v1415
        %1417 = vmatmul.f32.gmra.mxu0 %v1276
        %v1418 = vpop.f32.mrf.mxu0
        %v1419 = vadd.f32 %v1390, %v1418
        %1420 = vmatmul.f32.gmra.mxu0 %v1279
        %v1421 = vpop.f32.mrf.mxu0
        %v1422 = vadd.f32 %v1393, %v1421
        %1423 = vdwg.mxu0
        %s1424 = scalar_lea.vmem [#allocation8], 64
        %v1425 = vld [vmem:[%s1424] sm:$0xff]
        %v1426 = vld [vmem:[%s1424 + $0x8] sm:$0xff]
        %v1427 = vld [vmem:[%s1424 + $0x10] sm:$0xff]
        %v1428 = vld [vmem:[%s1424 + $0x18] sm:$0xff]
        %1429 = vmatpush.msra.mxu0 0.0
        %1430 = vmatpush.msra.mxu0 0.0
        %1431 = vmatpush.msra.mxu0 0.0
        %1432 = vmatpush.msra.mxu0 0.0
        %1433 = vmatpush.msra.mxu0 0.0
        %1434 = vmatpush.msra.mxu0 0.0
        %1435 = vmatpush.msra.mxu0 0.0
        %1436 = vmatpush.msra.mxu0 0.0
        %1437 = vmatpush.msra.mxu0 0.0
        %1438 = vmatpush.msra.mxu0 0.0
        %1439 = vmatpush.msra.mxu0 0.0
        %1440 = vmatpush.msra.mxu0 0.0
        %1441 = vmatpush.msra.mxu0 %v1428
        %1442 = vmatpush.msra.mxu0 %v1427
        %1443 = vmatpush.msra.mxu0 %v1426
        %1444 = vmatpush.msra.mxu0 %v1425
        %1445 = vmatmul.f32.gmra.mxu0 %v1358
        %v1446 = vpop.f32.mrf.mxu0
        %v1447 = vadd.f32 0.0, %v1446
        %1448 = vmatmul.f32.gmra.mxu0 %v1360
        %v1449 = vpop.f32.mrf.mxu0
        %v1450 = vadd.f32 0.0, %v1449
        %1451 = vmatmul.f32.gmra.mxu0 %v1362
        %v1452 = vpop.f32.mrf.mxu0
        %v1453 = vadd.f32 0.0, %v1452
        %1454 = vmatmul.f32.gmra.mxu0 %v1364
        %v1455 = vpop.f32.mrf.mxu0
        %v1456 = vadd.f32 0.0, %v1455
        %1457 = vdwg.mxu0
        %v1458 = vadd.f32 %v1340, %v1447
        %v1459 = vadd.f32 %v1343, %v1450
        %v1460 = vadd.f32 %v1346, %v1453
        %v1461 = vadd.f32 %v1349, %v1456
        %v1462 = vrot.slane %v1253, 1
        %v1463 = vrot.slane %v1255, 1
        %v1464 = vsel %vm725, %v1462, %v1463
        %v1465 = vrot.slane %v1257, 1
        %v1466 = vsel %vm725, %v1463, %v1465
        %v1467 = vrot.slane %v1259, 1
        %v1468 = vsel %vm725, %v1465, %v1467
        %v1469 = vsel %vm606, %v1464, 0
        %v1471 = vsel %vm606, %v1466, 0
        %v1473 = vsel %vm606, %v1468, 0
        %v1475 = vsel %vm606, %v1467, 0
        %1477 = vmatpush.msra.mxu0 0.0
        %1478 = vmatpush.msra.mxu0 0.0
        %1479 = vmatpush.msra.mxu0 0.0
        %1480 = vmatpush.msra.mxu0 0.0
        %1481 = vmatpush.msra.mxu0 0.0
        %1482 = vmatpush.msra.mxu0 0.0
        %1483 = vmatpush.msra.mxu0 0.0
        %1484 = vmatpush.msra.mxu0 0.0
        %1485 = vmatpush.msra.mxu0 0.0
        %1486 = vmatpush.msra.mxu0 0.0
        %1487 = vmatpush.msra.mxu0 0.0
        %1488 = vmatpush.msra.mxu0 0.0
        %1489 = vmatpush.msra.mxu0 %v1428
        %1490 = vmatpush.msra.mxu0 %v1427
        %1491 = vmatpush.msra.mxu0 %v1426
        %1492 = vmatpush.msra.mxu0 %v1425
        %1493 = vmatmul.f32.gmra.mxu0 %v1469
        %v1494 = vpop.f32.mrf.mxu0
        %v1495 = vadd.f32 0.0, %v1494
        %1496 = vmatmul.f32.gmra.mxu0 %v1471
        %v1497 = vpop.f32.mrf.mxu0
        %v1498 = vadd.f32 0.0, %v1497
        %1499 = vmatmul.f32.gmra.mxu0 %v1473
        %v1500 = vpop.f32.mrf.mxu0
        %v1501 = vadd.f32 0.0, %v1500
        %1502 = vmatmul.f32.gmra.mxu0 %v1475
        %v1503 = vpop.f32.mrf.mxu0
        %v1504 = vadd.f32 0.0, %v1503
        %1505 = vdwg.mxu0
        %v1506 = vadd.f32 %v1413, %v1495
        %v1507 = vadd.f32 %v1416, %v1498
        %v1508 = vadd.f32 %v1419, %v1501
        %v1509 = vadd.f32 %v1422, %v1504
        %s1510 = scalar_lea.vmem [#allocation8], 96
        %v1511 = vld [vmem:[%s1510] sm:$0xff]
        %v1512 = vld [vmem:[%s1510 + $0x8] sm:$0xff]
        %v1513 = vld [vmem:[%s1510 + $0x10] sm:$0xff]
        %v1514 = vld [vmem:[%s1510 + $0x18] sm:$0xff]
        %1515 = vmatpush.msra.mxu0 0.0
        %1516 = vmatpush.msra.mxu0 0.0
        %1517 = vmatpush.msra.mxu0 0.0
        %1518 = vmatpush.msra.mxu0 0.0
        %1519 = vmatpush.msra.mxu0 0.0
        %1520 = vmatpush.msra.mxu0 0.0
        %1521 = vmatpush.msra.mxu0 0.0
        %1522 = vmatpush.msra.mxu0 0.0
        %1523 = vmatpush.msra.mxu0 0.0
        %1524 = vmatpush.msra.mxu0 0.0
        %1525 = vmatpush.msra.mxu0 0.0
        %1526 = vmatpush.msra.mxu0 0.0
        %1527 = vmatpush.msra.mxu0 %v1514
        %1528 = vmatpush.msra.mxu0 %v1513
        %1529 = vmatpush.msra.mxu0 %v1512
        %1530 = vmatpush.msra.mxu0 %v1511
        %1531 = vmatmul.f32.gmra.mxu0 %v1469
        %v1532 = vpop.f32.mrf.mxu0
        %v1533 = vadd.f32 0.0, %v1532
        %1534 = vmatmul.f32.gmra.mxu0 %v1471
        %v1535 = vpop.f32.mrf.mxu0
        %v1536 = vadd.f32 0.0, %v1535
        %1537 = vmatmul.f32.gmra.mxu0 %v1473
        %v1538 = vpop.f32.mrf.mxu0
        %v1539 = vadd.f32 0.0, %v1538
        %1540 = vmatmul.f32.gmra.mxu0 %v1475
        %v1541 = vpop.f32.mrf.mxu0
        %v1542 = vadd.f32 0.0, %v1541
        %1543 = vdwg.mxu0
        %v1544 = vadd.f32 %v1458, %v1533
        %v1545 = vadd.f32 %v1459, %v1536
        %v1546 = vadd.f32 %v1460, %v1539
        %v1547 = vadd.f32 %v1461, %v1542
        %v1548 = vrot.slane %v1245, 2
        %v1549 = vrot.slane %v1247, 2
        %v1550 = vsel %vm1001, %v1548, %v1549
        %v1551 = vrot.slane %v1249, 2
        %v1552 = vsel %vm1001, %v1549, %v1551
        %v1553 = vrot.slane %v1251, 2
        %v1554 = vsel %vm1001, %v1551, %v1553
        %v1555 = vsel %vm606, %v1550, 0
        %v1557 = vsel %vm606, %v1552, 0
        %v1559 = vsel %vm606, %v1554, 0
        %v1561 = vsel %vm606, %v1553, 0
        %1563 = vmatpush.msra.mxu0 0.0
        %1564 = vmatpush.msra.mxu0 0.0
        %1565 = vmatpush.msra.mxu0 0.0
        %1566 = vmatpush.msra.mxu0 0.0
        %1567 = vmatpush.msra.mxu0 0.0
        %1568 = vmatpush.msra.mxu0 0.0
        %1569 = vmatpush.msra.mxu0 0.0
        %1570 = vmatpush.msra.mxu0 0.0
        %1571 = vmatpush.msra.mxu0 0.0
        %1572 = vmatpush.msra.mxu0 0.0
        %1573 = vmatpush.msra.mxu0 0.0
        %1574 = vmatpush.msra.mxu0 0.0
        %1575 = vmatpush.msra.mxu0 %v1514
        %1576 = vmatpush.msra.mxu0 %v1513
        %1577 = vmatpush.msra.mxu0 %v1512
        %1578 = vmatpush.msra.mxu0 %v1511
        %1579 = vmatmul.f32.gmra.mxu0 %v1555
        %v1580 = vpop.f32.mrf.mxu0
        %v1581 = vadd.f32 0.0, %v1580
        %1582 = vmatmul.f32.gmra.mxu0 %v1557
        %v1583 = vpop.f32.mrf.mxu0
        %v1584 = vadd.f32 0.0, %v1583
        %1585 = vmatmul.f32.gmra.mxu0 %v1559
        %v1586 = vpop.f32.mrf.mxu0
        %v1587 = vadd.f32 0.0, %v1586
        %1588 = vmatmul.f32.gmra.mxu0 %v1561
        %v1589 = vpop.f32.mrf.mxu0
        %v1590 = vadd.f32 0.0, %v1589
        %1591 = vdwg.mxu0
        %v1592 = vadd.f32 %v1506, %v1581
        %v1593 = vadd.f32 %v1507, %v1584
        %v1594 = vadd.f32 %v1508, %v1587
        %v1595 = vadd.f32 %v1509, %v1590
        %s1596 = scalar_lea.vmem [#allocation8], 128
        %v1597 = vld [vmem:[%s1596] sm:$0xff]
        %v1598 = vld [vmem:[%s1596 + $0x8] sm:$0xff]
        %v1599 = vld [vmem:[%s1596 + $0x10] sm:$0xff]
        %v1600 = vld [vmem:[%s1596 + $0x18] sm:$0xff]
        %1601 = vmatpush.msra.mxu0 0.0
        %1602 = vmatpush.msra.mxu0 0.0
        %1603 = vmatpush.msra.mxu0 0.0
        %1604 = vmatpush.msra.mxu0 0.0
        %1605 = vmatpush.msra.mxu0 0.0
        %1606 = vmatpush.msra.mxu0 0.0
        %1607 = vmatpush.msra.mxu0 0.0
        %1608 = vmatpush.msra.mxu0 0.0
        %1609 = vmatpush.msra.mxu0 0.0
        %1610 = vmatpush.msra.mxu0 0.0
        %1611 = vmatpush.msra.mxu0 0.0
        %1612 = vmatpush.msra.mxu0 0.0
        %1613 = vmatpush.msra.mxu0 %v1600
        %1614 = vmatpush.msra.mxu0 %v1599
        %1615 = vmatpush.msra.mxu0 %v1598
        %1616 = vmatpush.msra.mxu0 %v1597
        %1617 = vmatmul.f32.gmra.mxu0 %v1555
        %v1618 = vpop.f32.mrf.mxu0
        %v1619 = vadd.f32 0.0, %v1618
        %1620 = vmatmul.f32.gmra.mxu0 %v1557
        %v1621 = vpop.f32.mrf.mxu0
        %v1622 = vadd.f32 0.0, %v1621
        %1623 = vmatmul.f32.gmra.mxu0 %v1559
        %v1624 = vpop.f32.mrf.mxu0
        %v1625 = vadd.f32 0.0, %v1624
        %1626 = vmatmul.f32.gmra.mxu0 %v1561
        %v1627 = vpop.f32.mrf.mxu0
        %v1628 = vadd.f32 0.0, %v1627
        %1629 = vdwg.mxu0
        %v1630 = vadd.f32 %v1544, %v1619
        %v1631 = vadd.f32 %v1545, %v1622
        %v1632 = vadd.f32 %v1546, %v1625
        %v1633 = vadd.f32 %v1547, %v1628
        %v1634 = vrot.slane %v1253, 2
        %v1635 = vrot.slane %v1255, 2
        %v1636 = vsel %vm1001, %v1634, %v1635
        %v1637 = vrot.slane %v1257, 2
        %v1638 = vsel %vm1001, %v1635, %v1637
        %v1639 = vrot.slane %v1259, 2
        %v1640 = vsel %vm1001, %v1637, %v1639
        %v1641 = vsel %vm606, %v1636, 0
        %v1643 = vsel %vm606, %v1638, 0
        %v1645 = vsel %vm606, %v1640, 0
        %v1647 = vsel %vm606, %v1639, 0
        %1649 = vmatpush.msra.mxu0 0.0
        %1650 = vmatpush.msra.mxu0 0.0
        %1651 = vmatpush.msra.mxu0 0.0
        %1652 = vmatpush.msra.mxu0 0.0
        %1653 = vmatpush.msra.mxu0 0.0
        %1654 = vmatpush.msra.mxu0 0.0
        %1655 = vmatpush.msra.mxu0 0.0
        %1656 = vmatpush.msra.mxu0 0.0
        %1657 = vmatpush.msra.mxu0 0.0
        %1658 = vmatpush.msra.mxu0 0.0
        %1659 = vmatpush.msra.mxu0 0.0
        %1660 = vmatpush.msra.mxu0 0.0
        %1661 = vmatpush.msra.mxu0 %v1600
        %1662 = vmatpush.msra.mxu0 %v1599
        %1663 = vmatpush.msra.mxu0 %v1598
        %1664 = vmatpush.msra.mxu0 %v1597
        %1665 = vmatmul.f32.gmra.mxu0 %v1641
        %v1666 = vpop.f32.mrf.mxu0
        %v1667 = vadd.f32 0.0, %v1666
        %1668 = vmatmul.f32.gmra.mxu0 %v1643
        %v1669 = vpop.f32.mrf.mxu0
        %v1670 = vadd.f32 0.0, %v1669
        %1671 = vmatmul.f32.gmra.mxu0 %v1645
        %v1672 = vpop.f32.mrf.mxu0
        %v1673 = vadd.f32 0.0, %v1672
        %1674 = vmatmul.f32.gmra.mxu0 %v1647
        %v1675 = vpop.f32.mrf.mxu0
        %v1676 = vadd.f32 0.0, %v1675
        %1677 = vdwg.mxu0
        %v1678 = vadd.f32 %v1592, %v1667
        %v1679 = vadd.f32 %v1593, %v1670
        %v1680 = vadd.f32 %v1594, %v1673
        %v1681 = vadd.f32 %v1595, %v1676
        %v1682 = vmax.f32 %v1630, %v1678
        %v1683 = vmax.f32 %v1631, %v1679
        %v1684 = vmax.f32 %v1632, %v1680
        %v1685 = vmax.f32 %v1633, %v1681
        %v1687 = vperm.slane %v1244, 0
        %v1689 = vadd.f32 %v1682, %v1687
        %v1690 = vadd.f32 %v1683, %v1687
        %v1691 = vadd.f32 %v1684, %v1687
        %v1692 = vadd.f32 %v1685, %v1687
        %vm1693 = vcmp.ge.f32.partialorder %v1689, 0.0
        %vm1694 = vcmp.ge.f32.partialorder %v1690, 0.0
        %vm1695 = vcmp.ge.f32.partialorder %v1691, 0.0
        %vm1696 = vcmp.ge.f32.partialorder %v1692, 0.0
        %v1697 = vmul.f32 %v1689, 0.01
        %v1698 = vmul.f32 %v1690, 0.01
        %v1699 = vmul.f32 %v1691, 0.01
        %v1700 = vmul.f32 %v1692, 0.01
        %v1701 = vsel %vm1693, %v1689, %v1697
        %v1702 = vsel %vm1694, %v1690, %v1698
        %v1703 = vsel %vm1695, %v1691, %v1699
        %v1704 = vsel %vm1696, %v1692, %v1700
        %1705 = vst.msk [vmem:[#allocation3 + $0x2] sm:$0xff] %vm556, %v1701
        %vm1706 = vcmask 520192
        %1707 = vst.msk [vmem:[#allocation3 + $0xa] sm:$0x1f] %vm1706, %v1702
        %1708 = vst.msk [vmem:[#allocation3 + $0x1a] sm:$0xff] %vm556, %v1703
        %1709 = vst.msk [vmem:[#allocation3 + $0x22] sm:$0x1f] %vm1706, %v1704
        %v1710 = vld [vmem:[#allocation17] sm:$0x1]
        %v1711 = vld [vmem:[#allocation3] sm:$0xff]
        %v1712 = vld [vmem:[#allocation3 + $0x8] sm:$0xff]
        %v1713 = vld [vmem:[#allocation3 + $0x10] sm:$0xff]
        %v1714 = vld [vmem:[#allocation3 + $0x18] sm:$0xff]
        %v1715 = vld [vmem:[#allocation3 + $0x20] sm:$0x3f]
        %v1716 = vld [vmem:[#allocation10] sm:$0xff]
        %v1717 = vld [vmem:[#allocation10 + $0x8] sm:$0xff]
        %v1718 = vld [vmem:[#allocation10 + $0x10] sm:$0xff]
        %v1719 = vld [vmem:[#allocation10 + $0x18] sm:$0xff]
        %v1720 = vld [vmem:[#allocation10 + $0x20] sm:$0xff]
        %v1721 = vld [vmem:[#allocation10 + $0x28] sm:$0xff]
        %v1722 = vld [vmem:[#allocation10 + $0x30] sm:$0xff]
        %v1723 = vld [vmem:[#allocation10 + $0x38] sm:$0xff]
        %v1724 = vld [vmem:[#allocation3 + $0x1] sm:$0xff]
        %v1725 = vld [vmem:[#allocation3 + $0x9] sm:$0xff]
        %v1726 = vld [vmem:[#allocation3 + $0x11] sm:$0xff]
        %v1727 = vld [vmem:[#allocation3 + $0x19] sm:$0xff]
        %v1728 = vld [vmem:[#allocation3 + $0x21] sm:$0x3f]
        %s1729 = scalar_lea.vmem [#allocation10], 64
        %v1730 = vld [vmem:[%s1729] sm:$0xff]
        %v1731 = vld [vmem:[%s1729 + $0x8] sm:$0xff]
        %v1732 = vld [vmem:[%s1729 + $0x10] sm:$0xff]
        %v1733 = vld [vmem:[%s1729 + $0x18] sm:$0xff]
        %v1734 = vld [vmem:[%s1729 + $0x20] sm:$0xff]
        %v1735 = vld [vmem:[%s1729 + $0x28] sm:$0xff]
        %v1736 = vld [vmem:[%s1729 + $0x30] sm:$0xff]
        %v1737 = vld [vmem:[%s1729 + $0x38] sm:$0xff]
        %v1739 = vsel %vm556, %v1724, 0
        %v1742 = vsel %vm556, %v1725, 0
        %v1745 = vsel %vm556, %v1726, 0
        %v1748 = vsel %vm556, %v1727, 0
        %v1751 = vsel %vm556, %v1728, 0
        %1753 = vmatpush.msra.mxu0 0.0
        %1754 = vmatpush.msra.mxu0 0.0
        %1755 = vmatpush.msra.mxu0 0.0
        %1756 = vmatpush.msra.mxu0 0.0
        %1757 = vmatpush.msra.mxu0 0.0
        %1758 = vmatpush.msra.mxu0 0.0
        %1759 = vmatpush.msra.mxu0 0.0
        %1760 = vmatpush.msra.mxu0 0.0
        %1761 = vmatpush.msra.mxu0 %v1737
        %1762 = vmatpush.msra.mxu0 %v1736
        %1763 = vmatpush.msra.mxu0 %v1735
        %1764 = vmatpush.msra.mxu0 %v1734
        %1765 = vmatpush.msra.mxu0 %v1733
        %1766 = vmatpush.msra.mxu0 %v1732
        %1767 = vmatpush.msra.mxu0 %v1731
        %1768 = vmatpush.msra.mxu0 %v1730
        %1769 = vmatmul.f32.gmra.mxu0 %v1739
        %v1770 = vpop.f32.mrf.mxu0
        %v1771 = vadd.f32 0.0, %v1770
        %1772 = vmatmul.f32.gmra.mxu0 %v1742
        %v1773 = vpop.f32.mrf.mxu0
        %v1774 = vadd.f32 0.0, %v1773
        %1775 = vmatmul.f32.gmra.mxu0 %v1745
        %v1776 = vpop.f32.mrf.mxu0
        %1777 = vmatmul.f32.gmra.mxu0 %v1748
        %v1778 = vpop.f32.mrf.mxu0
        %v1779 = vadd.f32 0.0, %v1778
        %1780 = vmatmul.f32.gmra.mxu0 %v1751
        %v1781 = vpop.f32.mrf.mxu0
        %v1782 = vadd.f32 0.0, %v1781
        %1783 = vdwg.mxu0
        %v1785 = vsel %vm556, %v1711, 0
        %v1788 = vsel %vm556, %v1712, 0
        %v1791 = vsel %vm556, %v1713, 0
        %v1794 = vsel %vm556, %v1714, 0
        %v1797 = vsel %vm556, %v1715, 0
        %1799 = vmatpush.msra.mxu0 0.0
        %1800 = vmatpush.msra.mxu0 0.0
        %1801 = vmatpush.msra.mxu0 0.0
        %1802 = vmatpush.msra.mxu0 0.0
        %1803 = vmatpush.msra.mxu0 0.0
        %1804 = vmatpush.msra.mxu0 0.0
        %1805 = vmatpush.msra.mxu0 0.0
        %1806 = vmatpush.msra.mxu0 0.0
        %1807 = vmatpush.msra.mxu0 %v1723
        %1808 = vmatpush.msra.mxu0 %v1722
        %1809 = vmatpush.msra.mxu0 %v1721
        %1810 = vmatpush.msra.mxu0 %v1720
        %1811 = vmatpush.msra.mxu0 %v1719
        %1812 = vmatpush.msra.mxu0 %v1718
        %1813 = vmatpush.msra.mxu0 %v1717
        %1814 = vmatpush.msra.mxu0 %v1716
        %1815 = vmatmul.f32.gmra.mxu0 %v1785
        %v1816 = vpop.f32.mrf.mxu0
        %v1817 = vadd.f32 %v1771, %v1816
        %1818 = vmatmul.f32.gmra.mxu0 %v1788
        %v1819 = vpop.f32.mrf.mxu0
        %v1820 = vadd.f32 %v1774, %v1819
        %1821 = vmatmul.f32.gmra.mxu0 %v1791
        %v1822 = vpop.f32.mrf.mxu0
        %1823 = vmatmul.f32.gmra.mxu0 %v1794
        %v1824 = vpop.f32.mrf.mxu0
        %v1825 = vadd.f32 %v1779, %v1824
        %1826 = vmatmul.f32.gmra.mxu0 %v1797
        %v1827 = vpop.f32.mrf.mxu0
        %v1828 = vadd.f32 %v1782, %v1827
        %1829 = vdwg.mxu0
        %v1830 = vld [vmem:[#allocation3 + $0x2] sm:$0xff]
        %v1831 = vld [vmem:[#allocation3 + $0xa] sm:$0xff]
        %v1832 = vld [vmem:[#allocation3 + $0x12] sm:$0xff]
        %v1833 = vld [vmem:[#allocation3 + $0x1a] sm:$0xff]
        %v1834 = vld [vmem:[#allocation3 + $0x22] sm:$0x3f]
        %s1835 = scalar_lea.vmem [#allocation10], 128
        %v1836 = vld [vmem:[%s1835] sm:$0xff]
        %v1837 = vld [vmem:[%s1835 + $0x8] sm:$0xff]
        %v1838 = vld [vmem:[%s1835 + $0x10] sm:$0xff]
        %v1839 = vld [vmem:[%s1835 + $0x18] sm:$0xff]
        %v1840 = vld [vmem:[%s1835 + $0x20] sm:$0xff]
        %v1841 = vld [vmem:[%s1835 + $0x28] sm:$0xff]
        %v1842 = vld [vmem:[%s1835 + $0x30] sm:$0xff]
        %v1843 = vld [vmem:[%s1835 + $0x38] sm:$0xff]
        %v1845 = vsel %vm556, %v1830, 0
        %v1848 = vsel %vm556, %v1831, 0
        %v1851 = vsel %vm556, %v1832, 0
        %v1854 = vsel %vm556, %v1833, 0
        %v1857 = vsel %vm556, %v1834, 0
        %1859 = vmatpush.msra.mxu0 0.0
        %1860 = vmatpush.msra.mxu0 0.0
        %1861 = vmatpush.msra.mxu0 0.0
        %1862 = vmatpush.msra.mxu0 0.0
        %1863 = vmatpush.msra.mxu0 0.0
        %1864 = vmatpush.msra.mxu0 0.0
        %1865 = vmatpush.msra.mxu0 0.0
        %1866 = vmatpush.msra.mxu0 0.0
        %1867 = vmatpush.msra.mxu0 %v1843
        %1868 = vmatpush.msra.mxu0 %v1842
        %1869 = vmatpush.msra.mxu0 %v1841
        %1870 = vmatpush.msra.mxu0 %v1840
        %1871 = vmatpush.msra.mxu0 %v1839
        %1872 = vmatpush.msra.mxu0 %v1838
        %1873 = vmatpush.msra.mxu0 %v1837
        %1874 = vmatpush.msra.mxu0 %v1836
        %1875 = vmatmul.f32.gmra.mxu0 %v1845
        %v1876 = vpop.f32.mrf.mxu0
        %v1877 = vadd.f32 0.0, %v1876
        %1878 = vmatmul.f32.gmra.mxu0 %v1848
        %v1879 = vpop.f32.mrf.mxu0
        %v1880 = vadd.f32 0.0, %v1879
        %1881 = vmatmul.f32.gmra.mxu0 %v1851
        %v1882 = vpop.f32.mrf.mxu0
        %1883 = vmatmul.f32.gmra.mxu0 %v1854
        %v1884 = vpop.f32.mrf.mxu0
        %v1885 = vadd.f32 0.0, %v1884
        %1886 = vmatmul.f32.gmra.mxu0 %v1857
        %v1887 = vpop.f32.mrf.mxu0
        %v1888 = vadd.f32 0.0, %v1887
        %1889 = vdwg.mxu0
        %v1890 = vadd.f32 %v1817, %v1877
        %v1891 = vadd.f32 %v1820, %v1880
        %v1892 = vadd.f32 %v1825, %v1885
        %v1893 = vadd.f32 %v1828, %v1888
        %v1894 = vld [vmem:[#allocation3 + $0x3] sm:$0xff]
        %v1895 = vld [vmem:[#allocation3 + $0xb] sm:$0xff]
        %v1896 = vld [vmem:[#allocation3 + $0x13] sm:$0xff]
        %v1897 = vld [vmem:[#allocation3 + $0x1b] sm:$0xff]
        %v1898 = vld [vmem:[#allocation3 + $0x23] sm:$0x3f]
        %s1899 = scalar_lea.vmem [#allocation10], 192
        %v1900 = vld [vmem:[%s1899] sm:$0xff]
        %v1901 = vld [vmem:[%s1899 + $0x8] sm:$0xff]
        %v1902 = vld [vmem:[%s1899 + $0x10] sm:$0xff]
        %v1903 = vld [vmem:[%s1899 + $0x18] sm:$0xff]
        %v1904 = vld [vmem:[%s1899 + $0x20] sm:$0xff]
        %v1905 = vld [vmem:[%s1899 + $0x28] sm:$0xff]
        %v1906 = vld [vmem:[%s1899 + $0x30] sm:$0xff]
        %v1907 = vld [vmem:[%s1899 + $0x38] sm:$0xff]
        %v1909 = vsel %vm556, %v1894, 0
        %v1912 = vsel %vm556, %v1895, 0
        %v1915 = vsel %vm556, %v1896, 0
        %v1918 = vsel %vm556, %v1897, 0
        %v1921 = vsel %vm556, %v1898, 0
        %1923 = vmatpush.msra.mxu0 0.0
        %1924 = vmatpush.msra.mxu0 0.0
        %1925 = vmatpush.msra.mxu0 0.0
        %1926 = vmatpush.msra.mxu0 0.0
        %1927 = vmatpush.msra.mxu0 0.0
        %1928 = vmatpush.msra.mxu0 0.0
        %1929 = vmatpush.msra.mxu0 0.0
        %1930 = vmatpush.msra.mxu0 0.0
        %1931 = vmatpush.msra.mxu0 %v1907
        %1932 = vmatpush.msra.mxu0 %v1906
        %1933 = vmatpush.msra.mxu0 %v1905
        %1934 = vmatpush.msra.mxu0 %v1904
        %1935 = vmatpush.msra.mxu0 %v1903
        %1936 = vmatpush.msra.mxu0 %v1902
        %1937 = vmatpush.msra.mxu0 %v1901
        %1938 = vmatpush.msra.mxu0 %v1900
        %1939 = vmatmul.f32.gmra.mxu0 %v1909
        %v1940 = vpop.f32.mrf.mxu0
        %v1941 = vadd.f32 0.0, %v1940
        %1942 = vmatmul.f32.gmra.mxu0 %v1912
        %v1943 = vpop.f32.mrf.mxu0
        %v1944 = vadd.f32 0.0, %v1943
        %1945 = vmatmul.f32.gmra.mxu0 %v1915
        %v1946 = vpop.f32.mrf.mxu0
        %1947 = vmatmul.f32.gmra.mxu0 %v1918
        %v1948 = vpop.f32.mrf.mxu0
        %v1949 = vadd.f32 0.0, %v1948
        %1950 = vmatmul.f32.gmra.mxu0 %v1921
        %v1951 = vpop.f32.mrf.mxu0
        %v1952 = vadd.f32 0.0, %v1951
        %1953 = vdwg.mxu0
        %v1954 = vadd.f32 %v1890, %v1941
        %v1955 = vadd.f32 %v1891, %v1944
        %v1956 = vadd.f32 %v1892, %v1949
        %v1957 = vadd.f32 %v1893, %v1952
        %v1959 = vperm.slane %v1710, 0
        %v1961 = vadd.f32 %v1954, %v1959
        %v1962 = vadd.f32 %v1955, %v1959
        %v1963 = vadd.f32 %v1956, %v1959
        %v1964 = vadd.f32 %v1957, %v1959
        %vm1965 = vcmp.ge.f32.partialorder %v1961, 0.0
        %vm1966 = vcmp.ge.f32.partialorder %v1962, 0.0
        %vm1967 = vcmp.ge.f32.partialorder %v1963, 0.0
        %vm1968 = vcmp.ge.f32.partialorder %v1964, 0.0
        %v1969 = vmul.f32 %v1961, 0.01
        %v1970 = vmul.f32 %v1962, 0.01
        %v1971 = vmul.f32 %v1963, 0.01
        %v1972 = vmul.f32 %v1964, 0.01
        %v1973 = vsel %vm1965, %v1961, %v1969
        %v1974 = vsel %vm1966, %v1962, %v1970
        %v1975 = vsel %vm1967, %v1963, %v1971
        %v1976 = vsel %vm1968, %v1964, %v1972
        %1977 = vst [vmem:[#allocation4] sm:$0xff] %v1973
        %1978 = vst [vmem:[#allocation4 + $0x8] sm:$0x3f] %v1974
        %1979 = vst [vmem:[#allocation4 + $0x10] sm:$0xff] %v1975
        %1980 = vst [vmem:[#allocation4 + $0x18] sm:$0x3f] %v1976
        %v1981 = vld [vmem:[#allocation19] sm:$0x1]
        %v1982 = vld [vmem:[#allocation4] ss:$2 sm:$0xff]
        %s1983 = scalar_lea.vmem [#allocation4], 16
        %v1984 = vld [vmem:[%s1983] ss:$2 sm:$0x7f]
        %s1985 = scalar_lea.vmem [#allocation4], 1
        %v1986 = vld [vmem:[%s1985] ss:$2 sm:$0xff]
        %s1987 = scalar_lea.vmem [#allocation4], 17
        %v1988 = vld [vmem:[%s1987] ss:$2 sm:$0x7f]
        %v1989 = vld [vmem:[#allocation11] sm:$0xff]
        %v1990 = vld [vmem:[#allocation11 + $0x8] sm:$0xff]
        %v1991 = vld [vmem:[#allocation11 + $0x10] sm:$0xff]
        %v1992 = vld [vmem:[#allocation11 + $0x18] sm:$0xff]
        %v1993 = vld [vmem:[#allocation11 + $0x20] sm:$0xff]
        %v1994 = vld [vmem:[#allocation11 + $0x28] sm:$0xff]
        %v1995 = vld [vmem:[#allocation11 + $0x30] sm:$0xff]
        %v1996 = vld [vmem:[#allocation11 + $0x38] sm:$0xff]
        %v1997 = vld [vmem:[#allocation11 + $0x40] sm:$0xff]
        %v1998 = vld [vmem:[#allocation11 + $0x48] sm:$0xff]
        %v1999 = vld [vmem:[#allocation11 + $0x50] sm:$0xff]
        %v2000 = vld [vmem:[#allocation11 + $0x58] sm:$0xff]
        %v2001 = vld [vmem:[#allocation11 + $0x60] sm:$0xff]
        %v2002 = vld [vmem:[#allocation11 + $0x68] sm:$0xff]
        %v2003 = vld [vmem:[#allocation11 + $0x70] sm:$0xff]
        %v2004 = vld [vmem:[#allocation11 + $0x78] sm:$0xff]
        %s2005 = scalar_lea.vmem [#allocation11], 128
        %v2006 = vld [vmem:[%s2005] sm:$0xff]
        %v2007 = vld [vmem:[%s2005 + $0x8] sm:$0xff]
        %v2008 = vld [vmem:[%s2005 + $0x10] sm:$0xff]
        %v2009 = vld [vmem:[%s2005 + $0x18] sm:$0xff]
        %v2010 = vld [vmem:[%s2005 + $0x20] sm:$0xff]
        %v2011 = vld [vmem:[%s2005 + $0x28] sm:$0xff]
        %v2012 = vld [vmem:[%s2005 + $0x30] sm:$0xff]
        %v2013 = vld [vmem:[%s2005 + $0x38] sm:$0xff]
        %v2014 = vld [vmem:[%s2005 + $0x40] sm:$0xff]
        %v2015 = vld [vmem:[%s2005 + $0x48] sm:$0xff]
        %v2016 = vld [vmem:[%s2005 + $0x50] sm:$0xff]
        %v2017 = vld [vmem:[%s2005 + $0x58] sm:$0xff]
        %v2018 = vld [vmem:[%s2005 + $0x60] sm:$0xff]
        %v2019 = vld [vmem:[%s2005 + $0x68] sm:$0xff]
        %v2020 = vld [vmem:[%s2005 + $0x70] sm:$0xff]
        %v2021 = vld [vmem:[%s2005 + $0x78] sm:$0xff]
        %2022 = vmatpush.msra.mxu0 %v2021
        %2023 = vmatpush.msra.mxu0 %v2020
        %2024 = vmatpush.msra.mxu0 %v2019
        %2025 = vmatpush.msra.mxu0 %v2018
        %2026 = vmatpush.msra.mxu0 %v2017
        %2027 = vmatpush.msra.mxu0 %v2016
        %2028 = vmatpush.msra.mxu0 %v2015
        %2029 = vmatpush.msra.mxu0 %v2014
        %2030 = vmatpush.msra.mxu0 %v2013
        %2031 = vmatpush.msra.mxu0 %v2012
        %2032 = vmatpush.msra.mxu0 %v2011
        %2033 = vmatpush.msra.mxu0 %v2010
        %2034 = vmatpush.msra.mxu0 %v2009
        %2035 = vmatpush.msra.mxu0 %v2008
        %2036 = vmatpush.msra.mxu0 %v2007
        %2037 = vmatpush.msra.mxu0 %v2006
        %2038 = vmatmul.f32.gmra.mxu0 %v1986
        %v2039 = vpop.f32.mrf.mxu0
        %v2040 = vadd.f32 0.0, %v2039
        %2041 = vmatmul.f32.gmra.mxu0 %v1988
        %v2042 = vpop.f32.mrf.mxu0
        %v2043 = vadd.f32 0.0, %v2042
        %2044 = vdwg.mxu0
        %2045 = vmatpush.msra.mxu0 %v2004
        %2046 = vmatpush.msra.mxu0 %v2003
        %2047 = vmatpush.msra.mxu0 %v2002
        %2048 = vmatpush.msra.mxu0 %v2001
        %2049 = vmatpush.msra.mxu0 %v2000
        %2050 = vmatpush.msra.mxu0 %v1999
        %2051 = vmatpush.msra.mxu0 %v1998
        %2052 = vmatpush.msra.mxu0 %v1997
        %2053 = vmatpush.msra.mxu0 %v1996
        %2054 = vmatpush.msra.mxu0 %v1995
        %2055 = vmatpush.msra.mxu0 %v1994
        %2056 = vmatpush.msra.mxu0 %v1993
        %2057 = vmatpush.msra.mxu0 %v1992
        %2058 = vmatpush.msra.mxu0 %v1991
        %2059 = vmatpush.msra.mxu0 %v1990
        %2060 = vmatpush.msra.mxu0 %v1989
        %2061 = vmatmul.f32.gmra.mxu0 %v1982
        %v2062 = vpop.f32.mrf.mxu0
        %v2063 = vadd.f32 %v2040, %v2062
        %2064 = vmatmul.f32.gmra.mxu0 %v1984
        %v2065 = vpop.f32.mrf.mxu0
        %v2066 = vadd.f32 %v2043, %v2065
        %2067 = vdwg.mxu0
        %v2070 = vrot.slane %v1982, 1
        %v2071 = vrot.slane %v1984, 1
        %v2072 = vsel %vm725, %v2070, %v2071
        %2075 = vmatpush.msra.mxu0 %v2021
        %2076 = vmatpush.msra.mxu0 %v2020
        %2077 = vmatpush.msra.mxu0 %v2019
        %2078 = vmatpush.msra.mxu0 %v2018
        %2079 = vmatpush.msra.mxu0 %v2017
        %2080 = vmatpush.msra.mxu0 %v2016
        %2081 = vmatpush.msra.mxu0 %v2015
        %2082 = vmatpush.msra.mxu0 %v2014
        %2083 = vmatpush.msra.mxu0 %v2013
        %2084 = vmatpush.msra.mxu0 %v2012
        %2085 = vmatpush.msra.mxu0 %v2011
        %2086 = vmatpush.msra.mxu0 %v2010
        %2087 = vmatpush.msra.mxu0 %v2009
        %2088 = vmatpush.msra.mxu0 %v2008
        %2089 = vmatpush.msra.mxu0 %v2007
        %2090 = vmatpush.msra.mxu0 %v2006
        %2091 = vmatmul.f32.gmra.mxu0 %v2072
        %v2092 = vpop.f32.mrf.mxu0
        %v2093 = vadd.f32 0.0, %v2092
        %2094 = vmatmul.f32.gmra.mxu0 %v2071
        %v2095 = vpop.f32.mrf.mxu0
        %v2096 = vadd.f32 0.0, %v2095
        %2097 = vdwg.mxu0
        %2098 = vmatpush.msra.mxu0 %v2004
        %2099 = vmatpush.msra.mxu0 %v2003
        %2100 = vmatpush.msra.mxu0 %v2002
        %2101 = vmatpush.msra.mxu0 %v2001
        %2102 = vmatpush.msra.mxu0 %v2000
        %2103 = vmatpush.msra.mxu0 %v1999
        %2104 = vmatpush.msra.mxu0 %v1998
        %2105 = vmatpush.msra.mxu0 %v1997
        %2106 = vmatpush.msra.mxu0 %v1996
        %2107 = vmatpush.msra.mxu0 %v1995
        %2108 = vmatpush.msra.mxu0 %v1994
        %2109 = vmatpush.msra.mxu0 %v1993
        %2110 = vmatpush.msra.mxu0 %v1992
        %2111 = vmatpush.msra.mxu0 %v1991
        %2112 = vmatpush.msra.mxu0 %v1990
        %2113 = vmatpush.msra.mxu0 %v1989
        %2114 = vmatmul.f32.gmra.mxu0 %v1986
        %v2115 = vpop.f32.mrf.mxu0
        %v2116 = vadd.f32 %v2093, %v2115
        %2117 = vmatmul.f32.gmra.mxu0 %v1988
        %v2118 = vpop.f32.mrf.mxu0
        %v2119 = vadd.f32 %v2096, %v2118
        %2120 = vdwg.mxu0
        %s2121 = scalar_lea.vmem [#allocation11], 256
        %v2122 = vld [vmem:[%s2121] sm:$0xff]
        %v2123 = vld [vmem:[%s2121 + $0x8] sm:$0xff]
        %v2124 = vld [vmem:[%s2121 + $0x10] sm:$0xff]
        %v2125 = vld [vmem:[%s2121 + $0x18] sm:$0xff]
        %v2126 = vld [vmem:[%s2121 + $0x20] sm:$0xff]
        %v2127 = vld [vmem:[%s2121 + $0x28] sm:$0xff]
        %v2128 = vld [vmem:[%s2121 + $0x30] sm:$0xff]
        %v2129 = vld [vmem:[%s2121 + $0x38] sm:$0xff]
        %v2130 = vld [vmem:[%s2121 + $0x40] sm:$0xff]
        %v2131 = vld [vmem:[%s2121 + $0x48] sm:$0xff]
        %v2132 = vld [vmem:[%s2121 + $0x50] sm:$0xff]
        %v2133 = vld [vmem:[%s2121 + $0x58] sm:$0xff]
        %v2134 = vld [vmem:[%s2121 + $0x60] sm:$0xff]
        %v2135 = vld [vmem:[%s2121 + $0x68] sm:$0xff]
        %v2136 = vld [vmem:[%s2121 + $0x70] sm:$0xff]
        %v2137 = vld [vmem:[%s2121 + $0x78] sm:$0xff]
        %2138 = vmatpush.msra.mxu0 %v2137
        %2139 = vmatpush.msra.mxu0 %v2136
        %2140 = vmatpush.msra.mxu0 %v2135
        %2141 = vmatpush.msra.mxu0 %v2134
        %2142 = vmatpush.msra.mxu0 %v2133
        %2143 = vmatpush.msra.mxu0 %v2132
        %2144 = vmatpush.msra.mxu0 %v2131
        %2145 = vmatpush.msra.mxu0 %v2130
        %2146 = vmatpush.msra.mxu0 %v2129
        %2147 = vmatpush.msra.mxu0 %v2128
        %2148 = vmatpush.msra.mxu0 %v2127
        %2149 = vmatpush.msra.mxu0 %v2126
        %2150 = vmatpush.msra.mxu0 %v2125
        %2151 = vmatpush.msra.mxu0 %v2124
        %2152 = vmatpush.msra.mxu0 %v2123
        %2153 = vmatpush.msra.mxu0 %v2122
        %2154 = vmatmul.f32.gmra.mxu0 %v2072
        %v2155 = vpop.f32.mrf.mxu0
        %v2156 = vadd.f32 0.0, %v2155
        %2157 = vmatmul.f32.gmra.mxu0 %v2071
        %v2158 = vpop.f32.mrf.mxu0
        %v2159 = vadd.f32 0.0, %v2158
        %2160 = vdwg.mxu0
        %v2161 = vadd.f32 %v2063, %v2156
        %v2162 = vadd.f32 %v2066, %v2159
        %v2165 = vrot.slane %v1986, 1
        %v2166 = vrot.slane %v1988, 1
        %v2167 = vsel %vm725, %v2165, %v2166
        %2170 = vmatpush.msra.mxu0 %v2137
        %2171 = vmatpush.msra.mxu0 %v2136
        %2172 = vmatpush.msra.mxu0 %v2135
        %2173 = vmatpush.msra.mxu0 %v2134
        %2174 = vmatpush.msra.mxu0 %v2133
        %2175 = vmatpush.msra.mxu0 %v2132
        %2176 = vmatpush.msra.mxu0 %v2131
        %2177 = vmatpush.msra.mxu0 %v2130
        %2178 = vmatpush.msra.mxu0 %v2129
        %2179 = vmatpush.msra.mxu0 %v2128
        %2180 = vmatpush.msra.mxu0 %v2127
        %2181 = vmatpush.msra.mxu0 %v2126
        %2182 = vmatpush.msra.mxu0 %v2125
        %2183 = vmatpush.msra.mxu0 %v2124
        %2184 = vmatpush.msra.mxu0 %v2123
        %2185 = vmatpush.msra.mxu0 %v2122
        %2186 = vmatmul.f32.gmra.mxu0 %v2167
        %v2187 = vpop.f32.mrf.mxu0
        %v2188 = vadd.f32 0.0, %v2187
        %2189 = vmatmul.f32.gmra.mxu0 %v2166
        %v2190 = vpop.f32.mrf.mxu0
        %v2191 = vadd.f32 0.0, %v2190
        %2192 = vdwg.mxu0
        %v2193 = vadd.f32 %v2116, %v2188
        %v2194 = vadd.f32 %v2119, %v2191
        %v2195 = vmax.f32 %v2161, %v2193
        %v2196 = vmax.f32 %v2162, %v2194
        %v2198 = vperm.slane %v1981, 0
        %v2200 = vadd.f32 %v2195, %v2198
        %v2201 = vadd.f32 %v2196, %v2198
        %vm2202 = vcmp.ge.f32.partialorder %v2200, 0.0
        %vm2203 = vcmp.ge.f32.partialorder %v2201, 0.0
        %v2204 = vmul.f32 %v2200, 0.01
        %v2205 = vmul.f32 %v2201, 0.01
        %v2206 = vsel %vm2202, %v2200, %v2204
        %v2207 = vsel %vm2203, %v2201, %v2205
        %2208 = vst [vmem:[#allocation5 + $0x1] sm:$0x3f] %v2206
        %2209 = vst [vmem:[#allocation5 + $0x9] sm:$0x3f] %v2207
        %v2210 = vld [vmem:[#allocation20] sm:$0x3]
        %v2211 = vld [vmem:[#allocation5] sm:$0xff]
        %v2212 = vld [vmem:[#allocation5 + $0x8] sm:$0x3f]
        %v2213 = vld [vmem:[#allocation13] sm:$0xff]
        %v2214 = vld [vmem:[#allocation13 + $0x8] sm:$0xff]
        %v2215 = vld [vmem:[#allocation13 + $0x10] sm:$0xff]
        %v2216 = vld [vmem:[#allocation13 + $0x18] sm:$0xff]
        %v2217 = vld [vmem:[#allocation13 + $0x20] sm:$0xff]
        %v2218 = vld [vmem:[#allocation13 + $0x28] sm:$0xff]
        %v2219 = vld [vmem:[#allocation13 + $0x30] sm:$0xff]
        %v2220 = vld [vmem:[#allocation13 + $0x38] sm:$0xff]
        %v2221 = vld [vmem:[#allocation13 + $0x40] sm:$0xff]
        %v2222 = vld [vmem:[#allocation13 + $0x48] sm:$0xff]
        %v2223 = vld [vmem:[#allocation13 + $0x50] sm:$0xff]
        %v2224 = vld [vmem:[#allocation13 + $0x58] sm:$0xff]
        %v2225 = vld [vmem:[#allocation13 + $0x60] sm:$0xff]
        %v2226 = vld [vmem:[#allocation13 + $0x68] sm:$0xff]
        %v2227 = vld [vmem:[#allocation13 + $0x70] sm:$0xff]
        %v2228 = vld [vmem:[#allocation13 + $0x78] sm:$0xff]
        %v2229 = vld [vmem:[#allocation13 + $0x80] sm:$0xff]
        %v2230 = vld [vmem:[#allocation13 + $0x88] sm:$0xff]
        %v2231 = vld [vmem:[#allocation13 + $0x90] sm:$0xff]
        %v2232 = vld [vmem:[#allocation13 + $0x98] sm:$0xff]
        %v2233 = vld [vmem:[#allocation13 + $0xa0] sm:$0xff]
        %v2234 = vld [vmem:[#allocation13 + $0xa8] sm:$0xff]
        %v2235 = vld [vmem:[#allocation13 + $0xb0] sm:$0xff]
        %v2236 = vld [vmem:[#allocation13 + $0xb8] sm:$0xff]
        %v2237 = vld [vmem:[#allocation13 + $0xc0] sm:$0xff]
        %v2238 = vld [vmem:[#allocation13 + $0xc8] sm:$0xff]
        %v2239 = vld [vmem:[#allocation13 + $0xd0] sm:$0xff]
        %v2240 = vld [vmem:[#allocation13 + $0xd8] sm:$0xff]
        %v2241 = vld [vmem:[#allocation13 + $0xe0] sm:$0xff]
        %v2242 = vld [vmem:[#allocation13 + $0xe8] sm:$0xff]
        %v2243 = vld [vmem:[#allocation13 + $0xf0] sm:$0xff]
        %v2244 = vld [vmem:[#allocation13 + $0xf8] sm:$0xff]
        %v2245 = vld [vmem:[#allocation5 + $0x1] sm:$0xff]
        %v2246 = vld [vmem:[#allocation5 + $0x9] sm:$0x3f]
        %s2247 = scalar_lea.vmem [#allocation13], 256
        %v2248 = vld [vmem:[%s2247] sm:$0xff]
        %v2249 = vld [vmem:[%s2247 + $0x8] sm:$0xff]
        %v2250 = vld [vmem:[%s2247 + $0x10] sm:$0xff]
        %v2251 = vld [vmem:[%s2247 + $0x18] sm:$0xff]
        %v2252 = vld [vmem:[%s2247 + $0x20] sm:$0xff]
        %v2253 = vld [vmem:[%s2247 + $0x28] sm:$0xff]
        %v2254 = vld [vmem:[%s2247 + $0x30] sm:$0xff]
        %v2255 = vld [vmem:[%s2247 + $0x38] sm:$0xff]
        %v2256 = vld [vmem:[%s2247 + $0x40] sm:$0xff]
        %v2257 = vld [vmem:[%s2247 + $0x48] sm:$0xff]
        %v2258 = vld [vmem:[%s2247 + $0x50] sm:$0xff]
        %v2259 = vld [vmem:[%s2247 + $0x58] sm:$0xff]
        %v2260 = vld [vmem:[%s2247 + $0x60] sm:$0xff]
        %v2261 = vld [vmem:[%s2247 + $0x68] sm:$0xff]
        %v2262 = vld [vmem:[%s2247 + $0x70] sm:$0xff]
        %v2263 = vld [vmem:[%s2247 + $0x78] sm:$0xff]
        %v2264 = vld [vmem:[%s2247 + $0x80] sm:$0xff]
        %v2265 = vld [vmem:[%s2247 + $0x88] sm:$0xff]
        %v2266 = vld [vmem:[%s2247 + $0x90] sm:$0xff]
        %v2267 = vld [vmem:[%s2247 + $0x98] sm:$0xff]
        %v2268 = vld [vmem:[%s2247 + $0xa0] sm:$0xff]
        %v2269 = vld [vmem:[%s2247 + $0xa8] sm:$0xff]
        %v2270 = vld [vmem:[%s2247 + $0xb0] sm:$0xff]
        %v2271 = vld [vmem:[%s2247 + $0xb8] sm:$0xff]
        %v2272 = vld [vmem:[%s2247 + $0xc0] sm:$0xff]
        %v2273 = vld [vmem:[%s2247 + $0xc8] sm:$0xff]
        %v2274 = vld [vmem:[%s2247 + $0xd0] sm:$0xff]
        %v2275 = vld [vmem:[%s2247 + $0xd8] sm:$0xff]
        %v2276 = vld [vmem:[%s2247 + $0xe0] sm:$0xff]
        %v2277 = vld [vmem:[%s2247 + $0xe8] sm:$0xff]
        %v2278 = vld [vmem:[%s2247 + $0xf0] sm:$0xff]
        %v2279 = vld [vmem:[%s2247 + $0xf8] sm:$0xff]
        %2280 = vmatpush.msra.mxu0 %v2278
        %2281 = vmatpush.msra.mxu0 %v2276
        %2282 = vmatpush.msra.mxu0 %v2274
        %2283 = vmatpush.msra.mxu0 %v2272
        %2284 = vmatpush.msra.mxu0 %v2270
        %2285 = vmatpush.msra.mxu0 %v2268
        %2286 = vmatpush.msra.mxu0 %v2266
        %2287 = vmatpush.msra.mxu0 %v2264
        %2288 = vmatpush.msra.mxu0 %v2262
        %2289 = vmatpush.msra.mxu0 %v2260
        %2290 = vmatpush.msra.mxu0 %v2258
        %2291 = vmatpush.msra.mxu0 %v2256
        %2292 = vmatpush.msra.mxu0 %v2254
        %2293 = vmatpush.msra.mxu0 %v2252
        %2294 = vmatpush.msra.mxu0 %v2250
        %2295 = vmatpush.msra.mxu0 %v2248
        %2296 = vmatmul.f32.gmra.mxu0 %v2245
        %v2297 = vpop.f32.mrf.mxu0
        %v2298 = vadd.f32 0.0, %v2297
        %2299 = vmatmul.f32.gmra.mxu0 %v2246
        %v2300 = vpop.f32.mrf.mxu0
        %v2301 = vadd.f32 0.0, %v2300
        %2302 = vdwg.mxu0
        %2303 = vmatpush.msra.mxu0 %v2279
        %2304 = vmatpush.msra.mxu0 %v2277
        %2305 = vmatpush.msra.mxu0 %v2275
        %2306 = vmatpush.msra.mxu0 %v2273
        %2307 = vmatpush.msra.mxu0 %v2271
        %2308 = vmatpush.msra.mxu0 %v2269
        %2309 = vmatpush.msra.mxu0 %v2267
        %2310 = vmatpush.msra.mxu0 %v2265
        %2311 = vmatpush.msra.mxu0 %v2263
        %2312 = vmatpush.msra.mxu0 %v2261
        %2313 = vmatpush.msra.mxu0 %v2259
        %2314 = vmatpush.msra.mxu0 %v2257
        %2315 = vmatpush.msra.mxu0 %v2255
        %2316 = vmatpush.msra.mxu0 %v2253
        %2317 = vmatpush.msra.mxu0 %v2251
        %2318 = vmatpush.msra.mxu0 %v2249
        %2319 = vmatmul.f32.gmra.mxu0 %v2245
        %v2320 = vpop.f32.mrf.mxu0
        %v2321 = vadd.f32 0.0, %v2320
        %2322 = vmatmul.f32.gmra.mxu0 %v2246
        %v2323 = vpop.f32.mrf.mxu0
        %v2324 = vadd.f32 0.0, %v2323
        %2325 = vdwg.mxu0
        %2326 = vmatpush.msra.mxu0 %v2243
        %2327 = vmatpush.msra.mxu0 %v2241
        %2328 = vmatpush.msra.mxu0 %v2239
        %2329 = vmatpush.msra.mxu0 %v2237
        %2330 = vmatpush.msra.mxu0 %v2235
        %2331 = vmatpush.msra.mxu0 %v2233
        %2332 = vmatpush.msra.mxu0 %v2231
        %2333 = vmatpush.msra.mxu0 %v2229
        %2334 = vmatpush.msra.mxu0 %v2227
        %2335 = vmatpush.msra.mxu0 %v2225
        %2336 = vmatpush.msra.mxu0 %v2223
        %2337 = vmatpush.msra.mxu0 %v2221
        %2338 = vmatpush.msra.mxu0 %v2219
        %2339 = vmatpush.msra.mxu0 %v2217
        %2340 = vmatpush.msra.mxu0 %v2215
        %2341 = vmatpush.msra.mxu0 %v2213
        %2342 = vmatmul.f32.gmra.mxu0 %v2211
        %v2343 = vpop.f32.mrf.mxu0
        %v2344 = vadd.f32 %v2298, %v2343
        %2345 = vmatmul.f32.gmra.mxu0 %v2212
        %v2346 = vpop.f32.mrf.mxu0
        %v2347 = vadd.f32 %v2301, %v2346
        %2348 = vdwg.mxu0
        %2349 = vmatpush.msra.mxu0 %v2244
        %2350 = vmatpush.msra.mxu0 %v2242
        %2351 = vmatpush.msra.mxu0 %v2240
        %2352 = vmatpush.msra.mxu0 %v2238
        %2353 = vmatpush.msra.mxu0 %v2236
        %2354 = vmatpush.msra.mxu0 %v2234
        %2355 = vmatpush.msra.mxu0 %v2232
        %2356 = vmatpush.msra.mxu0 %v2230
        %2357 = vmatpush.msra.mxu0 %v2228
        %2358 = vmatpush.msra.mxu0 %v2226
        %2359 = vmatpush.msra.mxu0 %v2224
        %2360 = vmatpush.msra.mxu0 %v2222
        %2361 = vmatpush.msra.mxu0 %v2220
        %2362 = vmatpush.msra.mxu0 %v2218
        %2363 = vmatpush.msra.mxu0 %v2216
        %2364 = vmatpush.msra.mxu0 %v2214
        %2365 = vmatmul.f32.gmra.mxu0 %v2211
        %v2366 = vpop.f32.mrf.mxu0
        %v2367 = vadd.f32 %v2321, %v2366
        %2368 = vmatmul.f32.gmra.mxu0 %v2212
        %v2369 = vpop.f32.mrf.mxu0
        %v2370 = vadd.f32 %v2324, %v2369
        %2371 = vdwg.mxu0
        %v2372 = vld [vmem:[#allocation5 + $0x2] sm:$0xff]
        %v2373 = vld [vmem:[#allocation5 + $0xa] sm:$0x3f]
        %s2374 = scalar_lea.vmem [#allocation13], 512
        %v2375 = vld [vmem:[%s2374] sm:$0xff]
        %v2376 = vld [vmem:[%s2374 + $0x8] sm:$0xff]
        %v2377 = vld [vmem:[%s2374 + $0x10] sm:$0xff]
        %v2378 = vld [vmem:[%s2374 + $0x18] sm:$0xff]
        %v2379 = vld [vmem:[%s2374 + $0x20] sm:$0xff]
        %v2380 = vld [vmem:[%s2374 + $0x28] sm:$0xff]
        %v2381 = vld [vmem:[%s2374 + $0x30] sm:$0xff]
        %v2382 = vld [vmem:[%s2374 + $0x38] sm:$0xff]
        %v2383 = vld [vmem:[%s2374 + $0x40] sm:$0xff]
        %v2384 = vld [vmem:[%s2374 + $0x48] sm:$0xff]
        %v2385 = vld [vmem:[%s2374 + $0x50] sm:$0xff]
        %v2386 = vld [vmem:[%s2374 + $0x58] sm:$0xff]
        %v2387 = vld [vmem:[%s2374 + $0x60] sm:$0xff]
        %v2388 = vld [vmem:[%s2374 + $0x68] sm:$0xff]
        %v2389 = vld [vmem:[%s2374 + $0x70] sm:$0xff]
        %v2390 = vld [vmem:[%s2374 + $0x78] sm:$0xff]
        %v2391 = vld [vmem:[%s2374 + $0x80] sm:$0xff]
        %v2392 = vld [vmem:[%s2374 + $0x88] sm:$0xff]
        %v2393 = vld [vmem:[%s2374 + $0x90] sm:$0xff]
        %v2394 = vld [vmem:[%s2374 + $0x98] sm:$0xff]
        %v2395 = vld [vmem:[%s2374 + $0xa0] sm:$0xff]
        %v2396 = vld [vmem:[%s2374 + $0xa8] sm:$0xff]
        %v2397 = vld [vmem:[%s2374 + $0xb0] sm:$0xff]
        %v2398 = vld [vmem:[%s2374 + $0xb8] sm:$0xff]
        %v2399 = vld [vmem:[%s2374 + $0xc0] sm:$0xff]
        %v2400 = vld [vmem:[%s2374 + $0xc8] sm:$0xff]
        %v2401 = vld [vmem:[%s2374 + $0xd0] sm:$0xff]
        %v2402 = vld [vmem:[%s2374 + $0xd8] sm:$0xff]
        %v2403 = vld [vmem:[%s2374 + $0xe0] sm:$0xff]
        %v2404 = vld [vmem:[%s2374 + $0xe8] sm:$0xff]
        %v2405 = vld [vmem:[%s2374 + $0xf0] sm:$0xff]
        %v2406 = vld [vmem:[%s2374 + $0xf8] sm:$0xff]
        %2407 = vmatpush.msra.mxu0 %v2405
        %2408 = vmatpush.msra.mxu0 %v2403
        %2409 = vmatpush.msra.mxu0 %v2401
        %2410 = vmatpush.msra.mxu0 %v2399
        %2411 = vmatpush.msra.mxu0 %v2397
        %2412 = vmatpush.msra.mxu0 %v2395
        %2413 = vmatpush.msra.mxu0 %v2393
        %2414 = vmatpush.msra.mxu0 %v2391
        %2415 = vmatpush.msra.mxu0 %v2389
        %2416 = vmatpush.msra.mxu0 %v2387
        %2417 = vmatpush.msra.mxu0 %v2385
        %2418 = vmatpush.msra.mxu0 %v2383
        %2419 = vmatpush.msra.mxu0 %v2381
        %2420 = vmatpush.msra.mxu0 %v2379
        %2421 = vmatpush.msra.mxu0 %v2377
        %2422 = vmatpush.msra.mxu0 %v2375
        %2423 = vmatmul.f32.gmra.mxu0 %v2372
        %v2424 = vpop.f32.mrf.mxu0
        %v2425 = vadd.f32 0.0, %v2424
        %2426 = vmatmul.f32.gmra.mxu0 %v2373
        %v2427 = vpop.f32.mrf.mxu0
        %v2428 = vadd.f32 0.0, %v2427
        %2429 = vdwg.mxu0
        %2430 = vmatpush.msra.mxu0 %v2406
        %2431 = vmatpush.msra.mxu0 %v2404
        %2432 = vmatpush.msra.mxu0 %v2402
        %2433 = vmatpush.msra.mxu0 %v2400
        %2434 = vmatpush.msra.mxu0 %v2398
        %2435 = vmatpush.msra.mxu0 %v2396
        %2436 = vmatpush.msra.mxu0 %v2394
        %2437 = vmatpush.msra.mxu0 %v2392
        %2438 = vmatpush.msra.mxu0 %v2390
        %2439 = vmatpush.msra.mxu0 %v2388
        %2440 = vmatpush.msra.mxu0 %v2386
        %2441 = vmatpush.msra.mxu0 %v2384
        %2442 = vmatpush.msra.mxu0 %v2382
        %2443 = vmatpush.msra.mxu0 %v2380
        %2444 = vmatpush.msra.mxu0 %v2378
        %2445 = vmatpush.msra.mxu0 %v2376
        %2446 = vmatmul.f32.gmra.mxu0 %v2372
        %v2447 = vpop.f32.mrf.mxu0
        %v2448 = vadd.f32 0.0, %v2447
        %2449 = vmatmul.f32.gmra.mxu0 %v2373
        %v2450 = vpop.f32.mrf.mxu0
        %v2451 = vadd.f32 0.0, %v2450
        %2452 = vdwg.mxu0
        %v2453 = vadd.f32 %v2344, %v2425
        %v2454 = vadd.f32 %v2367, %v2448
        %v2455 = vadd.f32 %v2347, %v2428
        %v2456 = vadd.f32 %v2370, %v2451
        %v2458 = vperm.slane %v2210, 0
        %v2459 = vperm.slane %v2210, 1
        %v2462 = vadd.f32 %v2453, %v2458
        %v2463 = vadd.f32 %v2454, %v2459
        %v2464 = vadd.f32 %v2455, %v2458
        %v2465 = vadd.f32 %v2456, %v2459
        %vm2466 = vcmp.ge.f32.partialorder %v2462, 0.0
        %vm2467 = vcmp.ge.f32.partialorder %v2463, 0.0
        %vm2468 = vcmp.ge.f32.partialorder %v2464, 0.0
        %vm2469 = vcmp.ge.f32.partialorder %v2465, 0.0
        %v2470 = vmul.f32 %v2462, 0.01
        %v2471 = vmul.f32 %v2463, 0.01
        %v2472 = vmul.f32 %v2464, 0.01
        %v2473 = vmul.f32 %v2465, 0.01
        %v2474 = vsel %vm2466, %v2462, %v2470
        %v2475 = vsel %vm2467, %v2463, %v2471
        %v2476 = vsel %vm2468, %v2464, %v2472
        %v2477 = vsel %vm2469, %v2465, %v2473
        %2478 = vst [vmem:[%s546] sm:$0x3f] %v2474
        %2479 = vst [vmem:[%s546 + $0x8] sm:$0x3f] %v2475
        %s2480 = scalar_lea.vmem %s546, 16
        %2481 = vst [vmem:[%s2480] sm:$0x3f] %v2476
        %2482 = vst [vmem:[%s2480 + $0x8] sm:$0x3f] %v2477
        %s2483 = smul.u32 2, %s28
        %p2484 = scmp.lt.s32.totalorder %s2483, 3
        %s2485 = scalar_select %p2484, %s2483, 3
        %s2486 = smul.addr %s2485, 2
        %s2487 = smul.addr %s2486, 8
        %s2488 = scalar_lea.vmem %s11, %s2487
        // Predicated region
        $region105: #{cnn_big_diff_forward.2} parent=63 // pred_check
          %p2489 = pneg %p282
        $region106: #{cnn_big_diff_forward.2} parent=63 // pred_check_branch
          %2491 = sbr.rel (%p2489) target = $region108
        $region107: #{cnn_big_diff_forward.2} parent=63 // pred_region
          %s2492 = smul.u32 2, %s28
        $region108: #{cnn_big_diff_forward.2} parent=63 // pred_fallthru
          _
      $region64: #{cnn_big_diff_forward.2} parent=5 // pred_fallthru
        _
      %p2493 = scmp.le.s32.totalorder 2, %s23
      // Predicated region
      $region109: #{cnn_big_diff_forward.2} parent=5 // pred_check
        %p2494 = pneg %p2493
      $region110: #{cnn_big_diff_forward.2} parent=5 // pred_check_branch
        %2496 = sbr.rel (%p2494) target = $region112
      $region111: #{cnn_big_diff_forward.2} parent=5 // pred_region
        %s2497 = ssub.s32 %s23, 2
        // Predicated region
        $region113: #{cnn_big_diff_forward.2} parent=111 // pred_check
          %p2498 = pneg %p288
        $region114: #{cnn_big_diff_forward.2} parent=111 // pred_check_branch
          %2500 = sbr.rel (%p2498) target = $region116
        $region115: #{cnn_big_diff_forward.2} parent=111 // pred_region
          %s2501 = smul.u32 2, %s29
          %p2502 = scmp.lt.s32.totalorder %s2501, 3
          %s2503 = scalar_select %p2502, %s2501, 3
          %s2504 = smul.addr %s2503, 2
          %s2505 = smul.addr %s2504, 8
          %s2506 = scalar_lea.vmem %s11, %s2505
        $region116: #{cnn_big_diff_forward.2} parent=111 // pred_fallthru
          _
      $region112: #{cnn_big_diff_forward.2} parent=5 // pred_fallthru
        _
    $region6: #{cnn_big_diff_forward.2} parent=1 // loop_footer
      %s27 = sadd.s32 1, %s23
    $region7: #{cnn_big_diff_forward.2} parent=1 // loop_footer_branch
      %22 = sbr.rel target = $region3
    $region8: #{cnn_big_diff_forward.2} parent=1 // loop_exit
      _
    %2507 = vsyncpa [#allocation7], 1
    %s2508 = scalar_lea.sflag [#allocation7], 1
    %2509 = vsyncpa %s2508, 1
    %2510 = vsyncpa [#allocation9], 1
    %2511 = vsyncpa [#allocation12], 1
    %2512 = vsyncpa [#allocation15], 1
    %2513 = vsyncpa [#allocation18], 1
    %2514 = vsyncpa [#allocation21], 1

</llo_original>
